<compile_context>
chip_gen: v7x
topology: tpu7x:2x2x1
jax: 0.10.0
libtpu: 0.0.40
codegen_flags: <defaults>
</compile_context>

<pallas_src>
import jax
import jax.numpy as jnp
from jax.experimental import pallas as pl
from jax.experimental.pallas import tpu as pltpu


def _node_kernel(t_ref, x_ref, w1_ref, b1_ref, w2_ref, b2_ref, out_ref):
    TB, D = x_ref.shape
    H = w1_ref.shape[1]
    T = out_ref.shape[0]

    # Hoist parameter loads / bias broadcasts out of the RK4 loop (JAX does not
    # CSE broadcast_in_dim; previously these were re-done 4x per step).
    w1 = w1_ref[...]
    w2 = w2_ref[...]
    b1 = jnp.broadcast_to(b1_ref[...], (TB, H))
    b2 = jnp.broadcast_to(b2_ref[...], (TB, D))

    def f(x):
        h = jnp.tanh(jnp.dot(x, w1, preferred_element_type=jnp.float32) + b1)
        return jnp.dot(h, w2, preferred_element_type=jnp.float32) + b2

    y0 = x_ref[...]
    # odeint returns the initial condition as the first output slice.
    out_ref[0] = y0

    def step(i, y):
        # Scalar (SMEM) time arithmetic once per step.
        dt = t_ref[i] - t_ref[i - 1]
        half_dt = 0.5 * dt
        sixth_dt = dt / 6.0
        k1 = f(y)
        k2 = f(y + half_dt * k1)
        k3 = f(y + half_dt * k2)
        k4 = f(y + dt * k3)
        y_new = y + sixth_dt * (k1 + 2.0 * k2 + 2.0 * k3 + k4)
        out_ref[i] = y_new
        return y_new

    # Short static trip count -> unrolled for LLO scheduler visibility.
    jax.lax.fori_loop(1, T, step, y0, unroll=True)


def neural_ode(X, t, w1, b1, w2, b2, *, batch_block=None):
    T = t.shape[0]
    B, D = X.shape
    H = w1.shape[1]
    if batch_block is None:
        # One block for small batches; 128-row blocks (MXU M tile) for large ones,
        # which also lets v7x's two TensorCores each integrate a disjoint slice.
        batch_block = B if B <= 128 else 128
    assert B % batch_block == 0, "batch must divide into batch_block tiles"
    nb = B // batch_block

    return pl.pallas_call(
        _node_kernel,
        out_shape=jax.ShapeDtypeStruct((T, B, D), jnp.float32),
        grid_spec=pltpu.PrefetchScalarGridSpec(
            num_scalar_prefetch=0,
            grid=(nb,),  # batch blocks only; time loop is in-kernel
            in_specs=[
                pl.BlockSpec(memory_space=pltpu.MemorySpace.SMEM),    # t  (T,)
                pl.BlockSpec((batch_block, D), lambda b: (b, 0)),     # X
                pl.BlockSpec((D, H), lambda b: (0, 0)),               # W1
                pl.BlockSpec((1, H), lambda b: (0, 0)),               # b1
                pl.BlockSpec((H, D), lambda b: (0, 0)),               # W2
                pl.BlockSpec((1, D), lambda b: (0, 0)),               # b2
            ],
            out_specs=pl.BlockSpec((T, batch_block, D), lambda b: (0, b, 0)),
        ),
        compiler_params=pltpu.CompilerParams(
            dimension_semantics=("parallel",),  # independent batch blocks (v7x 2 TCs)
        ),
    )(t, X, w1, b1, w2, b2)


def neural_ode_ref(X, t, w1, b1, w2, b2):
    """Pure-JAX reference (fixed-step RK4, same ode_func)."""
    def f(x):
        return jnp.tanh(x @ w1 + b1) @ w2 + b2

    ys = [X]
    y = X
    for i in range(1, t.shape[0]):
        dt = t[i] - t[i - 1]
        k1 = f(y)
        k2 = f(y + 0.5 * dt * k1)
        k3 = f(y + 0.5 * dt * k2)
        k4 = f(y + dt * k3)
        y = y + (dt / 6.0) * (k1 + 2.0 * k2 + 2.0 * k3 + k4)
        ys.append(y)
    return jnp.stack(ys)


if __name__ == "__main__":
    B, D, H, T = 8, 32, 32, 8

    key = jax.random.PRNGKey(0)
    k_x, k_w1, k_b1, k_w2, k_b2 = jax.random.split(key, 5)

    # Deterministic parameter init (PyTorch Linear-style uniform +-1/sqrt(fan_in)).
    lim1 = 1.0 / jnp.sqrt(jnp.float32(D))
    lim2 = 1.0 / jnp.sqrt(jnp.float32(H))
    w1 = jax.random.uniform(k_w1, (D, H), jnp.float32, -lim1, lim1)
    b1 = jax.random.uniform(k_b1, (1, H), jnp.float32, -lim1, lim1)
    w2 = jax.random.uniform(k_w2, (H, D), jnp.float32, -lim2, lim2)
    b2 = jax.random.uniform(k_b2, (1, D), jnp.float32, -lim2, lim2)

    X = jax.random.normal(k_x, (B, D), jnp.float32)
    t = jnp.linspace(0.0, 1.0, T, dtype=jnp.float32)

    out = neural_ode(X, t, w1, b1, w2, b2)
    out = jax.block_until_ready(out)

    ref = neural_ode_ref(X, t, w1, b1, w2, b2)
    assert out.shape == (T, B, D)
    assert jnp.allclose(out, ref, atol=1e-5, rtol=1e-5), "mismatch vs reference"

    print("KERNEL_OK")
</pallas_src>

<mosaic_0001>
module attributes {stable_mosaic.version = 11 : i64} {
  func.func @_node_kernel(%arg0: i32, %arg1: memref<8xf32, #tpu.memory_space<smem>>, %arg2: memref<8x32xf32, #tpu.memory_space<vmem>>, %arg3: memref<32x32xf32, #tpu.memory_space<vmem>>, %arg4: memref<1x32xf32, #tpu.memory_space<vmem>>, %arg5: memref<32x32xf32, #tpu.memory_space<vmem>>, %arg6: memref<1x32xf32, #tpu.memory_space<vmem>>, %arg7: memref<8x8x32xf32, #tpu.memory_space<vmem>>) attributes {dimension_semantics = [#tpu.dimension_semantics<parallel>], iteration_bounds = array<i64: 1>, scalar_prefetch = 0 : i64, scratch_operands = 0 : i64, tpu.core_type = #tpu.core_type<tc>, window_params = [{transform_indices = @transform_0, window_bounds = array<i64: 8>}, {transform_indices = @transform_1, window_bounds = array<i64: 8, 32>}, {pipeline_mode = #tpu.pipeline_mode<synchronous>, transform_indices = @transform_2, window_bounds = array<i64: 32, 32>}, {pipeline_mode = #tpu.pipeline_mode<synchronous>, transform_indices = @transform_3, window_bounds = array<i64: 1, 32>}, {pipeline_mode = #tpu.pipeline_mode<synchronous>, transform_indices = @transform_4, window_bounds = array<i64: 32, 32>}, {pipeline_mode = #tpu.pipeline_mode<synchronous>, transform_indices = @transform_5, window_bounds = array<i64: 1, 32>}, {transform_indices = @transform_6, window_bounds = array<i64: 8, 8, 32>}]} {
    %c0 = arith.constant 0 : index
    %c0_0 = arith.constant 0 : index
    %0 = vector.load %arg3[%c0, %c0_0] : memref<32x32xf32, #tpu.memory_space<vmem>>, vector<32x32xf32>
    %c0_1 = arith.constant 0 : index
    %c0_2 = arith.constant 0 : index
    %1 = vector.load %arg5[%c0_1, %c0_2] : memref<32x32xf32, #tpu.memory_space<vmem>>, vector<32x32xf32>
    %c0_3 = arith.constant 0 : index
    %c0_4 = arith.constant 0 : index
    %2 = vector.load %arg4[%c0_3, %c0_4] : memref<1x32xf32, #tpu.memory_space<vmem>>, vector<1x32xf32>
    %3 = vector.shape_cast %2 : vector<1x32xf32> to vector<1x32xf32>
    %4 = vector.broadcast %3 : vector<1x32xf32> to vector<8x32xf32>
    %c0_5 = arith.constant 0 : index
    %c0_6 = arith.constant 0 : index
    %5 = vector.load %arg6[%c0_5, %c0_6] : memref<1x32xf32, #tpu.memory_space<vmem>>, vector<1x32xf32>
    %6 = vector.shape_cast %5 : vector<1x32xf32> to vector<1x32xf32>
    %7 = vector.broadcast %6 : vector<1x32xf32> to vector<8x32xf32>
    %c0_7 = arith.constant 0 : index
    %c0_8 = arith.constant 0 : index
    %8 = vector.load %arg2[%c0_7, %c0_8] : memref<8x32xf32, #tpu.memory_space<vmem>>, vector<8x32xf32>
    %c0_9 = arith.constant 0 : index
    %c0_10 = arith.constant 0 : index
    %c0_11 = arith.constant 0 : index
    %9 = vector.load %arg7[%c0_9, %c0_10, %c0_11] : memref<8x8x32xf32, #tpu.memory_space<vmem>>, vector<1x8x32xf32>
    %10 = vector.shape_cast %9 : vector<1x8x32xf32> to vector<8x32xf32>
    %11 = vector.shape_cast %8 : vector<8x32xf32> to vector<1x8x32xf32>
    tpu.vector_store %arg7[%c0_9, %c0_10, %c0_11], %11 {strides = array<i32>} : memref<8x8x32xf32, #tpu.memory_space<vmem>>, vector<1x8x32xf32>,
    %c1_i32 = arith.constant 1 : i32
    %12 = arith.index_cast %c1_i32 : i32 to index
    %13 = memref.load %arg1[%12] : memref<8xf32, #tpu.memory_space<smem>>
    %c1_i32_12 = arith.constant 1 : i32
    %14 = arith.subi %c1_i32, %c1_i32_12 : i32
    %15 = arith.index_cast %14 : i32 to index
    %16 = memref.load %arg1[%15] : memref<8xf32, #tpu.memory_space<smem>>
    %17 = arith.subf %13, %16 : f32
    %cst = arith.constant 5.000000e-01 : f32
    %18 = arith.mulf %cst, %17 : f32
    %cst_13 = arith.constant 6.000000e+00 : f32
    %19 = arith.divf %17, %cst_13 : f32
    %cst_14 = arith.constant dense<0.000000e+00> : vector<8x32xf32>
    %20 = tpu.matmul %8, %0, %cst_14 {dimension_numbers = #tpu.dot_dimension_numbers<[1], [0], [0], [1], [0, 0, 1, 1], [], []>} : vector<8x32xf32>, vector<32x32xf32>, vector<8x32xf32> -> vector<8x32xf32>
    %21 = arith.addf %20, %4 : vector<8x32xf32>
    %22 = math.tanh %21 : vector<8x32xf32>
    %cst_15 = arith.constant dense<0.000000e+00> : vector<8x32xf32>
    %23 = tpu.matmul %22, %1, %cst_15 {dimension_numbers = #tpu.dot_dimension_numbers<[1], [0], [0], [1], [0, 0, 1, 1], [], []>} : vector<8x32xf32>, vector<32x32xf32>, vector<8x32xf32> -> vector<8x32xf32>
    %24 = arith.addf %23, %7 : vector<8x32xf32>
    %25 = vector.broadcast %18 : f32 to vector<8x32xf32>
    %26 = arith.mulf %25, %24 : vector<8x32xf32>
    %27 = arith.addf %8, %26 : vector<8x32xf32>
    %cst_16 = arith.constant dense<0.000000e+00> : vector<8x32xf32>
    %28 = tpu.matmul %27, %0, %cst_16 {dimension_numbers = #tpu.dot_dimension_numbers<[1], [0], [0], [1], [0, 0, 1, 1], [], []>} : vector<8x32xf32>, vector<32x32xf32>, vector<8x32xf32> -> vector<8x32xf32>
    %29 = arith.addf %28, %4 : vector<8x32xf32>
    %30 = math.tanh %29 : vector<8x32xf32>
    %cst_17 = arith.constant dense<0.000000e+00> : vector<8x32xf32>
    %31 = tpu.matmul %30, %1, %cst_17 {dimension_numbers = #tpu.dot_dimension_numbers<[1], [0], [0], [1], [0, 0, 1, 1], [], []>} : vector<8x32xf32>, vector<32x32xf32>, vector<8x32xf32> -> vector<8x32xf32>
    %32 = arith.addf %31, %7 : vector<8x32xf32>
    %33 = vector.broadcast %18 : f32 to vector<8x32xf32>
    %34 = arith.mulf %33, %32 : vector<8x32xf32>
    %35 = arith.addf %8, %34 : vector<8x32xf32>
    %cst_18 = arith.constant dense<0.000000e+00> : vector<8x32xf32>
    %36 = tpu.matmul %35, %0, %cst_18 {dimension_numbers = #tpu.dot_dimension_numbers<[1], [0], [0], [1], [0, 0, 1, 1], [], []>} : vector<8x32xf32>, vector<32x32xf32>, vector<8x32xf32> -> vector<8x32xf32>
    %37 = arith.addf %36, %4 : vector<8x32xf32>
    %38 = math.tanh %37 : vector<8x32xf32>
    %cst_19 = arith.constant dense<0.000000e+00> : vector<8x32xf32>
    %39 = tpu.matmul %38, %1, %cst_19 {dimension_numbers = #tpu.dot_dimension_numbers<[1], [0], [0], [1], [0, 0, 1, 1], [], []>} : vector<8x32xf32>, vector<32x32xf32>, vector<8x32xf32> -> vector<8x32xf32>
    %40 = arith.addf %39, %7 : vector<8x32xf32>
    %41 = vector.broadcast %17 : f32 to vector<8x32xf32>
    %42 = arith.mulf %41, %40 : vector<8x32xf32>
    %43 = arith.addf %8, %42 : vector<8x32xf32>
    %cst_20 = arith.constant dense<0.000000e+00> : vector<8x32xf32>
    %44 = tpu.matmul %43, %0, %cst_20 {dimension_numbers = #tpu.dot_dimension_numbers<[1], [0], [0], [1], [0, 0, 1, 1], [], []>} : vector<8x32xf32>, vector<32x32xf32>, vector<8x32xf32> -> vector<8x32xf32>
    %45 = arith.addf %44, %4 : vector<8x32xf32>
    %46 = math.tanh %45 : vector<8x32xf32>
    %cst_21 = arith.constant dense<0.000000e+00> : vector<8x32xf32>
    %47 = tpu.matmul %46, %1, %cst_21 {dimension_numbers = #tpu.dot_dimension_numbers<[1], [0], [0], [1], [0, 0, 1, 1], [], []>} : vector<8x32xf32>, vector<32x32xf32>, vector<8x32xf32> -> vector<8x32xf32>
    %48 = arith.addf %47, %7 : vector<8x32xf32>
    %cst_22 = arith.constant 2.000000e+00 : f32
    %49 = vector.broadcast %cst_22 : f32 to vector<8x32xf32>
    %50 = arith.mulf %49, %32 : vector<8x32xf32>
    %51 = arith.addf %24, %50 : vector<8x32xf32>
    %cst_23 = arith.constant 2.000000e+00 : f32
    %52 = vector.broadcast %cst_23 : f32 to vector<8x32xf32>
    %53 = arith.mulf %52, %40 : vector<8x32xf32>
    %54 = arith.addf %51, %53 : vector<8x32xf32>
    %55 = arith.addf %54, %48 : vector<8x32xf32>
    %56 = vector.broadcast %19 : f32 to vector<8x32xf32>
    %57 = arith.mulf %56, %55 : vector<8x32xf32>
    %58 = arith.addf %8, %57 : vector<8x32xf32>
    %59 = arith.index_cast %c1_i32 : i32 to index
    %c0_24 = arith.constant 0 : index
    %c0_25 = arith.constant 0 : index
    %60 = vector.load %arg7[%59, %c0_24, %c0_25] : memref<8x8x32xf32, #tpu.memory_space<vmem>>, vector<1x8x32xf32>
    %61 = vector.shape_cast %60 : vector<1x8x32xf32> to vector<8x32xf32>
    %62 = vector.shape_cast %58 : vector<8x32xf32> to vector<1x8x32xf32>
    tpu.vector_store %arg7[%59, %c0_24, %c0_25], %62 {strides = array<i32>} : memref<8x8x32xf32, #tpu.memory_space<vmem>>, vector<1x8x32xf32>,
    %c2_i32 = arith.constant 2 : i32
    %63 = arith.index_cast %c2_i32 : i32 to index
    %64 = memref.load %arg1[%63] : memref<8xf32, #tpu.memory_space<smem>>
    %c1_i32_26 = arith.constant 1 : i32
    %65 = arith.subi %c2_i32, %c1_i32_26 : i32
    %66 = arith.index_cast %65 : i32 to index
    %67 = memref.load %arg1[%66] : memref<8xf32, #tpu.memory_space<smem>>
    %68 = arith.subf %64, %67 : f32
    %cst_27 = arith.constant 5.000000e-01 : f32
    %69 = arith.mulf %cst_27, %68 : f32
    %cst_28 = arith.constant 6.000000e+00 : f32
    %70 = arith.divf %68, %cst_28 : f32
    %cst_29 = arith.constant dense<0.000000e+00> : vector<8x32xf32>
    %71 = tpu.matmul %58, %0, %cst_29 {dimension_numbers = #tpu.dot_dimension_numbers<[1], [0], [0], [1], [0, 0, 1, 1], [], []>} : vector<8x32xf32>, vector<32x32xf32>, vector<8x32xf32> -> vector<8x32xf32>
    %72 = arith.addf %71, %4 : vector<8x32xf32>
    %73 = math.tanh %72 : vector<8x32xf32>
    %cst_30 = arith.constant dense<0.000000e+00> : vector<8x32xf32>
    %74 = tpu.matmul %73, %1, %cst_30 {dimension_numbers = #tpu.dot_dimension_numbers<[1], [0], [0], [1], [0, 0, 1, 1], [], []>} : vector<8x32xf32>, vector<32x32xf32>, vector<8x32xf32> -> vector<8x32xf32>
    %75 = arith.addf %74, %7 : vector<8x32xf32>
    %76 = vector.broadcast %69 : f32 to vector<8x32xf32>
    %77 = arith.mulf %76, %75 : vector<8x32xf32>
    %78 = arith.addf %58, %77 : vector<8x32xf32>
    %cst_31 = arith.constant dense<0.000000e+00> : vector<8x32xf32>
    %79 = tpu.matmul %78, %0, %cst_31 {dimension_numbers = #tpu.dot_dimension_numbers<[1], [0], [0], [1], [0, 0, 1, 1], [], []>} : vector<8x32xf32>, vector<32x32xf32>, vector<8x32xf32> -> vector<8x32xf32>
    %80 = arith.addf %79, %4 : vector<8x32xf32>
    %81 = math.tanh %80 : vector<8x32xf32>
    %cst_32 = arith.constant dense<0.000000e+00> : vector<8x32xf32>
    %82 = tpu.matmul %81, %1, %cst_32 {dimension_numbers = #tpu.dot_dimension_numbers<[1], [0], [0], [1], [0, 0, 1, 1], [], []>} : vector<8x32xf32>, vector<32x32xf32>, vector<8x32xf32> -> vector<8x32xf32>
    %83 = arith.addf %82, %7 : vector<8x32xf32>
    %84 = vector.broadcast %69 : f32 to vector<8x32xf32>
    %85 = arith.mulf %84, %83 : vector<8x32xf32>
    %86 = arith.addf %58, %85 : vector<8x32xf32>
    %cst_33 = arith.constant dense<0.000000e+00> : vector<8x32xf32>
    %87 = tpu.matmul %86, %0, %cst_33 {dimension_numbers = #tpu.dot_dimension_numbers<[1], [0], [0], [1], [0, 0, 1, 1], [], []>} : vector<8x32xf32>, vector<32x32xf32>, vector<8x32xf32> -> vector<8x32xf32>
    %88 = arith.addf %87, %4 : vector<8x32xf32>
    %89 = math.tanh %88 : vector<8x32xf32>
    %cst_34 = arith.constant dense<0.000000e+00> : vector<8x32xf32>
    %90 = tpu.matmul %89, %1, %cst_34 {dimension_numbers = #tpu.dot_dimension_numbers<[1], [0], [0], [1], [0, 0, 1, 1], [], []>} : vector<8x32xf32>, vector<32x32xf32>, vector<8x32xf32> -> vector<8x32xf32>
    %91 = arith.addf %90, %7 : vector<8x32xf32>
    %92 = vector.broadcast %68 : f32 to vector<8x32xf32>
    %93 = arith.mulf %92, %91 : vector<8x32xf32>
    %94 = arith.addf %58, %93 : vector<8x32xf32>
    %cst_35 = arith.constant dense<0.000000e+00> : vector<8x32xf32>
    %95 = tpu.matmul %94, %0, %cst_35 {dimension_numbers = #tpu.dot_dimension_numbers<[1], [0], [0], [1], [0, 0, 1, 1], [], []>} : vector<8x32xf32>, vector<32x32xf32>, vector<8x32xf32> -> vector<8x32xf32>
    %96 = arith.addf %95, %4 : vector<8x32xf32>
    %97 = math.tanh %96 : vector<8x32xf32>
    %cst_36 = arith.constant dense<0.000000e+00> : vector<8x32xf32>
    %98 = tpu.matmul %97, %1, %cst_36 {dimension_numbers = #tpu.dot_dimension_numbers<[1], [0], [0], [1], [0, 0, 1, 1], [], []>} : vector<8x32xf32>, vector<32x32xf32>, vector<8x32xf32> -> vector<8x32xf32>
    %99 = arith.addf %98, %7 : vector<8x32xf32>
    %cst_37 = arith.constant 2.000000e+00 : f32
    %100 = vector.broadcast %cst_37 : f32 to vector<8x32xf32>
    %101 = arith.mulf %100, %83 : vector<8x32xf32>
    %102 = arith.addf %75, %101 : vector<8x32xf32>
    %cst_38 = arith.constant 2.000000e+00 : f32
    %103 = vector.broadcast %cst_38 : f32 to vector<8x32xf32>
    %104 = arith.mulf %103, %91 : vector<8x32xf32>
    %105 = arith.addf %102, %104 : vector<8x32xf32>
    %106 = arith.addf %105, %99 : vector<8x32xf32>
    %107 = vector.broadcast %70 : f32 to vector<8x32xf32>
    %108 = arith.mulf %107, %106 : vector<8x32xf32>
    %109 = arith.addf %58, %108 : vector<8x32xf32>
    %110 = arith.index_cast %c2_i32 : i32 to index
    %c0_39 = arith.constant 0 : index
    %c0_40 = arith.constant 0 : index
    %111 = vector.load %arg7[%110, %c0_39, %c0_40] : memref<8x8x32xf32, #tpu.memory_space<vmem>>, vector<1x8x32xf32>
    %112 = vector.shape_cast %111 : vector<1x8x32xf32> to vector<8x32xf32>
    %113 = vector.shape_cast %109 : vector<8x32xf32> to vector<1x8x32xf32>
    tpu.vector_store %arg7[%110, %c0_39, %c0_40], %113 {strides = array<i32>} : memref<8x8x32xf32, #tpu.memory_space<vmem>>, vector<1x8x32xf32>,
    %c3_i32 = arith.constant 3 : i32
    %114 = arith.index_cast %c3_i32 : i32 to index
    %115 = memref.load %arg1[%114] : memref<8xf32, #tpu.memory_space<smem>>
    %c1_i32_41 = arith.constant 1 : i32
    %116 = arith.subi %c3_i32, %c1_i32_41 : i32
    %117 = arith.index_cast %116 : i32 to index
    %118 = memref.load %arg1[%117] : memref<8xf32, #tpu.memory_space<smem>>
    %119 = arith.subf %115, %118 : f32
    %cst_42 = arith.constant 5.000000e-01 : f32
    %120 = arith.mulf %cst_42, %119 : f32
    %cst_43 = arith.constant 6.000000e+00 : f32
    %121 = arith.divf %119, %cst_43 : f32
    %cst_44 = arith.constant dense<0.000000e+00> : vector<8x32xf32>
    %122 = tpu.matmul %109, %0, %cst_44 {dimension_numbers = #tpu.dot_dimension_numbers<[1], [0], [0], [1], [0, 0, 1, 1], [], []>} : vector<8x32xf32>, vector<32x32xf32>, vector<8x32xf32> -> vector<8x32xf32>
    %123 = arith.addf %122, %4 : vector<8x32xf32>
    %124 = math.tanh %123 : vector<8x32xf32>
    %cst_45 = arith.constant dense<0.000000e+00> : vector<8x32xf32>
    %125 = tpu.matmul %124, %1, %cst_45 {dimension_numbers = #tpu.dot_dimension_numbers<[1], [0], [0], [1], [0, 0, 1, 1], [], []>} : vector<8x32xf32>, vector<32x32xf32>, vector<8x32xf32> -> vector<8x32xf32>
    %126 = arith.addf %125, %7 : vector<8x32xf32>
    %127 = vector.broadcast %120 : f32 to vector<8x32xf32>
    %128 = arith.mulf %127, %126 : vector<8x32xf32>
    %129 = arith.addf %109, %128 : vector<8x32xf32>
    %cst_46 = arith.constant dense<0.000000e+00> : vector<8x32xf32>
    %130 = tpu.matmul %129, %0, %cst_46 {dimension_numbers = #tpu.dot_dimension_numbers<[1], [0], [0], [1], [0, 0, 1, 1], [], []>} : vector<8x32xf32>, vector<32x32xf32>, vector<8x32xf32> -> vector<8x32xf32>
    %131 = arith.addf %130, %4 : vector<8x32xf32>
    %132 = math.tanh %131 : vector<8x32xf32>
    %cst_47 = arith.constant dense<0.000000e+00> : vector<8x32xf32>
    %133 = tpu.matmul %132, %1, %cst_47 {dimension_numbers = #tpu.dot_dimension_numbers<[1], [0], [0], [1], [0, 0, 1, 1], [], []>} : vector<8x32xf32>, vector<32x32xf32>, vector<8x32xf32> -> vector<8x32xf32>
    %134 = arith.addf %133, %7 : vector<8x32xf32>
    %135 = vector.broadcast %120 : f32 to vector<8x32xf32>
    %136 = arith.mulf %135, %134 : vector<8x32xf32>
    %137 = arith.addf %109, %136 : vector<8x32xf32>
    %cst_48 = arith.constant dense<0.000000e+00> : vector<8x32xf32>
    %138 = tpu.matmul %137, %0, %cst_48 {dimension_numbers = #tpu.dot_dimension_numbers<[1], [0], [0], [1], [0, 0, 1, 1], [], []>} : vector<8x32xf32>, vector<32x32xf32>, vector<8x32xf32> -> vector<8x32xf32>
    %139 = arith.addf %138, %4 : vector<8x32xf32>
    %140 = math.tanh %139 : vector<8x32xf32>
    %cst_49 = arith.constant dense<0.000000e+00> : vector<8x32xf32>
    %141 = tpu.matmul %140, %1, %cst_49 {dimension_numbers = #tpu.dot_dimension_numbers<[1], [0], [0], [1], [0, 0, 1, 1], [], []>} : vector<8x32xf32>, vector<32x32xf32>, vector<8x32xf32> -> vector<8x32xf32>
    %142 = arith.addf %141, %7 : vector<8x32xf32>
    %143 = vector.broadcast %119 : f32 to vector<8x32xf32>
    %144 = arith.mulf %143, %142 : vector<8x32xf32>
    %145 = arith.addf %109, %144 : vector<8x32xf32>
    %cst_50 = arith.constant dense<0.000000e+00> : vector<8x32xf32>
    %146 = tpu.matmul %145, %0, %cst_50 {dimension_numbers = #tpu.dot_dimension_numbers<[1], [0], [0], [1], [0, 0, 1, 1], [], []>} : vector<8x32xf32>, vector<32x32xf32>, vector<8x32xf32> -> vector<8x32xf32>
    %147 = arith.addf %146, %4 : vector<8x32xf32>
    %148 = math.tanh %147 : vector<8x32xf32>
    %cst_51 = arith.constant dense<0.000000e+00> : vector<8x32xf32>
    %149 = tpu.matmul %148, %1, %cst_51 {dimension_numbers = #tpu.dot_dimension_numbers<[1], [0], [0], [1], [0, 0, 1, 1], [], []>} : vector<8x32xf32>, vector<32x32xf32>, vector<8x32xf32> -> vector<8x32xf32>
    %150 = arith.addf %149, %7 : vector<8x32xf32>
    %cst_52 = arith.constant 2.000000e+00 : f32
    %151 = vector.broadcast %cst_52 : f32 to vector<8x32xf32>
    %152 = arith.mulf %151, %134 : vector<8x32xf32>
    %153 = arith.addf %126, %152 : vector<8x32xf32>
    %cst_53 = arith.constant 2.000000e+00 : f32
    %154 = vector.broadcast %cst_53 : f32 to vector<8x32xf32>
    %155 = arith.mulf %154, %142 : vector<8x32xf32>
    %156 = arith.addf %153, %155 : vector<8x32xf32>
    %157 = arith.addf %156, %150 : vector<8x32xf32>
    %158 = vector.broadcast %121 : f32 to vector<8x32xf32>
    %159 = arith.mulf %158, %157 : vector<8x32xf32>
    %160 = arith.addf %109, %159 : vector<8x32xf32>
    %161 = arith.index_cast %c3_i32 : i32 to index
    %c0_54 = arith.constant 0 : index
    %c0_55 = arith.constant 0 : index
    %162 = vector.load %arg7[%161, %c0_54, %c0_55] : memref<8x8x32xf32, #tpu.memory_space<vmem>>, vector<1x8x32xf32>
    %163 = vector.shape_cast %162 : vector<1x8x32xf32> to vector<8x32xf32>
    %164 = vector.shape_cast %160 : vector<8x32xf32> to vector<1x8x32xf32>
    tpu.vector_store %arg7[%161, %c0_54, %c0_55], %164 {strides = array<i32>} : memref<8x8x32xf32, #tpu.memory_space<vmem>>, vector<1x8x32xf32>,
    %c4_i32 = arith.constant 4 : i32
    %165 = arith.index_cast %c4_i32 : i32 to index
    %166 = memref.load %arg1[%165] : memref<8xf32, #tpu.memory_space<smem>>
    %c1_i32_56 = arith.constant 1 : i32
    %167 = arith.subi %c4_i32, %c1_i32_56 : i32
    %168 = arith.index_cast %167 : i32 to index
    %169 = memref.load %arg1[%168] : memref<8xf32, #tpu.memory_space<smem>>
    %170 = arith.subf %166, %169 : f32
    %cst_57 = arith.constant 5.000000e-01 : f32
    %171 = arith.mulf %cst_57, %170 : f32
    %cst_58 = arith.constant 6.000000e+00 : f32
    %172 = arith.divf %170, %cst_58 : f32
    %cst_59 = arith.constant dense<0.000000e+00> : vector<8x32xf32>
    %173 = tpu.matmul %160, %0, %cst_59 {dimension_numbers = #tpu.dot_dimension_numbers<[1], [0], [0], [1], [0, 0, 1, 1], [], []>} : vector<8x32xf32>, vector<32x32xf32>, vector<8x32xf32> -> vector<8x32xf32>
    %174 = arith.addf %173, %4 : vector<8x32xf32>
    %175 = math.tanh %174 : vector<8x32xf32>
    %cst_60 = arith.constant dense<0.000000e+00> : vector<8x32xf32>
    %176 = tpu.matmul %175, %1, %cst_60 {dimension_numbers = #tpu.dot_dimension_numbers<[1], [0], [0], [1], [0, 0, 1, 1], [], []>} : vector<8x32xf32>, vector<32x32xf32>, vector<8x32xf32> -> vector<8x32xf32>
    %177 = arith.addf %176, %7 : vector<8x32xf32>
    %178 = vector.broadcast %171 : f32 to vector<8x32xf32>
    %179 = arith.mulf %178, %177 : vector<8x32xf32>
    %180 = arith.addf %160, %179 : vector<8x32xf32>
    %cst_61 = arith.constant dense<0.000000e+00> : vector<8x32xf32>
    %181 = tpu.matmul %180, %0, %cst_61 {dimension_numbers = #tpu.dot_dimension_numbers<[1], [0], [0], [1], [0, 0, 1, 1], [], []>} : vector<8x32xf32>, vector<32x32xf32>, vector<8x32xf32> -> vector<8x32xf32>
    %182 = arith.addf %181, %4 : vector<8x32xf32>
    %183 = math.tanh %182 : vector<8x32xf32>
    %cst_62 = arith.constant dense<0.000000e+00> : vector<8x32xf32>
    %184 = tpu.matmul %183, %1, %cst_62 {dimension_numbers = #tpu.dot_dimension_numbers<[1], [0], [0], [1], [0, 0, 1, 1], [], []>} : vector<8x32xf32>, vector<32x32xf32>, vector<8x32xf32> -> vector<8x32xf32>
    %185 = arith.addf %184, %7 : vector<8x32xf32>
    %186 = vector.broadcast %171 : f32 to vector<8x32xf32>
    %187 = arith.mulf %186, %185 : vector<8x32xf32>
    %188 = arith.addf %160, %187 : vector<8x32xf32>
    %cst_63 = arith.constant dense<0.000000e+00> : vector<8x32xf32>
    %189 = tpu.matmul %188, %0, %cst_63 {dimension_numbers = #tpu.dot_dimension_numbers<[1], [0], [0], [1], [0, 0, 1, 1], [], []>} : vector<8x32xf32>, vector<32x32xf32>, vector<8x32xf32> -> vector<8x32xf32>
    %190 = arith.addf %189, %4 : vector<8x32xf32>
    %191 = math.tanh %190 : vector<8x32xf32>
    %cst_64 = arith.constant dense<0.000000e+00> : vector<8x32xf32>
    %192 = tpu.matmul %191, %1, %cst_64 {dimension_numbers = #tpu.dot_dimension_numbers<[1], [0], [0], [1], [0, 0, 1, 1], [], []>} : vector<8x32xf32>, vector<32x32xf32>, vector<8x32xf32> -> vector<8x32xf32>
    %193 = arith.addf %192, %7 : vector<8x32xf32>
    %194 = vector.broadcast %170 : f32 to vector<8x32xf32>
    %195 = arith.mulf %194, %193 : vector<8x32xf32>
    %196 = arith.addf %160, %195 : vector<8x32xf32>
    %cst_65 = arith.constant dense<0.000000e+00> : vector<8x32xf32>
    %197 = tpu.matmul %196, %0, %cst_65 {dimension_numbers = #tpu.dot_dimension_numbers<[1], [0], [0], [1], [0, 0, 1, 1], [], []>} : vector<8x32xf32>, vector<32x32xf32>, vector<8x32xf32> -> vector<8x32xf32>
    %198 = arith.addf %197, %4 : vector<8x32xf32>
    %199 = math.tanh %198 : vector<8x32xf32>
    %cst_66 = arith.constant dense<0.000000e+00> : vector<8x32xf32>
    %200 = tpu.matmul %199, %1, %cst_66 {dimension_numbers = #tpu.dot_dimension_numbers<[1], [0], [0], [1], [0, 0, 1, 1], [], []>} : vector<8x32xf32>, vector<32x32xf32>, vector<8x32xf32> -> vector<8x32xf32>
    %201 = arith.addf %200, %7 : vector<8x32xf32>
    %cst_67 = arith.constant 2.000000e+00 : f32
    %202 = vector.broadcast %cst_67 : f32 to vector<8x32xf32>
    %203 = arith.mulf %202, %185 : vector<8x32xf32>
    %204 = arith.addf %177, %203 : vector<8x32xf32>
    %cst_68 = arith.constant 2.000000e+00 : f32
    %205 = vector.broadcast %cst_68 : f32 to vector<8x32xf32>
    %206 = arith.mulf %205, %193 : vector<8x32xf32>
    %207 = arith.addf %204, %206 : vector<8x32xf32>
    %208 = arith.addf %207, %201 : vector<8x32xf32>
    %209 = vector.broadcast %172 : f32 to vector<8x32xf32>
    %210 = arith.mulf %209, %208 : vector<8x32xf32>
    %211 = arith.addf %160, %210 : vector<8x32xf32>
    %212 = arith.index_cast %c4_i32 : i32 to index
    %c0_69 = arith.constant 0 : index
    %c0_70 = arith.constant 0 : index
    %213 = vector.load %arg7[%212, %c0_69, %c0_70] : memref<8x8x32xf32, #tpu.memory_space<vmem>>, vector<1x8x32xf32>
    %214 = vector.shape_cast %213 : vector<1x8x32xf32> to vector<8x32xf32>
    %215 = vector.shape_cast %211 : vector<8x32xf32> to vector<1x8x32xf32>
    tpu.vector_store %arg7[%212, %c0_69, %c0_70], %215 {strides = array<i32>} : memref<8x8x32xf32, #tpu.memory_space<vmem>>, vector<1x8x32xf32>,
    %c5_i32 = arith.constant 5 : i32
    %216 = arith.index_cast %c5_i32 : i32 to index
    %217 = memref.load %arg1[%216] : memref<8xf32, #tpu.memory_space<smem>>
    %c1_i32_71 = arith.constant 1 : i32
    %218 = arith.subi %c5_i32, %c1_i32_71 : i32
    %219 = arith.index_cast %218 : i32 to index
    %220 = memref.load %arg1[%219] : memref<8xf32, #tpu.memory_space<smem>>
    %221 = arith.subf %217, %220 : f32
    %cst_72 = arith.constant 5.000000e-01 : f32
    %222 = arith.mulf %cst_72, %221 : f32
    %cst_73 = arith.constant 6.000000e+00 : f32
    %223 = arith.divf %221, %cst_73 : f32
    %cst_74 = arith.constant dense<0.000000e+00> : vector<8x32xf32>
    %224 = tpu.matmul %211, %0, %cst_74 {dimension_numbers = #tpu.dot_dimension_numbers<[1], [0], [0], [1], [0, 0, 1, 1], [], []>} : vector<8x32xf32>, vector<32x32xf32>, vector<8x32xf32> -> vector<8x32xf32>
    %225 = arith.addf %224, %4 : vector<8x32xf32>
    %226 = math.tanh %225 : vector<8x32xf32>
    %cst_75 = arith.constant dense<0.000000e+00> : vector<8x32xf32>
    %227 = tpu.matmul %226, %1, %cst_75 {dimension_numbers = #tpu.dot_dimension_numbers<[1], [0], [0], [1], [0, 0, 1, 1], [], []>} : vector<8x32xf32>, vector<32x32xf32>, vector<8x32xf32> -> vector<8x32xf32>
    %228 = arith.addf %227, %7 : vector<8x32xf32>
    %229 = vector.broadcast %222 : f32 to vector<8x32xf32>
    %230 = arith.mulf %229, %228 : vector<8x32xf32>
    %231 = arith.addf %211, %230 : vector<8x32xf32>
    %cst_76 = arith.constant dense<0.000000e+00> : vector<8x32xf32>
    %232 = tpu.matmul %231, %0, %cst_76 {dimension_numbers = #tpu.dot_dimension_numbers<[1], [0], [0], [1], [0, 0, 1, 1], [], []>} : vector<8x32xf32>, vector<32x32xf32>, vector<8x32xf32> -> vector<8x32xf32>
    %233 = arith.addf %232, %4 : vector<8x32xf32>
    %234 = math.tanh %233 : vector<8x32xf32>
    %cst_77 = arith.constant dense<0.000000e+00> : vector<8x32xf32>
    %235 = tpu.matmul %234, %1, %cst_77 {dimension_numbers = #tpu.dot_dimension_numbers<[1], [0], [0], [1], [0, 0, 1, 1], [], []>} : vector<8x32xf32>, vector<32x32xf32>, vector<8x32xf32> -> vector<8x32xf32>
    %236 = arith.addf %235, %7 : vector<8x32xf32>
    %237 = vector.broadcast %222 : f32 to vector<8x32xf32>
    %238 = arith.mulf %237, %236 : vector<8x32xf32>
    %239 = arith.addf %211, %238 : vector<8x32xf32>
    %cst_78 = arith.constant dense<0.000000e+00> : vector<8x32xf32>
    %240 = tpu.matmul %239, %0, %cst_78 {dimension_numbers = #tpu.dot_dimension_numbers<[1], [0], [0], [1], [0, 0, 1, 1], [], []>} : vector<8x32xf32>, vector<32x32xf32>, vector<8x32xf32> -> vector<8x32xf32>
    %241 = arith.addf %240, %4 : vector<8x32xf32>
    %242 = math.tanh %241 : vector<8x32xf32>
    %cst_79 = arith.constant dense<0.000000e+00> : vector<8x32xf32>
    %243 = tpu.matmul %242, %1, %cst_79 {dimension_numbers = #tpu.dot_dimension_numbers<[1], [0], [0], [1], [0, 0, 1, 1], [], []>} : vector<8x32xf32>, vector<32x32xf32>, vector<8x32xf32> -> vector<8x32xf32>
    %244 = arith.addf %243, %7 : vector<8x32xf32>
    %245 = vector.broadcast %221 : f32 to vector<8x32xf32>
    %246 = arith.mulf %245, %244 : vector<8x32xf32>
    %247 = arith.addf %211, %246 : vector<8x32xf32>
    %cst_80 = arith.constant dense<0.000000e+00> : vector<8x32xf32>
    %248 = tpu.matmul %247, %0, %cst_80 {dimension_numbers = #tpu.dot_dimension_numbers<[1], [0], [0], [1], [0, 0, 1, 1], [], []>} : vector<8x32xf32>, vector<32x32xf32>, vector<8x32xf32> -> vector<8x32xf32>
    %249 = arith.addf %248, %4 : vector<8x32xf32>
    %250 = math.tanh %249 : vector<8x32xf32>
    %cst_81 = arith.constant dense<0.000000e+00> : vector<8x32xf32>
    %251 = tpu.matmul %250, %1, %cst_81 {dimension_numbers = #tpu.dot_dimension_numbers<[1], [0], [0], [1], [0, 0, 1, 1], [], []>} : vector<8x32xf32>, vector<32x32xf32>, vector<8x32xf32> -> vector<8x32xf32>
    %252 = arith.addf %251, %7 : vector<8x32xf32>
    %cst_82 = arith.constant 2.000000e+00 : f32
    %253 = vector.broadcast %cst_82 : f32 to vector<8x32xf32>
    %254 = arith.mulf %253, %236 : vector<8x32xf32>
    %255 = arith.addf %228, %254 : vector<8x32xf32>
    %cst_83 = arith.constant 2.000000e+00 : f32
    %256 = vector.broadcast %cst_83 : f32 to vector<8x32xf32>
    %257 = arith.mulf %256, %244 : vector<8x32xf32>
    %258 = arith.addf %255, %257 : vector<8x32xf32>
    %259 = arith.addf %258, %252 : vector<8x32xf32>
    %260 = vector.broadcast %223 : f32 to vector<8x32xf32>
    %261 = arith.mulf %260, %259 : vector<8x32xf32>
    %262 = arith.addf %211, %261 : vector<8x32xf32>
    %263 = arith.index_cast %c5_i32 : i32 to index
    %c0_84 = arith.constant 0 : index
    %c0_85 = arith.constant 0 : index
    %264 = vector.load %arg7[%263, %c0_84, %c0_85] : memref<8x8x32xf32, #tpu.memory_space<vmem>>, vector<1x8x32xf32>
    %265 = vector.shape_cast %264 : vector<1x8x32xf32> to vector<8x32xf32>
    %266 = vector.shape_cast %262 : vector<8x32xf32> to vector<1x8x32xf32>
    tpu.vector_store %arg7[%263, %c0_84, %c0_85], %266 {strides = array<i32>} : memref<8x8x32xf32, #tpu.memory_space<vmem>>, vector<1x8x32xf32>,
    %c6_i32 = arith.constant 6 : i32
    %267 = arith.index_cast %c6_i32 : i32 to index
    %268 = memref.load %arg1[%267] : memref<8xf32, #tpu.memory_space<smem>>
    %c1_i32_86 = arith.constant 1 : i32
    %269 = arith.subi %c6_i32, %c1_i32_86 : i32
    %270 = arith.index_cast %269 : i32 to index
    %271 = memref.load %arg1[%270] : memref<8xf32, #tpu.memory_space<smem>>
    %272 = arith.subf %268, %271 : f32
    %cst_87 = arith.constant 5.000000e-01 : f32
    %273 = arith.mulf %cst_87, %272 : f32
    %cst_88 = arith.constant 6.000000e+00 : f32
    %274 = arith.divf %272, %cst_88 : f32
    %cst_89 = arith.constant dense<0.000000e+00> : vector<8x32xf32>
    %275 = tpu.matmul %262, %0, %cst_89 {dimension_numbers = #tpu.dot_dimension_numbers<[1], [0], [0], [1], [0, 0, 1, 1], [], []>} : vector<8x32xf32>, vector<32x32xf32>, vector<8x32xf32> -> vector<8x32xf32>
    %276 = arith.addf %275, %4 : vector<8x32xf32>
    %277 = math.tanh %276 : vector<8x32xf32>
    %cst_90 = arith.constant dense<0.000000e+00> : vector<8x32xf32>
    %278 = tpu.matmul %277, %1, %cst_90 {dimension_numbers = #tpu.dot_dimension_numbers<[1], [0], [0], [1], [0, 0, 1, 1], [], []>} : vector<8x32xf32>, vector<32x32xf32>, vector<8x32xf32> -> vector<8x32xf32>
    %279 = arith.addf %278, %7 : vector<8x32xf32>
    %280 = vector.broadcast %273 : f32 to vector<8x32xf32>
    %281 = arith.mulf %280, %279 : vector<8x32xf32>
    %282 = arith.addf %262, %281 : vector<8x32xf32>
    %cst_91 = arith.constant dense<0.000000e+00> : vector<8x32xf32>
    %283 = tpu.matmul %282, %0, %cst_91 {dimension_numbers = #tpu.dot_dimension_numbers<[1], [0], [0], [1], [0, 0, 1, 1], [], []>} : vector<8x32xf32>, vector<32x32xf32>, vector<8x32xf32> -> vector<8x32xf32>
    %284 = arith.addf %283, %4 : vector<8x32xf32>
    %285 = math.tanh %284 : vector<8x32xf32>
    %cst_92 = arith.constant dense<0.000000e+00> : vector<8x32xf32>
    %286 = tpu.matmul %285, %1, %cst_92 {dimension_numbers = #tpu.dot_dimension_numbers<[1], [0], [0], [1], [0, 0, 1, 1], [], []>} : vector<8x32xf32>, vector<32x32xf32>, vector<8x32xf32> -> vector<8x32xf32>
    %287 = arith.addf %286, %7 : vector<8x32xf32>
    %288 = vector.broadcast %273 : f32 to vector<8x32xf32>
    %289 = arith.mulf %288, %287 : vector<8x32xf32>
    %290 = arith.addf %262, %289 : vector<8x32xf32>
    %cst_93 = arith.constant dense<0.000000e+00> : vector<8x32xf32>
    %291 = tpu.matmul %290, %0, %cst_93 {dimension_numbers = #tpu.dot_dimension_numbers<[1], [0], [0], [1], [0, 0, 1, 1], [], []>} : vector<8x32xf32>, vector<32x32xf32>, vector<8x32xf32> -> vector<8x32xf32>
    %292 = arith.addf %291, %4 : vector<8x32xf32>
    %293 = math.tanh %292 : vector<8x32xf32>
    %cst_94 = arith.constant dense<0.000000e+00> : vector<8x32xf32>
    %294 = tpu.matmul %293, %1, %cst_94 {dimension_numbers = #tpu.dot_dimension_numbers<[1], [0], [0], [1], [0, 0, 1, 1], [], []>} : vector<8x32xf32>, vector<32x32xf32>, vector<8x32xf32> -> vector<8x32xf32>
    %295 = arith.addf %294, %7 : vector<8x32xf32>
    %296 = vector.broadcast %272 : f32 to vector<8x32xf32>
    %297 = arith.mulf %296, %295 : vector<8x32xf32>
    %298 = arith.addf %262, %297 : vector<8x32xf32>
    %cst_95 = arith.constant dense<0.000000e+00> : vector<8x32xf32>
    %299 = tpu.matmul %298, %0, %cst_95 {dimension_numbers = #tpu.dot_dimension_numbers<[1], [0], [0], [1], [0, 0, 1, 1], [], []>} : vector<8x32xf32>, vector<32x32xf32>, vector<8x32xf32> -> vector<8x32xf32>
    %300 = arith.addf %299, %4 : vector<8x32xf32>
    %301 = math.tanh %300 : vector<8x32xf32>
    %cst_96 = arith.constant dense<0.000000e+00> : vector<8x32xf32>
    %302 = tpu.matmul %301, %1, %cst_96 {dimension_numbers = #tpu.dot_dimension_numbers<[1], [0], [0], [1], [0, 0, 1, 1], [], []>} : vector<8x32xf32>, vector<32x32xf32>, vector<8x32xf32> -> vector<8x32xf32>
    %303 = arith.addf %302, %7 : vector<8x32xf32>
    %cst_97 = arith.constant 2.000000e+00 : f32
    %304 = vector.broadcast %cst_97 : f32 to vector<8x32xf32>
    %305 = arith.mulf %304, %287 : vector<8x32xf32>
    %306 = arith.addf %279, %305 : vector<8x32xf32>
    %cst_98 = arith.constant 2.000000e+00 : f32
    %307 = vector.broadcast %cst_98 : f32 to vector<8x32xf32>
    %308 = arith.mulf %307, %295 : vector<8x32xf32>
    %309 = arith.addf %306, %308 : vector<8x32xf32>
    %310 = arith.addf %309, %303 : vector<8x32xf32>
    %311 = vector.broadcast %274 : f32 to vector<8x32xf32>
    %312 = arith.mulf %311, %310 : vector<8x32xf32>
    %313 = arith.addf %262, %312 : vector<8x32xf32>
    %314 = arith.index_cast %c6_i32 : i32 to index
    %c0_99 = arith.constant 0 : index
    %c0_100 = arith.constant 0 : index
    %315 = vector.load %arg7[%314, %c0_99, %c0_100] : memref<8x8x32xf32, #tpu.memory_space<vmem>>, vector<1x8x32xf32>
    %316 = vector.shape_cast %315 : vector<1x8x32xf32> to vector<8x32xf32>
    %317 = vector.shape_cast %313 : vector<8x32xf32> to vector<1x8x32xf32>
    tpu.vector_store %arg7[%314, %c0_99, %c0_100], %317 {strides = array<i32>} : memref<8x8x32xf32, #tpu.memory_space<vmem>>, vector<1x8x32xf32>,
    %c7_i32 = arith.constant 7 : i32
    %318 = arith.index_cast %c7_i32 : i32 to index
    %319 = memref.load %arg1[%318] : memref<8xf32, #tpu.memory_space<smem>>
    %c1_i32_101 = arith.constant 1 : i32
    %320 = arith.subi %c7_i32, %c1_i32_101 : i32
    %321 = arith.index_cast %320 : i32 to index
    %322 = memref.load %arg1[%321] : memref<8xf32, #tpu.memory_space<smem>>
    %323 = arith.subf %319, %322 : f32
    %cst_102 = arith.constant 5.000000e-01 : f32
    %324 = arith.mulf %cst_102, %323 : f32
    %cst_103 = arith.constant 6.000000e+00 : f32
    %325 = arith.divf %323, %cst_103 : f32
    %cst_104 = arith.constant dense<0.000000e+00> : vector<8x32xf32>
    %326 = tpu.matmul %313, %0, %cst_104 {dimension_numbers = #tpu.dot_dimension_numbers<[1], [0], [0], [1], [0, 0, 1, 1], [], []>} : vector<8x32xf32>, vector<32x32xf32>, vector<8x32xf32> -> vector<8x32xf32>
    %327 = arith.addf %326, %4 : vector<8x32xf32>
    %328 = math.tanh %327 : vector<8x32xf32>
    %cst_105 = arith.constant dense<0.000000e+00> : vector<8x32xf32>
    %329 = tpu.matmul %328, %1, %cst_105 {dimension_numbers = #tpu.dot_dimension_numbers<[1], [0], [0], [1], [0, 0, 1, 1], [], []>} : vector<8x32xf32>, vector<32x32xf32>, vector<8x32xf32> -> vector<8x32xf32>
    %330 = arith.addf %329, %7 : vector<8x32xf32>
    %331 = vector.broadcast %324 : f32 to vector<8x32xf32>
    %332 = arith.mulf %331, %330 : vector<8x32xf32>
    %333 = arith.addf %313, %332 : vector<8x32xf32>
    %cst_106 = arith.constant dense<0.000000e+00> : vector<8x32xf32>
    %334 = tpu.matmul %333, %0, %cst_106 {dimension_numbers = #tpu.dot_dimension_numbers<[1], [0], [0], [1], [0, 0, 1, 1], [], []>} : vector<8x32xf32>, vector<32x32xf32>, vector<8x32xf32> -> vector<8x32xf32>
    %335 = arith.addf %334, %4 : vector<8x32xf32>
    %336 = math.tanh %335 : vector<8x32xf32>
    %cst_107 = arith.constant dense<0.000000e+00> : vector<8x32xf32>
    %337 = tpu.matmul %336, %1, %cst_107 {dimension_numbers = #tpu.dot_dimension_numbers<[1], [0], [0], [1], [0, 0, 1, 1], [], []>} : vector<8x32xf32>, vector<32x32xf32>, vector<8x32xf32> -> vector<8x32xf32>
    %338 = arith.addf %337, %7 : vector<8x32xf32>
    %339 = vector.broadcast %324 : f32 to vector<8x32xf32>
    %340 = arith.mulf %339, %338 : vector<8x32xf32>
    %341 = arith.addf %313, %340 : vector<8x32xf32>
    %cst_108 = arith.constant dense<0.000000e+00> : vector<8x32xf32>
    %342 = tpu.matmul %341, %0, %cst_108 {dimension_numbers = #tpu.dot_dimension_numbers<[1], [0], [0], [1], [0, 0, 1, 1], [], []>} : vector<8x32xf32>, vector<32x32xf32>, vector<8x32xf32> -> vector<8x32xf32>
    %343 = arith.addf %342, %4 : vector<8x32xf32>
    %344 = math.tanh %343 : vector<8x32xf32>
    %cst_109 = arith.constant dense<0.000000e+00> : vector<8x32xf32>
    %345 = tpu.matmul %344, %1, %cst_109 {dimension_numbers = #tpu.dot_dimension_numbers<[1], [0], [0], [1], [0, 0, 1, 1], [], []>} : vector<8x32xf32>, vector<32x32xf32>, vector<8x32xf32> -> vector<8x32xf32>
    %346 = arith.addf %345, %7 : vector<8x32xf32>
    %347 = vector.broadcast %323 : f32 to vector<8x32xf32>
    %348 = arith.mulf %347, %346 : vector<8x32xf32>
    %349 = arith.addf %313, %348 : vector<8x32xf32>
    %cst_110 = arith.constant dense<0.000000e+00> : vector<8x32xf32>
    %350 = tpu.matmul %349, %0, %cst_110 {dimension_numbers = #tpu.dot_dimension_numbers<[1], [0], [0], [1], [0, 0, 1, 1], [], []>} : vector<8x32xf32>, vector<32x32xf32>, vector<8x32xf32> -> vector<8x32xf32>
    %351 = arith.addf %350, %4 : vector<8x32xf32>
    %352 = math.tanh %351 : vector<8x32xf32>
    %cst_111 = arith.constant dense<0.000000e+00> : vector<8x32xf32>
    %353 = tpu.matmul %352, %1, %cst_111 {dimension_numbers = #tpu.dot_dimension_numbers<[1], [0], [0], [1], [0, 0, 1, 1], [], []>} : vector<8x32xf32>, vector<32x32xf32>, vector<8x32xf32> -> vector<8x32xf32>
    %354 = arith.addf %353, %7 : vector<8x32xf32>
    %cst_112 = arith.constant 2.000000e+00 : f32
    %355 = vector.broadcast %cst_112 : f32 to vector<8x32xf32>
    %356 = arith.mulf %355, %338 : vector<8x32xf32>
    %357 = arith.addf %330, %356 : vector<8x32xf32>
    %cst_113 = arith.constant 2.000000e+00 : f32
    %358 = vector.broadcast %cst_113 : f32 to vector<8x32xf32>
    %359 = arith.mulf %358, %346 : vector<8x32xf32>
    %360 = arith.addf %357, %359 : vector<8x32xf32>
    %361 = arith.addf %360, %354 : vector<8x32xf32>
    %362 = vector.broadcast %325 : f32 to vector<8x32xf32>
    %363 = arith.mulf %362, %361 : vector<8x32xf32>
    %364 = arith.addf %313, %363 : vector<8x32xf32>
    %365 = arith.index_cast %c7_i32 : i32 to index
    %c0_114 = arith.constant 0 : index
    %c0_115 = arith.constant 0 : index
    %366 = vector.load %arg7[%365, %c0_114, %c0_115] : memref<8x8x32xf32, #tpu.memory_space<vmem>>, vector<1x8x32xf32>
    %367 = vector.shape_cast %366 : vector<1x8x32xf32> to vector<8x32xf32>
    %368 = vector.shape_cast %364 : vector<8x32xf32> to vector<1x8x32xf32>
    tpu.vector_store %arg7[%365, %c0_114, %c0_115], %368 {strides = array<i32>} : memref<8x8x32xf32, #tpu.memory_space<vmem>>, vector<1x8x32xf32>,
    %c7_i32_116 = arith.constant 7 : i32
    return
  }
  func.func @transform_0(%arg0: i32) -> i32 {
    %c0_i32 = arith.constant 0 : i32
    %c0_i32_0 = arith.constant 0 : i32
    return %c0_i32 : i32
  }
  func.func @transform_1(%arg0: i32) -> (i32, i32) {
    %c0_i32 = arith.constant 0 : i32
    %c0_i32_0 = arith.constant 0 : i32
    return %arg0, %c0_i32 : i32, i32
  }
  func.func @transform_2(%arg0: i32) -> (i32, i32) {
    %c0_i32 = arith.constant 0 : i32
    %c0_i32_0 = arith.constant 0 : i32
    %c0_i32_1 = arith.constant 0 : i32
    return %c0_i32, %c0_i32_0 : i32, i32
  }
  func.func @transform_3(%arg0: i32) -> (i32, i32) {
    %c0_i32 = arith.constant 0 : i32
    %c0_i32_0 = arith.constant 0 : i32
    %c0_i32_1 = arith.constant 0 : i32
    return %c0_i32, %c0_i32_0 : i32, i32
  }
  func.func @transform_4(%arg0: i32) -> (i32, i32) {
    %c0_i32 = arith.constant 0 : i32
    %c0_i32_0 = arith.constant 0 : i32
    %c0_i32_1 = arith.constant 0 : i32
    return %c0_i32, %c0_i32_0 : i32, i32
  }
  func.func @transform_5(%arg0: i32) -> (i32, i32) {
    %c0_i32 = arith.constant 0 : i32
    %c0_i32_0 = arith.constant 0 : i32
    %c0_i32_1 = arith.constant 0 : i32
    return %c0_i32, %c0_i32_0 : i32, i32
  }
  func.func @transform_6(%arg0: i32) -> (i32, i32, i32) {
    %c0_i32 = arith.constant 0 : i32
    %c0_i32_0 = arith.constant 0 : i32
    %c0_i32_1 = arith.constant 0 : i32
    return %c0_i32, %arg0, %c0_i32_0 : i32, i32, i32
  }
}

</mosaic_0001>

<llo_original>
// kernel: tpu_custom_call.1
$region0: #{tpu_custom_call.1}
  #allocation0 [shape = 'u32[]', space=smem, size = 0x4, offset = 0x4, fixed_abs, tag = 'smem constant byte address 0x4 - core index']
  #allocation1 [shape = 'u32[144,128]{1,0:T(1,128)}', space=vmem, size = 0x12000, scoped, tag = 'internal scratch']
  %s0 = inlined_call_operand.hbm [shape: f32[8], index: 0, kind: input, shape index: {}]
  %s1 = inlined_call_operand.hbm [shape: f32[8,32], index: 1, kind: input, shape index: {}]
  %s2 = inlined_call_operand.hbm [shape: f32[32,32], index: 2, kind: input, shape index: {}]
  %s3 = inlined_call_operand.vmem [shape: f32[1,32], index: 3, kind: input, shape index: {}]
  %s4 = inlined_call_operand.hbm [shape: f32[32,32], index: 4, kind: input, shape index: {}]
  %s5 = inlined_call_operand.vmem [shape: f32[1,32], index: 5, kind: input, shape index: {}]
  %s6 = inlined_call_operand.hbm [shape: f32[8,8,32], index: 6, kind: output, shape index: {}]
  %s7 = sld [smem:[#allocation0]]
  $region50: #{tpu_custom_call.1} parent=0
    _
  %s9 = ssub.s32 1, %s7
  %s10 = scalar_select 0, %s9, %s7
  $region1: #{tpu_custom_call.1} parent=0
    #allocation2 [shape = 'u8[512]{0}', space=smem, size = 0x200, scoped, tag = 'input window, operand 0, single buffered']
    #allocation3 [shape = 's32[1]{0}', space=sflag, size = 0x4, scoped, tag = 'scoped memory for tpu_custom_call.1']
    #allocation4 [shape = 's32[1]{0}', space=sflag, size = 0x4, scoped, tag = 'scoped memory for tpu_custom_call.1']
    #allocation5 [shape = 's32[1]{0}', space=sflag, size = 0x4, scoped, tag = 'scoped memory for tpu_custom_call.1']
    #allocation6 [shape = 'u8[4096]{0}', space=vmem, size = 0x1000, scoped, tag = 'input window, operand 1, single buffered']
    #allocation7 [shape = 'u8[16384]{0}', space=vmem, size = 0x4000, scoped, tag = 'input window, operand 2, single buffered']
    #allocation8 [shape = 's32[1]{0}', space=sflag, size = 0x4, scoped, tag = 'scoped memory for tpu_custom_call.1']
    #allocation9 [shape = 'u8[16384]{0}', space=vmem, size = 0x4000, scoped, tag = 'input window, operand 4, single buffered']
    #allocation10 [shape = 'u8[32768]{0}', space=vmem, size = 0x8000, scoped, tag = 'output window, operand 0, single buffered']
    %11 = vsyncpa [#allocation5], 0
    %12 = vsyncpa [#allocation3], 0
    %13 = vsyncpa [#allocation8], 0
    %14 = vsyncpa [#allocation4], 0
    // Predicated region
    $region2: #{tpu_custom_call.1} parent=1 // pred_check
      _
    $region3: #{tpu_custom_call.1} parent=1 // pred_check_branch
      %16 = sbr.rel (0) target = $region5
    $region4: #{tpu_custom_call.1} parent=1 // pred_region
      %s18 = ssub.s32 16, 16
      %19 = vsyncadd [#allocation5], %s18
      %22 = dma.hbm_to_smem %s0, 16, [#allocation2], [#allocation5]
    $region5: #{tpu_custom_call.1} parent=1 // pred_fallthru
      _
    // Predicated region
    $region6: #{tpu_custom_call.1} parent=1 // pred_check
      _
    $region7: #{tpu_custom_call.1} parent=1 // pred_check_branch
      %24 = sbr.rel (0) target = $region9
    $region8: #{tpu_custom_call.1} parent=1 // pred_region
      %s26 = ssub.s32 128, 128
      %27 = vsyncadd [#allocation3], %s26
      %s29 = sshll.u32 [#allocation6], 4
      %s30 = int_to_ptr.vmem [resolvable:$true] %s29
      %32 = dma.hbm_to_vmem [thread:$0]  %s1, 128, %s30, [#allocation3]
    $region9: #{tpu_custom_call.1} parent=1 // pred_fallthru
      _
    // Predicated region
    $region10: #{tpu_custom_call.1} parent=1 // pred_check
      _
    $region11: #{tpu_custom_call.1} parent=1 // pred_check_branch
      %34 = sbr.rel (0) target = $region13
    $region12: #{tpu_custom_call.1} parent=1 // pred_region
      %s36 = ssub.s32 512, 512
      %37 = vsyncadd [#allocation8], %s36
      %s38 = sshll.u32 [#allocation7], 4
      %s39 = int_to_ptr.vmem [resolvable:$true] %s38
      %44 = dma.hbm_to_vmem [thread:$0]  %s2, 512, %s39, [#allocation8], 128, 128, 8
    $region13: #{tpu_custom_call.1} parent=1 // pred_fallthru
      _
    // Predicated region
    $region14: #{tpu_custom_call.1} parent=1 // pred_check
      _
    $region15: #{tpu_custom_call.1} parent=1 // pred_check_branch
      %46 = sbr.rel (0) target = $region17
    $region16: #{tpu_custom_call.1} parent=1 // pred_region
      _
    $region17: #{tpu_custom_call.1} parent=1 // pred_fallthru
      _
    // Predicated region
    $region18: #{tpu_custom_call.1} parent=1 // pred_check
      _
    $region19: #{tpu_custom_call.1} parent=1 // pred_check_branch
      %48 = sbr.rel (0) target = $region21
    $region20: #{tpu_custom_call.1} parent=1 // pred_region
      %s50 = ssub.s32 512, 512
      %51 = vsyncadd [#allocation8], %s50
      %s52 = sshll.u32 [#allocation9], 4
      %s53 = int_to_ptr.vmem [resolvable:$true] %s52
      %58 = dma.hbm_to_vmem [thread:$0]  %s4, 512, %s53, [#allocation8], 128, 128, 8
    $region21: #{tpu_custom_call.1} parent=1 // pred_fallthru
      _
    // Predicated region
    $region22: #{tpu_custom_call.1} parent=1 // pred_check
      _
    $region23: #{tpu_custom_call.1} parent=1 // pred_check_branch
      %60 = sbr.rel (0) target = $region25
    $region24: #{tpu_custom_call.1} parent=1 // pred_region
      _
    $region25: #{tpu_custom_call.1} parent=1 // pred_fallthru
      _
    // Predicated region
    $region26: #{tpu_custom_call.1} parent=1 // pred_check
      _
    $region27: #{tpu_custom_call.1} parent=1 // pred_check_branch
      %62 = sbr.rel (0) target = $region29
    $region28: #{tpu_custom_call.1} parent=1 // pred_region
      %63 = dma.done [#allocation5], 16
    $region29: #{tpu_custom_call.1} parent=1 // pred_fallthru
      _
    // Predicated region
    $region30: #{tpu_custom_call.1} parent=1 // pred_check
      _
    $region31: #{tpu_custom_call.1} parent=1 // pred_check_branch
      %65 = sbr.rel (0) target = $region33
    $region32: #{tpu_custom_call.1} parent=1 // pred_region
      %66 = dma.done [#allocation3], 128
    $region33: #{tpu_custom_call.1} parent=1 // pred_fallthru
      _
    // Predicated region
    $region34: #{tpu_custom_call.1} parent=1 // pred_check
      _
    $region35: #{tpu_custom_call.1} parent=1 // pred_check_branch
      %68 = sbr.rel (0) target = $region37
    $region36: #{tpu_custom_call.1} parent=1 // pred_region
      %69 = dma.done [#allocation8], 512
    $region37: #{tpu_custom_call.1} parent=1 // pred_fallthru
      _
    // Predicated region
    $region38: #{tpu_custom_call.1} parent=1 // pred_check
      _
    $region39: #{tpu_custom_call.1} parent=1 // pred_check_branch
      %71 = sbr.rel (0) target = $region41
    $region40: #{tpu_custom_call.1} parent=1 // pred_region
      %72 = dma.done [#allocation8], 512
    $region41: #{tpu_custom_call.1} parent=1 // pred_fallthru
      _
    %73 = sfence
    %v74 = vld [vmem:[#allocation7] sm:$0xff]
    %v75 = vld [vmem:[#allocation7 + $0x8] sm:$0xff]
    %v76 = vld [vmem:[#allocation7 + $0x10] sm:$0xff]
    %v77 = vld [vmem:[#allocation7 + $0x18] sm:$0xff]
    %v78 = vld [vmem:[#allocation9] sm:$0xff]
    %v79 = vld [vmem:[#allocation9 + $0x8] sm:$0xff]
    %v80 = vld [vmem:[#allocation9 + $0x10] sm:$0xff]
    %v81 = vld [vmem:[#allocation9 + $0x18] sm:$0xff]
    %v82 = vld [vmem:[%s3] sm:$0x1]
    %v84 = vlaneseq
    %v85 = vshrl.u32 %v84, 7
    %v86 = vsub.s32 0, %v85
    %v87 = vrot.slane %v82, %v86
    %v89 = vld [vmem:[%s5] sm:$0x1]
    %v91 = vlaneseq
    %v92 = vshrl.u32 %v91, 7
    %v93 = vsub.s32 0, %v92
    %v94 = vrot.slane %v89, %v93
    %v96 = vld [vmem:[#allocation6] sm:$0xff]
    %vm97 = vcmask 261120
    %98 = vst.msk [vmem:[#allocation10] sm:$0xff] %vm97, %v96
    %s99 = sld [smem:[#allocation2 + $0x1]]
    %s100 = sld [smem:[#allocation2]]
    %s101 = ssub.f32 %s99, %s100
    %s102 = smul.f32 %s101, 0.5
    %v103 = vrcp.pop 6.0
    %s104 = vtos %v103
    %s105 = smul.f32 %s101, %s104
    %v107 = vsel %vm97, %v96, 0
    %109 = vmatprep.subr.mxu0 0.0
    %110 = vmatpush1.msra.mxu0 %v74
    %111 = vmatprep.subr.mxu0 0.0
    %112 = vmatpush1.msra.mxu0 %v75
    %113 = vmatprep.subr.mxu0 0.0
    %114 = vmatpush1.msra.mxu0 %v76
    %115 = vmatprep.subr.mxu0 0.0
    %116 = vmatpush1.msra.mxu0 %v77
    %117 = vmatprep.subr.mxu0 0.0
    %118 = vmatpush1.msra.mxu0 0.0
    %119 = vmatprep.subr.mxu0 0.0
    %120 = vmatpush1.msra.mxu0 0.0
    %121 = vmatprep.subr.mxu0 0.0
    %122 = vmatpush1.msra.mxu0 0.0
    %123 = vmatprep.subr.mxu0 0.0
    %124 = vmatpush1.msra.mxu0 0.0
    %125 = vmatprep.subr.mxu0 0.0
    %126 = vmatpush1.msra.mxu0 0.0
    %127 = vmatprep.subr.mxu0 0.0
    %128 = vmatpush1.msra.mxu0 0.0
    %129 = vmatprep.subr.mxu0 0.0
    %130 = vmatpush1.msra.mxu0 0.0
    %131 = vmatprep.subr.mxu0 0.0
    %132 = vmatpush1.msra.mxu0 0.0
    %133 = vmatprep.subr.mxu0 0.0
    %134 = vmatpush1.msra.mxu0 0.0
    %135 = vmatprep.subr.mxu0 0.0
    %136 = vmatpush1.msra.mxu0 0.0
    %137 = vmatprep.subr.mxu0 0.0
    %138 = vmatpush1.msra.mxu0 0.0
    %139 = vmatprep.subr.mxu0 0.0
    %140 = vmatpush1.msra.mxu0 0.0
    %141 = vmatprep.subr.mxu0 0.0
    %142 = vmatpush1.msra.mxu0 0.0
    %143 = vmatprep.subr.mxu0 0.0
    %144 = vmatpush1.msra.mxu0 0.0
    %145 = vmatprep.subr.mxu0 0.0
    %146 = vmatpush1.msra.mxu0 0.0
    %147 = vmatprep.subr.mxu0 0.0
    %148 = vmatpush1.msra.mxu0 0.0
    %149 = vmatprep.subr.mxu0 0.0
    %150 = vmatpush1.msra.mxu0 0.0
    %151 = vmatprep.subr.mxu0 0.0
    %152 = vmatpush1.msra.mxu0 0.0
    %153 = vmatprep.subr.mxu0 0.0
    %154 = vmatpush1.msra.mxu0 0.0
    %155 = vmatprep.subr.mxu0 0.0
    %156 = vmatpush1.msra.mxu0 0.0
    %157 = vmatprep.subr.mxu0 0.0
    %158 = vmatpush1.msra.mxu0 0.0
    %159 = vmatprep.subr.mxu0 0.0
    %160 = vmatpush1.msra.mxu0 0.0
    %161 = vmatprep.subr.mxu0 0.0
    %162 = vmatpush1.msra.mxu0 0.0
    %163 = vmatprep.subr.mxu0 0.0
    %164 = vmatpush1.msra.mxu0 0.0
    %165 = vmatprep.subr.mxu0 0.0
    %166 = vmatpush1.msra.mxu0 0.0
    %167 = vmatprep.subr.mxu0 0.0
    %168 = vmatpush1.msra.mxu0 0.0
    %169 = vmatprep.subr.mxu0 0.0
    %170 = vmatpush1.msra.mxu0 0.0
    %171 = vmatprep.subr.mxu0 0.0
    %172 = vmatpush1.msra.mxu0 0.0
    %173 = vmatprep.mubr.f32.mxu0 0.0
    %174 = vmatmul.mubr.f32.gmra.mrb[0].mxu0 %v107
    %v175 = vpop.f32.mrb[0].mxu0
    %v176 = vadd.f32 %v87, %v175
    %v177 = vpop.f32.mrb[0].mxu0
    %178 = vdwg.mxu0
    %v179 = vtanh.pop %v176
    %v181 = vsel %vm97, %v179, 0
    %183 = vmatprep.subr.mxu0 0.0
    %184 = vmatpush1.msra.mxu0 %v78
    %185 = vmatprep.subr.mxu0 0.0
    %186 = vmatpush1.msra.mxu0 %v79
    %187 = vmatprep.subr.mxu0 0.0
    %188 = vmatpush1.msra.mxu0 %v80
    %189 = vmatprep.subr.mxu0 0.0
    %190 = vmatpush1.msra.mxu0 %v81
    %191 = vmatprep.subr.mxu0 0.0
    %192 = vmatpush1.msra.mxu0 0.0
    %193 = vmatprep.subr.mxu0 0.0
    %194 = vmatpush1.msra.mxu0 0.0
    %195 = vmatprep.subr.mxu0 0.0
    %196 = vmatpush1.msra.mxu0 0.0
    %197 = vmatprep.subr.mxu0 0.0
    %198 = vmatpush1.msra.mxu0 0.0
    %199 = vmatprep.subr.mxu0 0.0
    %200 = vmatpush1.msra.mxu0 0.0
    %201 = vmatprep.subr.mxu0 0.0
    %202 = vmatpush1.msra.mxu0 0.0
    %203 = vmatprep.subr.mxu0 0.0
    %204 = vmatpush1.msra.mxu0 0.0
    %205 = vmatprep.subr.mxu0 0.0
    %206 = vmatpush1.msra.mxu0 0.0
    %207 = vmatprep.subr.mxu0 0.0
    %208 = vmatpush1.msra.mxu0 0.0
    %209 = vmatprep.subr.mxu0 0.0
    %210 = vmatpush1.msra.mxu0 0.0
    %211 = vmatprep.subr.mxu0 0.0
    %212 = vmatpush1.msra.mxu0 0.0
    %213 = vmatprep.subr.mxu0 0.0
    %214 = vmatpush1.msra.mxu0 0.0
    %215 = vmatprep.subr.mxu0 0.0
    %216 = vmatpush1.msra.mxu0 0.0
    %217 = vmatprep.subr.mxu0 0.0
    %218 = vmatpush1.msra.mxu0 0.0
    %219 = vmatprep.subr.mxu0 0.0
    %220 = vmatpush1.msra.mxu0 0.0
    %221 = vmatprep.subr.mxu0 0.0
    %222 = vmatpush1.msra.mxu0 0.0
    %223 = vmatprep.subr.mxu0 0.0
    %224 = vmatpush1.msra.mxu0 0.0
    %225 = vmatprep.subr.mxu0 0.0
    %226 = vmatpush1.msra.mxu0 0.0
    %227 = vmatprep.subr.mxu0 0.0
    %228 = vmatpush1.msra.mxu0 0.0
    %229 = vmatprep.subr.mxu0 0.0
    %230 = vmatpush1.msra.mxu0 0.0
    %231 = vmatprep.subr.mxu0 0.0
    %232 = vmatpush1.msra.mxu0 0.0
    %233 = vmatprep.subr.mxu0 0.0
    %234 = vmatpush1.msra.mxu0 0.0
    %235 = vmatprep.subr.mxu0 0.0
    %236 = vmatpush1.msra.mxu0 0.0
    %237 = vmatprep.subr.mxu0 0.0
    %238 = vmatpush1.msra.mxu0 0.0
    %239 = vmatprep.subr.mxu0 0.0
    %240 = vmatpush1.msra.mxu0 0.0
    %241 = vmatprep.subr.mxu0 0.0
    %242 = vmatpush1.msra.mxu0 0.0
    %243 = vmatprep.subr.mxu0 0.0
    %244 = vmatpush1.msra.mxu0 0.0
    %245 = vmatprep.subr.mxu0 0.0
    %246 = vmatpush1.msra.mxu0 0.0
    %247 = vmatprep.mubr.f32.mxu0 0.0
    %248 = vmatmul.mubr.f32.gmra.mrb[0].mxu0 %v181
    %v249 = vpop.f32.mrb[0].mxu0
    %v250 = vadd.f32 %v94, %v249
    %v251 = vpop.f32.mrb[0].mxu0
    %252 = vdwg.mxu0
    %v253 = vstv %s102
    %v254 = vmul.f32 %v253, %v250
    %v255 = vadd.f32 %v96, %v254
    %v257 = vsel %vm97, %v255, 0
    %259 = vmatprep.subr.mxu0 0.0
    %260 = vmatpush1.msra.mxu0 %v74
    %261 = vmatprep.subr.mxu0 0.0
    %262 = vmatpush1.msra.mxu0 %v75
    %263 = vmatprep.subr.mxu0 0.0
    %264 = vmatpush1.msra.mxu0 %v76
    %265 = vmatprep.subr.mxu0 0.0
    %266 = vmatpush1.msra.mxu0 %v77
    %267 = vmatprep.subr.mxu0 0.0
    %268 = vmatpush1.msra.mxu0 0.0
    %269 = vmatprep.subr.mxu0 0.0
    %270 = vmatpush1.msra.mxu0 0.0
    %271 = vmatprep.subr.mxu0 0.0
    %272 = vmatpush1.msra.mxu0 0.0
    %273 = vmatprep.subr.mxu0 0.0
    %274 = vmatpush1.msra.mxu0 0.0
    %275 = vmatprep.subr.mxu0 0.0
    %276 = vmatpush1.msra.mxu0 0.0
    %277 = vmatprep.subr.mxu0 0.0
    %278 = vmatpush1.msra.mxu0 0.0
    %279 = vmatprep.subr.mxu0 0.0
    %280 = vmatpush1.msra.mxu0 0.0
    %281 = vmatprep.subr.mxu0 0.0
    %282 = vmatpush1.msra.mxu0 0.0
    %283 = vmatprep.subr.mxu0 0.0
    %284 = vmatpush1.msra.mxu0 0.0
    %285 = vmatprep.subr.mxu0 0.0
    %286 = vmatpush1.msra.mxu0 0.0
    %287 = vmatprep.subr.mxu0 0.0
    %288 = vmatpush1.msra.mxu0 0.0
    %289 = vmatprep.subr.mxu0 0.0
    %290 = vmatpush1.msra.mxu0 0.0
    %291 = vmatprep.subr.mxu0 0.0
    %292 = vmatpush1.msra.mxu0 0.0
    %293 = vmatprep.subr.mxu0 0.0
    %294 = vmatpush1.msra.mxu0 0.0
    %295 = vmatprep.subr.mxu0 0.0
    %296 = vmatpush1.msra.mxu0 0.0
    %297 = vmatprep.subr.mxu0 0.0
    %298 = vmatpush1.msra.mxu0 0.0
    %299 = vmatprep.subr.mxu0 0.0
    %300 = vmatpush1.msra.mxu0 0.0
    %301 = vmatprep.subr.mxu0 0.0
    %302 = vmatpush1.msra.mxu0 0.0
    %303 = vmatprep.subr.mxu0 0.0
    %304 = vmatpush1.msra.mxu0 0.0
    %305 = vmatprep.subr.mxu0 0.0
    %306 = vmatpush1.msra.mxu0 0.0
    %307 = vmatprep.subr.mxu0 0.0
    %308 = vmatpush1.msra.mxu0 0.0
    %309 = vmatprep.subr.mxu0 0.0
    %310 = vmatpush1.msra.mxu0 0.0
    %311 = vmatprep.subr.mxu0 0.0
    %312 = vmatpush1.msra.mxu0 0.0
    %313 = vmatprep.subr.mxu0 0.0
    %314 = vmatpush1.msra.mxu0 0.0
    %315 = vmatprep.subr.mxu0 0.0
    %316 = vmatpush1.msra.mxu0 0.0
    %317 = vmatprep.subr.mxu0 0.0
    %318 = vmatpush1.msra.mxu0 0.0
    %319 = vmatprep.subr.mxu0 0.0
    %320 = vmatpush1.msra.mxu0 0.0
    %321 = vmatprep.subr.mxu0 0.0
    %322 = vmatpush1.msra.mxu0 0.0
    %323 = vmatprep.mubr.f32.mxu0 0.0
    %324 = vmatmul.mubr.f32.gmra.mrb[0].mxu0 %v257
    %v325 = vpop.f32.mrb[0].mxu0
    %v326 = vadd.f32 %v87, %v325
    %v327 = vpop.f32.mrb[0].mxu0
    %328 = vdwg.mxu0
    %v329 = vtanh.pop %v326
    %v331 = vsel %vm97, %v329, 0
    %333 = vmatprep.subr.mxu0 0.0
    %334 = vmatpush1.msra.mxu0 %v78
    %335 = vmatprep.subr.mxu0 0.0
    %336 = vmatpush1.msra.mxu0 %v79
    %337 = vmatprep.subr.mxu0 0.0
    %338 = vmatpush1.msra.mxu0 %v80
    %339 = vmatprep.subr.mxu0 0.0
    %340 = vmatpush1.msra.mxu0 %v81
    %341 = vmatprep.subr.mxu0 0.0
    %342 = vmatpush1.msra.mxu0 0.0
    %343 = vmatprep.subr.mxu0 0.0
    %344 = vmatpush1.msra.mxu0 0.0
    %345 = vmatprep.subr.mxu0 0.0
    %346 = vmatpush1.msra.mxu0 0.0
    %347 = vmatprep.subr.mxu0 0.0
    %348 = vmatpush1.msra.mxu0 0.0
    %349 = vmatprep.subr.mxu0 0.0
    %350 = vmatpush1.msra.mxu0 0.0
    %351 = vmatprep.subr.mxu0 0.0
    %352 = vmatpush1.msra.mxu0 0.0
    %353 = vmatprep.subr.mxu0 0.0
    %354 = vmatpush1.msra.mxu0 0.0
    %355 = vmatprep.subr.mxu0 0.0
    %356 = vmatpush1.msra.mxu0 0.0
    %357 = vmatprep.subr.mxu0 0.0
    %358 = vmatpush1.msra.mxu0 0.0
    %359 = vmatprep.subr.mxu0 0.0
    %360 = vmatpush1.msra.mxu0 0.0
    %361 = vmatprep.subr.mxu0 0.0
    %362 = vmatpush1.msra.mxu0 0.0
    %363 = vmatprep.subr.mxu0 0.0
    %364 = vmatpush1.msra.mxu0 0.0
    %365 = vmatprep.subr.mxu0 0.0
    %366 = vmatpush1.msra.mxu0 0.0
    %367 = vmatprep.subr.mxu0 0.0
    %368 = vmatpush1.msra.mxu0 0.0
    %369 = vmatprep.subr.mxu0 0.0
    %370 = vmatpush1.msra.mxu0 0.0
    %371 = vmatprep.subr.mxu0 0.0
    %372 = vmatpush1.msra.mxu0 0.0
    %373 = vmatprep.subr.mxu0 0.0
    %374 = vmatpush1.msra.mxu0 0.0
    %375 = vmatprep.subr.mxu0 0.0
    %376 = vmatpush1.msra.mxu0 0.0
    %377 = vmatprep.subr.mxu0 0.0
    %378 = vmatpush1.msra.mxu0 0.0
    %379 = vmatprep.subr.mxu0 0.0
    %380 = vmatpush1.msra.mxu0 0.0
    %381 = vmatprep.subr.mxu0 0.0
    %382 = vmatpush1.msra.mxu0 0.0
    %383 = vmatprep.subr.mxu0 0.0
    %384 = vmatpush1.msra.mxu0 0.0
    %385 = vmatprep.subr.mxu0 0.0
    %386 = vmatpush1.msra.mxu0 0.0
    %387 = vmatprep.subr.mxu0 0.0
    %388 = vmatpush1.msra.mxu0 0.0
    %389 = vmatprep.subr.mxu0 0.0
    %390 = vmatpush1.msra.mxu0 0.0
    %391 = vmatprep.subr.mxu0 0.0
    %392 = vmatpush1.msra.mxu0 0.0
    %393 = vmatprep.subr.mxu0 0.0
    %394 = vmatpush1.msra.mxu0 0.0
    %395 = vmatprep.subr.mxu0 0.0
    %396 = vmatpush1.msra.mxu0 0.0
    %397 = vmatprep.mubr.f32.mxu0 0.0
    %398 = vmatmul.mubr.f32.gmra.mrb[0].mxu0 %v331
    %v399 = vpop.f32.mrb[0].mxu0
    %v400 = vadd.f32 %v94, %v399
    %v401 = vpop.f32.mrb[0].mxu0
    %402 = vdwg.mxu0
    %v403 = vmul.f32 %v253, %v400
    %v404 = vadd.f32 %v96, %v403
    %v406 = vsel %vm97, %v404, 0
    %408 = vmatprep.subr.mxu0 0.0
    %409 = vmatpush1.msra.mxu0 %v74
    %410 = vmatprep.subr.mxu0 0.0
    %411 = vmatpush1.msra.mxu0 %v75
    %412 = vmatprep.subr.mxu0 0.0
    %413 = vmatpush1.msra.mxu0 %v76
    %414 = vmatprep.subr.mxu0 0.0
    %415 = vmatpush1.msra.mxu0 %v77
    %416 = vmatprep.subr.mxu0 0.0
    %417 = vmatpush1.msra.mxu0 0.0
    %418 = vmatprep.subr.mxu0 0.0
    %419 = vmatpush1.msra.mxu0 0.0
    %420 = vmatprep.subr.mxu0 0.0
    %421 = vmatpush1.msra.mxu0 0.0
    %422 = vmatprep.subr.mxu0 0.0
    %423 = vmatpush1.msra.mxu0 0.0
    %424 = vmatprep.subr.mxu0 0.0
    %425 = vmatpush1.msra.mxu0 0.0
    %426 = vmatprep.subr.mxu0 0.0
    %427 = vmatpush1.msra.mxu0 0.0
    %428 = vmatprep.subr.mxu0 0.0
    %429 = vmatpush1.msra.mxu0 0.0
    %430 = vmatprep.subr.mxu0 0.0
    %431 = vmatpush1.msra.mxu0 0.0
    %432 = vmatprep.subr.mxu0 0.0
    %433 = vmatpush1.msra.mxu0 0.0
    %434 = vmatprep.subr.mxu0 0.0
    %435 = vmatpush1.msra.mxu0 0.0
    %436 = vmatprep.subr.mxu0 0.0
    %437 = vmatpush1.msra.mxu0 0.0
    %438 = vmatprep.subr.mxu0 0.0
    %439 = vmatpush1.msra.mxu0 0.0
    %440 = vmatprep.subr.mxu0 0.0
    %441 = vmatpush1.msra.mxu0 0.0
    %442 = vmatprep.subr.mxu0 0.0
    %443 = vmatpush1.msra.mxu0 0.0
    %444 = vmatprep.subr.mxu0 0.0
    %445 = vmatpush1.msra.mxu0 0.0
    %446 = vmatprep.subr.mxu0 0.0
    %447 = vmatpush1.msra.mxu0 0.0
    %448 = vmatprep.subr.mxu0 0.0
    %449 = vmatpush1.msra.mxu0 0.0
    %450 = vmatprep.subr.mxu0 0.0
    %451 = vmatpush1.msra.mxu0 0.0
    %452 = vmatprep.subr.mxu0 0.0
    %453 = vmatpush1.msra.mxu0 0.0
    %454 = vmatprep.subr.mxu0 0.0
    %455 = vmatpush1.msra.mxu0 0.0
    %456 = vmatprep.subr.mxu0 0.0
    %457 = vmatpush1.msra.mxu0 0.0
    %458 = vmatprep.subr.mxu0 0.0
    %459 = vmatpush1.msra.mxu0 0.0
    %460 = vmatprep.subr.mxu0 0.0
    %461 = vmatpush1.msra.mxu0 0.0
    %462 = vmatprep.subr.mxu0 0.0
    %463 = vmatpush1.msra.mxu0 0.0
    %464 = vmatprep.subr.mxu0 0.0
    %465 = vmatpush1.msra.mxu0 0.0
    %466 = vmatprep.subr.mxu0 0.0
    %467 = vmatpush1.msra.mxu0 0.0
    %468 = vmatprep.subr.mxu0 0.0
    %469 = vmatpush1.msra.mxu0 0.0
    %470 = vmatprep.subr.mxu0 0.0
    %471 = vmatpush1.msra.mxu0 0.0
    %472 = vmatprep.mubr.f32.mxu0 0.0
    %473 = vmatmul.mubr.f32.gmra.mrb[0].mxu0 %v406
    %v474 = vpop.f32.mrb[0].mxu0
    %v475 = vadd.f32 %v87, %v474
    %v476 = vpop.f32.mrb[0].mxu0
    %477 = vdwg.mxu0
    %v478 = vtanh.pop %v475
    %v480 = vsel %vm97, %v478, 0
    %482 = vmatprep.subr.mxu0 0.0
    %483 = vmatpush1.msra.mxu0 %v78
    %484 = vmatprep.subr.mxu0 0.0
    %485 = vmatpush1.msra.mxu0 %v79
    %486 = vmatprep.subr.mxu0 0.0
    %487 = vmatpush1.msra.mxu0 %v80
    %488 = vmatprep.subr.mxu0 0.0
    %489 = vmatpush1.msra.mxu0 %v81
    %490 = vmatprep.subr.mxu0 0.0
    %491 = vmatpush1.msra.mxu0 0.0
    %492 = vmatprep.subr.mxu0 0.0
    %493 = vmatpush1.msra.mxu0 0.0
    %494 = vmatprep.subr.mxu0 0.0
    %495 = vmatpush1.msra.mxu0 0.0
    %496 = vmatprep.subr.mxu0 0.0
    %497 = vmatpush1.msra.mxu0 0.0
    %498 = vmatprep.subr.mxu0 0.0
    %499 = vmatpush1.msra.mxu0 0.0
    %500 = vmatprep.subr.mxu0 0.0
    %501 = vmatpush1.msra.mxu0 0.0
    %502 = vmatprep.subr.mxu0 0.0
    %503 = vmatpush1.msra.mxu0 0.0
    %504 = vmatprep.subr.mxu0 0.0
    %505 = vmatpush1.msra.mxu0 0.0
    %506 = vmatprep.subr.mxu0 0.0
    %507 = vmatpush1.msra.mxu0 0.0
    %508 = vmatprep.subr.mxu0 0.0
    %509 = vmatpush1.msra.mxu0 0.0
    %510 = vmatprep.subr.mxu0 0.0
    %511 = vmatpush1.msra.mxu0 0.0
    %512 = vmatprep.subr.mxu0 0.0
    %513 = vmatpush1.msra.mxu0 0.0
    %514 = vmatprep.subr.mxu0 0.0
    %515 = vmatpush1.msra.mxu0 0.0
    %516 = vmatprep.subr.mxu0 0.0
    %517 = vmatpush1.msra.mxu0 0.0
    %518 = vmatprep.subr.mxu0 0.0
    %519 = vmatpush1.msra.mxu0 0.0
    %520 = vmatprep.subr.mxu0 0.0
    %521 = vmatpush1.msra.mxu0 0.0
    %522 = vmatprep.subr.mxu0 0.0
    %523 = vmatpush1.msra.mxu0 0.0
    %524 = vmatprep.subr.mxu0 0.0
    %525 = vmatpush1.msra.mxu0 0.0
    %526 = vmatprep.subr.mxu0 0.0
    %527 = vmatpush1.msra.mxu0 0.0
    %528 = vmatprep.subr.mxu0 0.0
    %529 = vmatpush1.msra.mxu0 0.0
    %530 = vmatprep.subr.mxu0 0.0
    %531 = vmatpush1.msra.mxu0 0.0
    %532 = vmatprep.subr.mxu0 0.0
    %533 = vmatpush1.msra.mxu0 0.0
    %534 = vmatprep.subr.mxu0 0.0
    %535 = vmatpush1.msra.mxu0 0.0
    %536 = vmatprep.subr.mxu0 0.0
    %537 = vmatpush1.msra.mxu0 0.0
    %538 = vmatprep.subr.mxu0 0.0
    %539 = vmatpush1.msra.mxu0 0.0
    %540 = vmatprep.subr.mxu0 0.0
    %541 = vmatpush1.msra.mxu0 0.0
    %542 = vmatprep.subr.mxu0 0.0
    %543 = vmatpush1.msra.mxu0 0.0
    %544 = vmatprep.subr.mxu0 0.0
    %545 = vmatpush1.msra.mxu0 0.0
    %546 = vmatprep.mubr.f32.mxu0 0.0
    %547 = vmatmul.mubr.f32.gmra.mrb[0].mxu0 %v480
    %v548 = vpop.f32.mrb[0].mxu0
    %v549 = vadd.f32 %v94, %v548
    %v550 = vpop.f32.mrb[0].mxu0
    %551 = vdwg.mxu0
    %v552 = vstv %s101
    %v553 = vmul.f32 %v552, %v549
    %v554 = vadd.f32 %v96, %v553
    %v556 = vsel %vm97, %v554, 0
    %558 = vmatprep.subr.mxu0 0.0
    %559 = vmatpush1.msra.mxu0 %v74
    %560 = vmatprep.subr.mxu0 0.0
    %561 = vmatpush1.msra.mxu0 %v75
    %562 = vmatprep.subr.mxu0 0.0
    %563 = vmatpush1.msra.mxu0 %v76
    %564 = vmatprep.subr.mxu0 0.0
    %565 = vmatpush1.msra.mxu0 %v77
    %566 = vmatprep.subr.mxu0 0.0
    %567 = vmatpush1.msra.mxu0 0.0
    %568 = vmatprep.subr.mxu0 0.0
    %569 = vmatpush1.msra.mxu0 0.0
    %570 = vmatprep.subr.mxu0 0.0
    %571 = vmatpush1.msra.mxu0 0.0
    %572 = vmatprep.subr.mxu0 0.0
    %573 = vmatpush1.msra.mxu0 0.0
    %574 = vmatprep.subr.mxu0 0.0
    %575 = vmatpush1.msra.mxu0 0.0
    %576 = vmatprep.subr.mxu0 0.0
    %577 = vmatpush1.msra.mxu0 0.0
    %578 = vmatprep.subr.mxu0 0.0
    %579 = vmatpush1.msra.mxu0 0.0
    %580 = vmatprep.subr.mxu0 0.0
    %581 = vmatpush1.msra.mxu0 0.0
    %582 = vmatprep.subr.mxu0 0.0
    %583 = vmatpush1.msra.mxu0 0.0
    %584 = vmatprep.subr.mxu0 0.0
    %585 = vmatpush1.msra.mxu0 0.0
    %586 = vmatprep.subr.mxu0 0.0
    %587 = vmatpush1.msra.mxu0 0.0
    %588 = vmatprep.subr.mxu0 0.0
    %589 = vmatpush1.msra.mxu0 0.0
    %590 = vmatprep.subr.mxu0 0.0
    %591 = vmatpush1.msra.mxu0 0.0
    %592 = vmatprep.subr.mxu0 0.0
    %593 = vmatpush1.msra.mxu0 0.0
    %594 = vmatprep.subr.mxu0 0.0
    %595 = vmatpush1.msra.mxu0 0.0
    %596 = vmatprep.subr.mxu0 0.0
    %597 = vmatpush1.msra.mxu0 0.0
    %598 = vmatprep.subr.mxu0 0.0
    %599 = vmatpush1.msra.mxu0 0.0
    %600 = vmatprep.subr.mxu0 0.0
    %601 = vmatpush1.msra.mxu0 0.0
    %602 = vmatprep.subr.mxu0 0.0
    %603 = vmatpush1.msra.mxu0 0.0
    %604 = vmatprep.subr.mxu0 0.0
    %605 = vmatpush1.msra.mxu0 0.0
    %606 = vmatprep.subr.mxu0 0.0
    %607 = vmatpush1.msra.mxu0 0.0
    %608 = vmatprep.subr.mxu0 0.0
    %609 = vmatpush1.msra.mxu0 0.0
    %610 = vmatprep.subr.mxu0 0.0
    %611 = vmatpush1.msra.mxu0 0.0
    %612 = vmatprep.subr.mxu0 0.0
    %613 = vmatpush1.msra.mxu0 0.0
    %614 = vmatprep.subr.mxu0 0.0
    %615 = vmatpush1.msra.mxu0 0.0
    %616 = vmatprep.subr.mxu0 0.0
    %617 = vmatpush1.msra.mxu0 0.0
    %618 = vmatprep.subr.mxu0 0.0
    %619 = vmatpush1.msra.mxu0 0.0
    %620 = vmatprep.subr.mxu0 0.0
    %621 = vmatpush1.msra.mxu0 0.0
    %622 = vmatprep.mubr.f32.mxu0 0.0
    %623 = vmatmul.mubr.f32.gmra.mrb[0].mxu0 %v556
    %v624 = vpop.f32.mrb[0].mxu0
    %v625 = vadd.f32 %v87, %v624
    %v626 = vpop.f32.mrb[0].mxu0
    %627 = vdwg.mxu0
    %v628 = vtanh.pop %v625
    %v630 = vsel %vm97, %v628, 0
    %632 = vmatprep.subr.mxu0 0.0
    %633 = vmatpush1.msra.mxu0 %v78
    %634 = vmatprep.subr.mxu0 0.0
    %635 = vmatpush1.msra.mxu0 %v79
    %636 = vmatprep.subr.mxu0 0.0
    %637 = vmatpush1.msra.mxu0 %v80
    %638 = vmatprep.subr.mxu0 0.0
    %639 = vmatpush1.msra.mxu0 %v81
    %640 = vmatprep.subr.mxu0 0.0
    %641 = vmatpush1.msra.mxu0 0.0
    %642 = vmatprep.subr.mxu0 0.0
    %643 = vmatpush1.msra.mxu0 0.0
    %644 = vmatprep.subr.mxu0 0.0
    %645 = vmatpush1.msra.mxu0 0.0
    %646 = vmatprep.subr.mxu0 0.0
    %647 = vmatpush1.msra.mxu0 0.0
    %648 = vmatprep.subr.mxu0 0.0
    %649 = vmatpush1.msra.mxu0 0.0
    %650 = vmatprep.subr.mxu0 0.0
    %651 = vmatpush1.msra.mxu0 0.0
    %652 = vmatprep.subr.mxu0 0.0
    %653 = vmatpush1.msra.mxu0 0.0
    %654 = vmatprep.subr.mxu0 0.0
    %655 = vmatpush1.msra.mxu0 0.0
    %656 = vmatprep.subr.mxu0 0.0
    %657 = vmatpush1.msra.mxu0 0.0
    %658 = vmatprep.subr.mxu0 0.0
    %659 = vmatpush1.msra.mxu0 0.0
    %660 = vmatprep.subr.mxu0 0.0
    %661 = vmatpush1.msra.mxu0 0.0
    %662 = vmatprep.subr.mxu0 0.0
    %663 = vmatpush1.msra.mxu0 0.0
    %664 = vmatprep.subr.mxu0 0.0
    %665 = vmatpush1.msra.mxu0 0.0
    %666 = vmatprep.subr.mxu0 0.0
    %667 = vmatpush1.msra.mxu0 0.0
    %668 = vmatprep.subr.mxu0 0.0
    %669 = vmatpush1.msra.mxu0 0.0
    %670 = vmatprep.subr.mxu0 0.0
    %671 = vmatpush1.msra.mxu0 0.0
    %672 = vmatprep.subr.mxu0 0.0
    %673 = vmatpush1.msra.mxu0 0.0
    %674 = vmatprep.subr.mxu0 0.0
    %675 = vmatpush1.msra.mxu0 0.0
    %676 = vmatprep.subr.mxu0 0.0
    %677 = vmatpush1.msra.mxu0 0.0
    %678 = vmatprep.subr.mxu0 0.0
    %679 = vmatpush1.msra.mxu0 0.0
    %680 = vmatprep.subr.mxu0 0.0
    %681 = vmatpush1.msra.mxu0 0.0
    %682 = vmatprep.subr.mxu0 0.0
    %683 = vmatpush1.msra.mxu0 0.0
    %684 = vmatprep.subr.mxu0 0.0
    %685 = vmatpush1.msra.mxu0 0.0
    %686 = vmatprep.subr.mxu0 0.0
    %687 = vmatpush1.msra.mxu0 0.0
    %688 = vmatprep.subr.mxu0 0.0
    %689 = vmatpush1.msra.mxu0 0.0
    %690 = vmatprep.subr.mxu0 0.0
    %691 = vmatpush1.msra.mxu0 0.0
    %692 = vmatprep.subr.mxu0 0.0
    %693 = vmatpush1.msra.mxu0 0.0
    %694 = vmatprep.subr.mxu0 0.0
    %695 = vmatpush1.msra.mxu0 0.0
    %696 = vmatprep.mubr.f32.mxu0 0.0
    %697 = vmatmul.mubr.f32.gmra.mrb[0].mxu0 %v630
    %v698 = vpop.f32.mrb[0].mxu0
    %v699 = vadd.f32 %v94, %v698
    %v700 = vpop.f32.mrb[0].mxu0
    %701 = vdwg.mxu0
    %v702 = vmul.f32 %v400, 2.0
    %v703 = vadd.f32 %v250, %v702
    %v704 = vmul.f32 %v549, 2.0
    %v705 = vadd.f32 %v703, %v704
    %v706 = vadd.f32 %v705, %v699
    %v707 = vstv %s105
    %v708 = vmul.f32 %v707, %v706
    %v709 = vadd.f32 %v96, %v708
    %s710 = scalar_lea.vmem [#allocation10], 8
    %711 = vst.msk [vmem:[%s710] sm:$0xff] %vm97, %v709
    %s712 = sld [smem:[#allocation2 + $0x2]]
    %s713 = sld [smem:[#allocation2 + $0x1]]
    %s714 = ssub.f32 %s712, %s713
    %s715 = smul.f32 %s714, 0.5
    %v716 = vrcp.pop 6.0
    %s717 = vtos %v716
    %s718 = smul.f32 %s714, %s717
    %v720 = vsel %vm97, %v709, 0
    %722 = vmatprep.subr.mxu0 0.0
    %723 = vmatpush1.msra.mxu0 %v74
    %724 = vmatprep.subr.mxu0 0.0
    %725 = vmatpush1.msra.mxu0 %v75
    %726 = vmatprep.subr.mxu0 0.0
    %727 = vmatpush1.msra.mxu0 %v76
    %728 = vmatprep.subr.mxu0 0.0
    %729 = vmatpush1.msra.mxu0 %v77
    %730 = vmatprep.subr.mxu0 0.0
    %731 = vmatpush1.msra.mxu0 0.0
    %732 = vmatprep.subr.mxu0 0.0
    %733 = vmatpush1.msra.mxu0 0.0
    %734 = vmatprep.subr.mxu0 0.0
    %735 = vmatpush1.msra.mxu0 0.0
    %736 = vmatprep.subr.mxu0 0.0
    %737 = vmatpush1.msra.mxu0 0.0
    %738 = vmatprep.subr.mxu0 0.0
    %739 = vmatpush1.msra.mxu0 0.0
    %740 = vmatprep.subr.mxu0 0.0
    %741 = vmatpush1.msra.mxu0 0.0
    %742 = vmatprep.subr.mxu0 0.0
    %743 = vmatpush1.msra.mxu0 0.0
    %744 = vmatprep.subr.mxu0 0.0
    %745 = vmatpush1.msra.mxu0 0.0
    %746 = vmatprep.subr.mxu0 0.0
    %747 = vmatpush1.msra.mxu0 0.0
    %748 = vmatprep.subr.mxu0 0.0
    %749 = vmatpush1.msra.mxu0 0.0
    %750 = vmatprep.subr.mxu0 0.0
    %751 = vmatpush1.msra.mxu0 0.0
    %752 = vmatprep.subr.mxu0 0.0
    %753 = vmatpush1.msra.mxu0 0.0
    %754 = vmatprep.subr.mxu0 0.0
    %755 = vmatpush1.msra.mxu0 0.0
    %756 = vmatprep.subr.mxu0 0.0
    %757 = vmatpush1.msra.mxu0 0.0
    %758 = vmatprep.subr.mxu0 0.0
    %759 = vmatpush1.msra.mxu0 0.0
    %760 = vmatprep.subr.mxu0 0.0
    %761 = vmatpush1.msra.mxu0 0.0
    %762 = vmatprep.subr.mxu0 0.0
    %763 = vmatpush1.msra.mxu0 0.0
    %764 = vmatprep.subr.mxu0 0.0
    %765 = vmatpush1.msra.mxu0 0.0
    %766 = vmatprep.subr.mxu0 0.0
    %767 = vmatpush1.msra.mxu0 0.0
    %768 = vmatprep.subr.mxu0 0.0
    %769 = vmatpush1.msra.mxu0 0.0
    %770 = vmatprep.subr.mxu0 0.0
    %771 = vmatpush1.msra.mxu0 0.0
    %772 = vmatprep.subr.mxu0 0.0
    %773 = vmatpush1.msra.mxu0 0.0
    %774 = vmatprep.subr.mxu0 0.0
    %775 = vmatpush1.msra.mxu0 0.0
    %776 = vmatprep.subr.mxu0 0.0
    %777 = vmatpush1.msra.mxu0 0.0
    %778 = vmatprep.subr.mxu0 0.0
    %779 = vmatpush1.msra.mxu0 0.0
    %780 = vmatprep.subr.mxu0 0.0
    %781 = vmatpush1.msra.mxu0 0.0
    %782 = vmatprep.subr.mxu0 0.0
    %783 = vmatpush1.msra.mxu0 0.0
    %784 = vmatprep.subr.mxu0 0.0
    %785 = vmatpush1.msra.mxu0 0.0
    %786 = vmatprep.mubr.f32.mxu0 0.0
    %787 = vmatmul.mubr.f32.gmra.mrb[0].mxu0 %v720
    %v788 = vpop.f32.mrb[0].mxu0
    %v789 = vadd.f32 %v87, %v788
    %v790 = vpop.f32.mrb[0].mxu0
    %791 = vdwg.mxu0
    %v792 = vtanh.pop %v789
    %v794 = vsel %vm97, %v792, 0
    %796 = vmatprep.subr.mxu0 0.0
    %797 = vmatpush1.msra.mxu0 %v78
    %798 = vmatprep.subr.mxu0 0.0
    %799 = vmatpush1.msra.mxu0 %v79
    %800 = vmatprep.subr.mxu0 0.0
    %801 = vmatpush1.msra.mxu0 %v80
    %802 = vmatprep.subr.mxu0 0.0
    %803 = vmatpush1.msra.mxu0 %v81
    %804 = vmatprep.subr.mxu0 0.0
    %805 = vmatpush1.msra.mxu0 0.0
    %806 = vmatprep.subr.mxu0 0.0
    %807 = vmatpush1.msra.mxu0 0.0
    %808 = vmatprep.subr.mxu0 0.0
    %809 = vmatpush1.msra.mxu0 0.0
    %810 = vmatprep.subr.mxu0 0.0
    %811 = vmatpush1.msra.mxu0 0.0
    %812 = vmatprep.subr.mxu0 0.0
    %813 = vmatpush1.msra.mxu0 0.0
    %814 = vmatprep.subr.mxu0 0.0
    %815 = vmatpush1.msra.mxu0 0.0
    %816 = vmatprep.subr.mxu0 0.0
    %817 = vmatpush1.msra.mxu0 0.0
    %818 = vmatprep.subr.mxu0 0.0
    %819 = vmatpush1.msra.mxu0 0.0
    %820 = vmatprep.subr.mxu0 0.0
    %821 = vmatpush1.msra.mxu0 0.0
    %822 = vmatprep.subr.mxu0 0.0
    %823 = vmatpush1.msra.mxu0 0.0
    %824 = vmatprep.subr.mxu0 0.0
    %825 = vmatpush1.msra.mxu0 0.0
    %826 = vmatprep.subr.mxu0 0.0
    %827 = vmatpush1.msra.mxu0 0.0
    %828 = vmatprep.subr.mxu0 0.0
    %829 = vmatpush1.msra.mxu0 0.0
    %830 = vmatprep.subr.mxu0 0.0
    %831 = vmatpush1.msra.mxu0 0.0
    %832 = vmatprep.subr.mxu0 0.0
    %833 = vmatpush1.msra.mxu0 0.0
    %834 = vmatprep.subr.mxu0 0.0
    %835 = vmatpush1.msra.mxu0 0.0
    %836 = vmatprep.subr.mxu0 0.0
    %837 = vmatpush1.msra.mxu0 0.0
    %838 = vmatprep.subr.mxu0 0.0
    %839 = vmatpush1.msra.mxu0 0.0
    %840 = vmatprep.subr.mxu0 0.0
    %841 = vmatpush1.msra.mxu0 0.0
    %842 = vmatprep.subr.mxu0 0.0
    %843 = vmatpush1.msra.mxu0 0.0
    %844 = vmatprep.subr.mxu0 0.0
    %845 = vmatpush1.msra.mxu0 0.0
    %846 = vmatprep.subr.mxu0 0.0
    %847 = vmatpush1.msra.mxu0 0.0
    %848 = vmatprep.subr.mxu0 0.0
    %849 = vmatpush1.msra.mxu0 0.0
    %850 = vmatprep.subr.mxu0 0.0
    %851 = vmatpush1.msra.mxu0 0.0
    %852 = vmatprep.subr.mxu0 0.0
    %853 = vmatpush1.msra.mxu0 0.0
    %854 = vmatprep.subr.mxu0 0.0
    %855 = vmatpush1.msra.mxu0 0.0
    %856 = vmatprep.subr.mxu0 0.0
    %857 = vmatpush1.msra.mxu0 0.0
    %858 = vmatprep.subr.mxu0 0.0
    %859 = vmatpush1.msra.mxu0 0.0
    %860 = vmatprep.mubr.f32.mxu0 0.0
    %861 = vmatmul.mubr.f32.gmra.mrb[0].mxu0 %v794
    %v862 = vpop.f32.mrb[0].mxu0
    %v863 = vadd.f32 %v94, %v862
    %v864 = vpop.f32.mrb[0].mxu0
    %865 = vdwg.mxu0
    %v866 = vstv %s715
    %v867 = vmul.f32 %v866, %v863
    %v868 = vadd.f32 %v709, %v867
    %v870 = vsel %vm97, %v868, 0
    %872 = vmatprep.subr.mxu0 0.0
    %873 = vmatpush1.msra.mxu0 %v74
    %874 = vmatprep.subr.mxu0 0.0
    %875 = vmatpush1.msra.mxu0 %v75
    %876 = vmatprep.subr.mxu0 0.0
    %877 = vmatpush1.msra.mxu0 %v76
    %878 = vmatprep.subr.mxu0 0.0
    %879 = vmatpush1.msra.mxu0 %v77
    %880 = vmatprep.subr.mxu0 0.0
    %881 = vmatpush1.msra.mxu0 0.0
    %882 = vmatprep.subr.mxu0 0.0
    %883 = vmatpush1.msra.mxu0 0.0
    %884 = vmatprep.subr.mxu0 0.0
    %885 = vmatpush1.msra.mxu0 0.0
    %886 = vmatprep.subr.mxu0 0.0
    %887 = vmatpush1.msra.mxu0 0.0
    %888 = vmatprep.subr.mxu0 0.0
    %889 = vmatpush1.msra.mxu0 0.0
    %890 = vmatprep.subr.mxu0 0.0
    %891 = vmatpush1.msra.mxu0 0.0
    %892 = vmatprep.subr.mxu0 0.0
    %893 = vmatpush1.msra.mxu0 0.0
    %894 = vmatprep.subr.mxu0 0.0
    %895 = vmatpush1.msra.mxu0 0.0
    %896 = vmatprep.subr.mxu0 0.0
    %897 = vmatpush1.msra.mxu0 0.0
    %898 = vmatprep.subr.mxu0 0.0
    %899 = vmatpush1.msra.mxu0 0.0
    %900 = vmatprep.subr.mxu0 0.0
    %901 = vmatpush1.msra.mxu0 0.0
    %902 = vmatprep.subr.mxu0 0.0
    %903 = vmatpush1.msra.mxu0 0.0
    %904 = vmatprep.subr.mxu0 0.0
    %905 = vmatpush1.msra.mxu0 0.0
    %906 = vmatprep.subr.mxu0 0.0
    %907 = vmatpush1.msra.mxu0 0.0
    %908 = vmatprep.subr.mxu0 0.0
    %909 = vmatpush1.msra.mxu0 0.0
    %910 = vmatprep.subr.mxu0 0.0
    %911 = vmatpush1.msra.mxu0 0.0
    %912 = vmatprep.subr.mxu0 0.0
    %913 = vmatpush1.msra.mxu0 0.0
    %914 = vmatprep.subr.mxu0 0.0
    %915 = vmatpush1.msra.mxu0 0.0
    %916 = vmatprep.subr.mxu0 0.0
    %917 = vmatpush1.msra.mxu0 0.0
    %918 = vmatprep.subr.mxu0 0.0
    %919 = vmatpush1.msra.mxu0 0.0
    %920 = vmatprep.subr.mxu0 0.0
    %921 = vmatpush1.msra.mxu0 0.0
    %922 = vmatprep.subr.mxu0 0.0
    %923 = vmatpush1.msra.mxu0 0.0
    %924 = vmatprep.subr.mxu0 0.0
    %925 = vmatpush1.msra.mxu0 0.0
    %926 = vmatprep.subr.mxu0 0.0
    %927 = vmatpush1.msra.mxu0 0.0
    %928 = vmatprep.subr.mxu0 0.0
    %929 = vmatpush1.msra.mxu0 0.0
    %930 = vmatprep.subr.mxu0 0.0
    %931 = vmatpush1.msra.mxu0 0.0
    %932 = vmatprep.subr.mxu0 0.0
    %933 = vmatpush1.msra.mxu0 0.0
    %934 = vmatprep.subr.mxu0 0.0
    %935 = vmatpush1.msra.mxu0 0.0
    %936 = vmatprep.mubr.f32.mxu0 0.0
    %937 = vmatmul.mubr.f32.gmra.mrb[0].mxu0 %v870
    %v938 = vpop.f32.mrb[0].mxu0
    %v939 = vadd.f32 %v87, %v938
    %v940 = vpop.f32.mrb[0].mxu0
    %941 = vdwg.mxu0
    %v942 = vtanh.pop %v939
    %v944 = vsel %vm97, %v942, 0
    %946 = vmatprep.subr.mxu0 0.0
    %947 = vmatpush1.msra.mxu0 %v78
    %948 = vmatprep.subr.mxu0 0.0
    %949 = vmatpush1.msra.mxu0 %v79
    %950 = vmatprep.subr.mxu0 0.0
    %951 = vmatpush1.msra.mxu0 %v80
    %952 = vmatprep.subr.mxu0 0.0
    %953 = vmatpush1.msra.mxu0 %v81
    %954 = vmatprep.subr.mxu0 0.0
    %955 = vmatpush1.msra.mxu0 0.0
    %956 = vmatprep.subr.mxu0 0.0
    %957 = vmatpush1.msra.mxu0 0.0
    %958 = vmatprep.subr.mxu0 0.0
    %959 = vmatpush1.msra.mxu0 0.0
    %960 = vmatprep.subr.mxu0 0.0
    %961 = vmatpush1.msra.mxu0 0.0
    %962 = vmatprep.subr.mxu0 0.0
    %963 = vmatpush1.msra.mxu0 0.0
    %964 = vmatprep.subr.mxu0 0.0
    %965 = vmatpush1.msra.mxu0 0.0
    %966 = vmatprep.subr.mxu0 0.0
    %967 = vmatpush1.msra.mxu0 0.0
    %968 = vmatprep.subr.mxu0 0.0
    %969 = vmatpush1.msra.mxu0 0.0
    %970 = vmatprep.subr.mxu0 0.0
    %971 = vmatpush1.msra.mxu0 0.0
    %972 = vmatprep.subr.mxu0 0.0
    %973 = vmatpush1.msra.mxu0 0.0
    %974 = vmatprep.subr.mxu0 0.0
    %975 = vmatpush1.msra.mxu0 0.0
    %976 = vmatprep.subr.mxu0 0.0
    %977 = vmatpush1.msra.mxu0 0.0
    %978 = vmatprep.subr.mxu0 0.0
    %979 = vmatpush1.msra.mxu0 0.0
    %980 = vmatprep.subr.mxu0 0.0
    %981 = vmatpush1.msra.mxu0 0.0
    %982 = vmatprep.subr.mxu0 0.0
    %983 = vmatpush1.msra.mxu0 0.0
    %984 = vmatprep.subr.mxu0 0.0
    %985 = vmatpush1.msra.mxu0 0.0
    %986 = vmatprep.subr.mxu0 0.0
    %987 = vmatpush1.msra.mxu0 0.0
    %988 = vmatprep.subr.mxu0 0.0
    %989 = vmatpush1.msra.mxu0 0.0
    %990 = vmatprep.subr.mxu0 0.0
    %991 = vmatpush1.msra.mxu0 0.0
    %992 = vmatprep.subr.mxu0 0.0
    %993 = vmatpush1.msra.mxu0 0.0
    %994 = vmatprep.subr.mxu0 0.0
    %995 = vmatpush1.msra.mxu0 0.0
    %996 = vmatprep.subr.mxu0 0.0
    %997 = vmatpush1.msra.mxu0 0.0
    %998 = vmatprep.subr.mxu0 0.0
    %999 = vmatpush1.msra.mxu0 0.0
    %1000 = vmatprep.subr.mxu0 0.0
    %1001 = vmatpush1.msra.mxu0 0.0
    %1002 = vmatprep.subr.mxu0 0.0
    %1003 = vmatpush1.msra.mxu0 0.0
    %1004 = vmatprep.subr.mxu0 0.0
    %1005 = vmatpush1.msra.mxu0 0.0
    %1006 = vmatprep.subr.mxu0 0.0
    %1007 = vmatpush1.msra.mxu0 0.0
    %1008 = vmatprep.subr.mxu0 0.0
    %1009 = vmatpush1.msra.mxu0 0.0
    %1010 = vmatprep.mubr.f32.mxu0 0.0
    %1011 = vmatmul.mubr.f32.gmra.mrb[0].mxu0 %v944
    %v1012 = vpop.f32.mrb[0].mxu0
    %v1013 = vadd.f32 %v94, %v1012
    %v1014 = vpop.f32.mrb[0].mxu0
    %1015 = vdwg.mxu0
    %v1016 = vmul.f32 %v866, %v1013
    %v1017 = vadd.f32 %v709, %v1016
    %v1019 = vsel %vm97, %v1017, 0
    %1021 = vmatprep.subr.mxu0 0.0
    %1022 = vmatpush1.msra.mxu0 %v74
    %1023 = vmatprep.subr.mxu0 0.0
    %1024 = vmatpush1.msra.mxu0 %v75
    %1025 = vmatprep.subr.mxu0 0.0
    %1026 = vmatpush1.msra.mxu0 %v76
    %1027 = vmatprep.subr.mxu0 0.0
    %1028 = vmatpush1.msra.mxu0 %v77
    %1029 = vmatprep.subr.mxu0 0.0
    %1030 = vmatpush1.msra.mxu0 0.0
    %1031 = vmatprep.subr.mxu0 0.0
    %1032 = vmatpush1.msra.mxu0 0.0
    %1033 = vmatprep.subr.mxu0 0.0
    %1034 = vmatpush1.msra.mxu0 0.0
    %1035 = vmatprep.subr.mxu0 0.0
    %1036 = vmatpush1.msra.mxu0 0.0
    %1037 = vmatprep.subr.mxu0 0.0
    %1038 = vmatpush1.msra.mxu0 0.0
    %1039 = vmatprep.subr.mxu0 0.0
    %1040 = vmatpush1.msra.mxu0 0.0
    %1041 = vmatprep.subr.mxu0 0.0
    %1042 = vmatpush1.msra.mxu0 0.0
    %1043 = vmatprep.subr.mxu0 0.0
    %1044 = vmatpush1.msra.mxu0 0.0
    %1045 = vmatprep.subr.mxu0 0.0
    %1046 = vmatpush1.msra.mxu0 0.0
    %1047 = vmatprep.subr.mxu0 0.0
    %1048 = vmatpush1.msra.mxu0 0.0
    %1049 = vmatprep.subr.mxu0 0.0
    %1050 = vmatpush1.msra.mxu0 0.0
    %1051 = vmatprep.subr.mxu0 0.0
    %1052 = vmatpush1.msra.mxu0 0.0
    %1053 = vmatprep.subr.mxu0 0.0
    %1054 = vmatpush1.msra.mxu0 0.0
    %1055 = vmatprep.subr.mxu0 0.0
    %1056 = vmatpush1.msra.mxu0 0.0
    %1057 = vmatprep.subr.mxu0 0.0
    %1058 = vmatpush1.msra.mxu0 0.0
    %1059 = vmatprep.subr.mxu0 0.0
    %1060 = vmatpush1.msra.mxu0 0.0
    %1061 = vmatprep.subr.mxu0 0.0
    %1062 = vmatpush1.msra.mxu0 0.0
    %1063 = vmatprep.subr.mxu0 0.0
    %1064 = vmatpush1.msra.mxu0 0.0
    %1065 = vmatprep.subr.mxu0 0.0
    %1066 = vmatpush1.msra.mxu0 0.0
    %1067 = vmatprep.subr.mxu0 0.0
    %1068 = vmatpush1.msra.mxu0 0.0
    %1069 = vmatprep.subr.mxu0 0.0
    %1070 = vmatpush1.msra.mxu0 0.0
    %1071 = vmatprep.subr.mxu0 0.0
    %1072 = vmatpush1.msra.mxu0 0.0
    %1073 = vmatprep.subr.mxu0 0.0
    %1074 = vmatpush1.msra.mxu0 0.0
    %1075 = vmatprep.subr.mxu0 0.0
    %1076 = vmatpush1.msra.mxu0 0.0
    %1077 = vmatprep.subr.mxu0 0.0
    %1078 = vmatpush1.msra.mxu0 0.0
    %1079 = vmatprep.subr.mxu0 0.0
    %1080 = vmatpush1.msra.mxu0 0.0
    %1081 = vmatprep.subr.mxu0 0.0
    %1082 = vmatpush1.msra.mxu0 0.0
    %1083 = vmatprep.subr.mxu0 0.0
    %1084 = vmatpush1.msra.mxu0 0.0
    %1085 = vmatprep.mubr.f32.mxu0 0.0
    %1086 = vmatmul.mubr.f32.gmra.mrb[0].mxu0 %v1019
    %v1087 = vpop.f32.mrb[0].mxu0
    %v1088 = vadd.f32 %v87, %v1087
    %v1089 = vpop.f32.mrb[0].mxu0
    %1090 = vdwg.mxu0
    %v1091 = vtanh.pop %v1088
    %v1093 = vsel %vm97, %v1091, 0
    %1095 = vmatprep.subr.mxu0 0.0
    %1096 = vmatpush1.msra.mxu0 %v78
    %1097 = vmatprep.subr.mxu0 0.0
    %1098 = vmatpush1.msra.mxu0 %v79
    %1099 = vmatprep.subr.mxu0 0.0
    %1100 = vmatpush1.msra.mxu0 %v80
    %1101 = vmatprep.subr.mxu0 0.0
    %1102 = vmatpush1.msra.mxu0 %v81
    %1103 = vmatprep.subr.mxu0 0.0
    %1104 = vmatpush1.msra.mxu0 0.0
    %1105 = vmatprep.subr.mxu0 0.0
    %1106 = vmatpush1.msra.mxu0 0.0
    %1107 = vmatprep.subr.mxu0 0.0
    %1108 = vmatpush1.msra.mxu0 0.0
    %1109 = vmatprep.subr.mxu0 0.0
    %1110 = vmatpush1.msra.mxu0 0.0
    %1111 = vmatprep.subr.mxu0 0.0
    %1112 = vmatpush1.msra.mxu0 0.0
    %1113 = vmatprep.subr.mxu0 0.0
    %1114 = vmatpush1.msra.mxu0 0.0
    %1115 = vmatprep.subr.mxu0 0.0
    %1116 = vmatpush1.msra.mxu0 0.0
    %1117 = vmatprep.subr.mxu0 0.0
    %1118 = vmatpush1.msra.mxu0 0.0
    %1119 = vmatprep.subr.mxu0 0.0
    %1120 = vmatpush1.msra.mxu0 0.0
    %1121 = vmatprep.subr.mxu0 0.0
    %1122 = vmatpush1.msra.mxu0 0.0
    %1123 = vmatprep.subr.mxu0 0.0
    %1124 = vmatpush1.msra.mxu0 0.0
    %1125 = vmatprep.subr.mxu0 0.0
    %1126 = vmatpush1.msra.mxu0 0.0
    %1127 = vmatprep.subr.mxu0 0.0
    %1128 = vmatpush1.msra.mxu0 0.0
    %1129 = vmatprep.subr.mxu0 0.0
    %1130 = vmatpush1.msra.mxu0 0.0
    %1131 = vmatprep.subr.mxu0 0.0
    %1132 = vmatpush1.msra.mxu0 0.0
    %1133 = vmatprep.subr.mxu0 0.0
    %1134 = vmatpush1.msra.mxu0 0.0
    %1135 = vmatprep.subr.mxu0 0.0
    %1136 = vmatpush1.msra.mxu0 0.0
    %1137 = vmatprep.subr.mxu0 0.0
    %1138 = vmatpush1.msra.mxu0 0.0
    %1139 = vmatprep.subr.mxu0 0.0
    %1140 = vmatpush1.msra.mxu0 0.0
    %1141 = vmatprep.subr.mxu0 0.0
    %1142 = vmatpush1.msra.mxu0 0.0
    %1143 = vmatprep.subr.mxu0 0.0
    %1144 = vmatpush1.msra.mxu0 0.0
    %1145 = vmatprep.subr.mxu0 0.0
    %1146 = vmatpush1.msra.mxu0 0.0
    %1147 = vmatprep.subr.mxu0 0.0
    %1148 = vmatpush1.msra.mxu0 0.0
    %1149 = vmatprep.subr.mxu0 0.0
    %1150 = vmatpush1.msra.mxu0 0.0
    %1151 = vmatprep.subr.mxu0 0.0
    %1152 = vmatpush1.msra.mxu0 0.0
    %1153 = vmatprep.subr.mxu0 0.0
    %1154 = vmatpush1.msra.mxu0 0.0
    %1155 = vmatprep.subr.mxu0 0.0
    %1156 = vmatpush1.msra.mxu0 0.0
    %1157 = vmatprep.subr.mxu0 0.0
    %1158 = vmatpush1.msra.mxu0 0.0
    %1159 = vmatprep.mubr.f32.mxu0 0.0
    %1160 = vmatmul.mubr.f32.gmra.mrb[0].mxu0 %v1093
    %v1161 = vpop.f32.mrb[0].mxu0
    %v1162 = vadd.f32 %v94, %v1161
    %v1163 = vpop.f32.mrb[0].mxu0
    %1164 = vdwg.mxu0
    %v1165 = vstv %s714
    %v1166 = vmul.f32 %v1165, %v1162
    %v1167 = vadd.f32 %v709, %v1166
    %v1169 = vsel %vm97, %v1167, 0
    %1171 = vmatprep.subr.mxu0 0.0
    %1172 = vmatpush1.msra.mxu0 %v74
    %1173 = vmatprep.subr.mxu0 0.0
    %1174 = vmatpush1.msra.mxu0 %v75
    %1175 = vmatprep.subr.mxu0 0.0
    %1176 = vmatpush1.msra.mxu0 %v76
    %1177 = vmatprep.subr.mxu0 0.0
    %1178 = vmatpush1.msra.mxu0 %v77
    %1179 = vmatprep.subr.mxu0 0.0
    %1180 = vmatpush1.msra.mxu0 0.0
    %1181 = vmatprep.subr.mxu0 0.0
    %1182 = vmatpush1.msra.mxu0 0.0
    %1183 = vmatprep.subr.mxu0 0.0
    %1184 = vmatpush1.msra.mxu0 0.0
    %1185 = vmatprep.subr.mxu0 0.0
    %1186 = vmatpush1.msra.mxu0 0.0
    %1187 = vmatprep.subr.mxu0 0.0
    %1188 = vmatpush1.msra.mxu0 0.0
    %1189 = vmatprep.subr.mxu0 0.0
    %1190 = vmatpush1.msra.mxu0 0.0
    %1191 = vmatprep.subr.mxu0 0.0
    %1192 = vmatpush1.msra.mxu0 0.0
    %1193 = vmatprep.subr.mxu0 0.0
    %1194 = vmatpush1.msra.mxu0 0.0
    %1195 = vmatprep.subr.mxu0 0.0
    %1196 = vmatpush1.msra.mxu0 0.0
    %1197 = vmatprep.subr.mxu0 0.0
    %1198 = vmatpush1.msra.mxu0 0.0
    %1199 = vmatprep.subr.mxu0 0.0
    %1200 = vmatpush1.msra.mxu0 0.0
    %1201 = vmatprep.subr.mxu0 0.0
    %1202 = vmatpush1.msra.mxu0 0.0
    %1203 = vmatprep.subr.mxu0 0.0
    %1204 = vmatpush1.msra.mxu0 0.0
    %1205 = vmatprep.subr.mxu0 0.0
    %1206 = vmatpush1.msra.mxu0 0.0
    %1207 = vmatprep.subr.mxu0 0.0
    %1208 = vmatpush1.msra.mxu0 0.0
    %1209 = vmatprep.subr.mxu0 0.0
    %1210 = vmatpush1.msra.mxu0 0.0
    %1211 = vmatprep.subr.mxu0 0.0
    %1212 = vmatpush1.msra.mxu0 0.0
    %1213 = vmatprep.subr.mxu0 0.0
    %1214 = vmatpush1.msra.mxu0 0.0
    %1215 = vmatprep.subr.mxu0 0.0
    %1216 = vmatpush1.msra.mxu0 0.0
    %1217 = vmatprep.subr.mxu0 0.0
    %1218 = vmatpush1.msra.mxu0 0.0
    %1219 = vmatprep.subr.mxu0 0.0
    %1220 = vmatpush1.msra.mxu0 0.0
    %1221 = vmatprep.subr.mxu0 0.0
    %1222 = vmatpush1.msra.mxu0 0.0
    %1223 = vmatprep.subr.mxu0 0.0
    %1224 = vmatpush1.msra.mxu0 0.0
    %1225 = vmatprep.subr.mxu0 0.0
    %1226 = vmatpush1.msra.mxu0 0.0
    %1227 = vmatprep.subr.mxu0 0.0
    %1228 = vmatpush1.msra.mxu0 0.0
    %1229 = vmatprep.subr.mxu0 0.0
    %1230 = vmatpush1.msra.mxu0 0.0
    %1231 = vmatprep.subr.mxu0 0.0
    %1232 = vmatpush1.msra.mxu0 0.0
    %1233 = vmatprep.subr.mxu0 0.0
    %1234 = vmatpush1.msra.mxu0 0.0
    %1235 = vmatprep.mubr.f32.mxu0 0.0
    %1236 = vmatmul.mubr.f32.gmra.mrb[0].mxu0 %v1169
    %v1237 = vpop.f32.mrb[0].mxu0
    %v1238 = vadd.f32 %v87, %v1237
    %v1239 = vpop.f32.mrb[0].mxu0
    %1240 = vdwg.mxu0
    %v1241 = vtanh.pop %v1238
    %v1243 = vsel %vm97, %v1241, 0
    %1245 = vmatprep.subr.mxu0 0.0
    %1246 = vmatpush1.msra.mxu0 %v78
    %1247 = vmatprep.subr.mxu0 0.0
    %1248 = vmatpush1.msra.mxu0 %v79
    %1249 = vmatprep.subr.mxu0 0.0
    %1250 = vmatpush1.msra.mxu0 %v80
    %1251 = vmatprep.subr.mxu0 0.0
    %1252 = vmatpush1.msra.mxu0 %v81
    %1253 = vmatprep.subr.mxu0 0.0
    %1254 = vmatpush1.msra.mxu0 0.0
    %1255 = vmatprep.subr.mxu0 0.0
    %1256 = vmatpush1.msra.mxu0 0.0
    %1257 = vmatprep.subr.mxu0 0.0
    %1258 = vmatpush1.msra.mxu0 0.0
    %1259 = vmatprep.subr.mxu0 0.0
    %1260 = vmatpush1.msra.mxu0 0.0
    %1261 = vmatprep.subr.mxu0 0.0
    %1262 = vmatpush1.msra.mxu0 0.0
    %1263 = vmatprep.subr.mxu0 0.0
    %1264 = vmatpush1.msra.mxu0 0.0
    %1265 = vmatprep.subr.mxu0 0.0
    %1266 = vmatpush1.msra.mxu0 0.0
    %1267 = vmatprep.subr.mxu0 0.0
    %1268 = vmatpush1.msra.mxu0 0.0
    %1269 = vmatprep.subr.mxu0 0.0
    %1270 = vmatpush1.msra.mxu0 0.0
    %1271 = vmatprep.subr.mxu0 0.0
    %1272 = vmatpush1.msra.mxu0 0.0
    %1273 = vmatprep.subr.mxu0 0.0
    %1274 = vmatpush1.msra.mxu0 0.0
    %1275 = vmatprep.subr.mxu0 0.0
    %1276 = vmatpush1.msra.mxu0 0.0
    %1277 = vmatprep.subr.mxu0 0.0
    %1278 = vmatpush1.msra.mxu0 0.0
    %1279 = vmatprep.subr.mxu0 0.0
    %1280 = vmatpush1.msra.mxu0 0.0
    %1281 = vmatprep.subr.mxu0 0.0
    %1282 = vmatpush1.msra.mxu0 0.0
    %1283 = vmatprep.subr.mxu0 0.0
    %1284 = vmatpush1.msra.mxu0 0.0
    %1285 = vmatprep.subr.mxu0 0.0
    %1286 = vmatpush1.msra.mxu0 0.0
    %1287 = vmatprep.subr.mxu0 0.0
    %1288 = vmatpush1.msra.mxu0 0.0
    %1289 = vmatprep.subr.mxu0 0.0
    %1290 = vmatpush1.msra.mxu0 0.0
    %1291 = vmatprep.subr.mxu0 0.0
    %1292 = vmatpush1.msra.mxu0 0.0
    %1293 = vmatprep.subr.mxu0 0.0
    %1294 = vmatpush1.msra.mxu0 0.0
    %1295 = vmatprep.subr.mxu0 0.0
    %1296 = vmatpush1.msra.mxu0 0.0
    %1297 = vmatprep.subr.mxu0 0.0
    %1298 = vmatpush1.msra.mxu0 0.0
    %1299 = vmatprep.subr.mxu0 0.0
    %1300 = vmatpush1.msra.mxu0 0.0
    %1301 = vmatprep.subr.mxu0 0.0
    %1302 = vmatpush1.msra.mxu0 0.0
    %1303 = vmatprep.subr.mxu0 0.0
    %1304 = vmatpush1.msra.mxu0 0.0
    %1305 = vmatprep.subr.mxu0 0.0
    %1306 = vmatpush1.msra.mxu0 0.0
    %1307 = vmatprep.subr.mxu0 0.0
    %1308 = vmatpush1.msra.mxu0 0.0
    %1309 = vmatprep.mubr.f32.mxu0 0.0
    %1310 = vmatmul.mubr.f32.gmra.mrb[0].mxu0 %v1243
    %v1311 = vpop.f32.mrb[0].mxu0
    %v1312 = vadd.f32 %v94, %v1311
    %v1313 = vpop.f32.mrb[0].mxu0
    %1314 = vdwg.mxu0
    %v1315 = vmul.f32 %v1013, 2.0
    %v1316 = vadd.f32 %v863, %v1315
    %v1317 = vmul.f32 %v1162, 2.0
    %v1318 = vadd.f32 %v1316, %v1317
    %v1319 = vadd.f32 %v1318, %v1312
    %v1320 = vstv %s718
    %v1321 = vmul.f32 %v1320, %v1319
    %v1322 = vadd.f32 %v709, %v1321
    %s1323 = scalar_lea.vmem [#allocation10], 16
    %1324 = vst.msk [vmem:[%s1323] sm:$0xff] %vm97, %v1322
    %s1325 = sld [smem:[#allocation2 + $0x3]]
    %s1326 = sld [smem:[#allocation2 + $0x2]]
    %s1327 = ssub.f32 %s1325, %s1326
    %s1328 = smul.f32 %s1327, 0.5
    %v1329 = vrcp.pop 6.0
    %s1330 = vtos %v1329
    %s1331 = smul.f32 %s1327, %s1330
    %v1333 = vsel %vm97, %v1322, 0
    %1335 = vmatprep.subr.mxu0 0.0
    %1336 = vmatpush1.msra.mxu0 %v74
    %1337 = vmatprep.subr.mxu0 0.0
    %1338 = vmatpush1.msra.mxu0 %v75
    %1339 = vmatprep.subr.mxu0 0.0
    %1340 = vmatpush1.msra.mxu0 %v76
    %1341 = vmatprep.subr.mxu0 0.0
    %1342 = vmatpush1.msra.mxu0 %v77
    %1343 = vmatprep.subr.mxu0 0.0
    %1344 = vmatpush1.msra.mxu0 0.0
    %1345 = vmatprep.subr.mxu0 0.0
    %1346 = vmatpush1.msra.mxu0 0.0
    %1347 = vmatprep.subr.mxu0 0.0
    %1348 = vmatpush1.msra.mxu0 0.0
    %1349 = vmatprep.subr.mxu0 0.0
    %1350 = vmatpush1.msra.mxu0 0.0
    %1351 = vmatprep.subr.mxu0 0.0
    %1352 = vmatpush1.msra.mxu0 0.0
    %1353 = vmatprep.subr.mxu0 0.0
    %1354 = vmatpush1.msra.mxu0 0.0
    %1355 = vmatprep.subr.mxu0 0.0
    %1356 = vmatpush1.msra.mxu0 0.0
    %1357 = vmatprep.subr.mxu0 0.0
    %1358 = vmatpush1.msra.mxu0 0.0
    %1359 = vmatprep.subr.mxu0 0.0
    %1360 = vmatpush1.msra.mxu0 0.0
    %1361 = vmatprep.subr.mxu0 0.0
    %1362 = vmatpush1.msra.mxu0 0.0
    %1363 = vmatprep.subr.mxu0 0.0
    %1364 = vmatpush1.msra.mxu0 0.0
    %1365 = vmatprep.subr.mxu0 0.0
    %1366 = vmatpush1.msra.mxu0 0.0
    %1367 = vmatprep.subr.mxu0 0.0
    %1368 = vmatpush1.msra.mxu0 0.0
    %1369 = vmatprep.subr.mxu0 0.0
    %1370 = vmatpush1.msra.mxu0 0.0
    %1371 = vmatprep.subr.mxu0 0.0
    %1372 = vmatpush1.msra.mxu0 0.0
    %1373 = vmatprep.subr.mxu0 0.0
    %1374 = vmatpush1.msra.mxu0 0.0
    %1375 = vmatprep.subr.mxu0 0.0
    %1376 = vmatpush1.msra.mxu0 0.0
    %1377 = vmatprep.subr.mxu0 0.0
    %1378 = vmatpush1.msra.mxu0 0.0
    %1379 = vmatprep.subr.mxu0 0.0
    %1380 = vmatpush1.msra.mxu0 0.0
    %1381 = vmatprep.subr.mxu0 0.0
    %1382 = vmatpush1.msra.mxu0 0.0
    %1383 = vmatprep.subr.mxu0 0.0
    %1384 = vmatpush1.msra.mxu0 0.0
    %1385 = vmatprep.subr.mxu0 0.0
    %1386 = vmatpush1.msra.mxu0 0.0
    %1387 = vmatprep.subr.mxu0 0.0
    %1388 = vmatpush1.msra.mxu0 0.0
    %1389 = vmatprep.subr.mxu0 0.0
    %1390 = vmatpush1.msra.mxu0 0.0
    %1391 = vmatprep.subr.mxu0 0.0
    %1392 = vmatpush1.msra.mxu0 0.0
    %1393 = vmatprep.subr.mxu0 0.0
    %1394 = vmatpush1.msra.mxu0 0.0
    %1395 = vmatprep.subr.mxu0 0.0
    %1396 = vmatpush1.msra.mxu0 0.0
    %1397 = vmatprep.subr.mxu0 0.0
    %1398 = vmatpush1.msra.mxu0 0.0
    %1399 = vmatprep.mubr.f32.mxu0 0.0
    %1400 = vmatmul.mubr.f32.gmra.mrb[0].mxu0 %v1333
    %v1401 = vpop.f32.mrb[0].mxu0
    %v1402 = vadd.f32 %v87, %v1401
    %v1403 = vpop.f32.mrb[0].mxu0
    %1404 = vdwg.mxu0
    %v1405 = vtanh.pop %v1402
    %v1407 = vsel %vm97, %v1405, 0
    %1409 = vmatprep.subr.mxu0 0.0
    %1410 = vmatpush1.msra.mxu0 %v78
    %1411 = vmatprep.subr.mxu0 0.0
    %1412 = vmatpush1.msra.mxu0 %v79
    %1413 = vmatprep.subr.mxu0 0.0
    %1414 = vmatpush1.msra.mxu0 %v80
    %1415 = vmatprep.subr.mxu0 0.0
    %1416 = vmatpush1.msra.mxu0 %v81
    %1417 = vmatprep.subr.mxu0 0.0
    %1418 = vmatpush1.msra.mxu0 0.0
    %1419 = vmatprep.subr.mxu0 0.0
    %1420 = vmatpush1.msra.mxu0 0.0
    %1421 = vmatprep.subr.mxu0 0.0
    %1422 = vmatpush1.msra.mxu0 0.0
    %1423 = vmatprep.subr.mxu0 0.0
    %1424 = vmatpush1.msra.mxu0 0.0
    %1425 = vmatprep.subr.mxu0 0.0
    %1426 = vmatpush1.msra.mxu0 0.0
    %1427 = vmatprep.subr.mxu0 0.0
    %1428 = vmatpush1.msra.mxu0 0.0
    %1429 = vmatprep.subr.mxu0 0.0
    %1430 = vmatpush1.msra.mxu0 0.0
    %1431 = vmatprep.subr.mxu0 0.0
    %1432 = vmatpush1.msra.mxu0 0.0
    %1433 = vmatprep.subr.mxu0 0.0
    %1434 = vmatpush1.msra.mxu0 0.0
    %1435 = vmatprep.subr.mxu0 0.0
    %1436 = vmatpush1.msra.mxu0 0.0
    %1437 = vmatprep.subr.mxu0 0.0
    %1438 = vmatpush1.msra.mxu0 0.0
    %1439 = vmatprep.subr.mxu0 0.0
    %1440 = vmatpush1.msra.mxu0 0.0
    %1441 = vmatprep.subr.mxu0 0.0
    %1442 = vmatpush1.msra.mxu0 0.0
    %1443 = vmatprep.subr.mxu0 0.0
    %1444 = vmatpush1.msra.mxu0 0.0
    %1445 = vmatprep.subr.mxu0 0.0
    %1446 = vmatpush1.msra.mxu0 0.0
    %1447 = vmatprep.subr.mxu0 0.0
    %1448 = vmatpush1.msra.mxu0 0.0
    %1449 = vmatprep.subr.mxu0 0.0
    %1450 = vmatpush1.msra.mxu0 0.0
    %1451 = vmatprep.subr.mxu0 0.0
    %1452 = vmatpush1.msra.mxu0 0.0
    %1453 = vmatprep.subr.mxu0 0.0
    %1454 = vmatpush1.msra.mxu0 0.0
    %1455 = vmatprep.subr.mxu0 0.0
    %1456 = vmatpush1.msra.mxu0 0.0
    %1457 = vmatprep.subr.mxu0 0.0
    %1458 = vmatpush1.msra.mxu0 0.0
    %1459 = vmatprep.subr.mxu0 0.0
    %1460 = vmatpush1.msra.mxu0 0.0
    %1461 = vmatprep.subr.mxu0 0.0
    %1462 = vmatpush1.msra.mxu0 0.0
    %1463 = vmatprep.subr.mxu0 0.0
    %1464 = vmatpush1.msra.mxu0 0.0
    %1465 = vmatprep.subr.mxu0 0.0
    %1466 = vmatpush1.msra.mxu0 0.0
    %1467 = vmatprep.subr.mxu0 0.0
    %1468 = vmatpush1.msra.mxu0 0.0
    %1469 = vmatprep.subr.mxu0 0.0
    %1470 = vmatpush1.msra.mxu0 0.0
    %1471 = vmatprep.subr.mxu0 0.0
    %1472 = vmatpush1.msra.mxu0 0.0
    %1473 = vmatprep.mubr.f32.mxu0 0.0
    %1474 = vmatmul.mubr.f32.gmra.mrb[0].mxu0 %v1407
    %v1475 = vpop.f32.mrb[0].mxu0
    %v1476 = vadd.f32 %v94, %v1475
    %v1477 = vpop.f32.mrb[0].mxu0
    %1478 = vdwg.mxu0
    %v1479 = vstv %s1328
    %v1480 = vmul.f32 %v1479, %v1476
    %v1481 = vadd.f32 %v1322, %v1480
    %v1483 = vsel %vm97, %v1481, 0
    %1485 = vmatprep.subr.mxu0 0.0
    %1486 = vmatpush1.msra.mxu0 %v74
    %1487 = vmatprep.subr.mxu0 0.0
    %1488 = vmatpush1.msra.mxu0 %v75
    %1489 = vmatprep.subr.mxu0 0.0
    %1490 = vmatpush1.msra.mxu0 %v76
    %1491 = vmatprep.subr.mxu0 0.0
    %1492 = vmatpush1.msra.mxu0 %v77
    %1493 = vmatprep.subr.mxu0 0.0
    %1494 = vmatpush1.msra.mxu0 0.0
    %1495 = vmatprep.subr.mxu0 0.0
    %1496 = vmatpush1.msra.mxu0 0.0
    %1497 = vmatprep.subr.mxu0 0.0
    %1498 = vmatpush1.msra.mxu0 0.0
    %1499 = vmatprep.subr.mxu0 0.0
    %1500 = vmatpush1.msra.mxu0 0.0
    %1501 = vmatprep.subr.mxu0 0.0
    %1502 = vmatpush1.msra.mxu0 0.0
    %1503 = vmatprep.subr.mxu0 0.0
    %1504 = vmatpush1.msra.mxu0 0.0
    %1505 = vmatprep.subr.mxu0 0.0
    %1506 = vmatpush1.msra.mxu0 0.0
    %1507 = vmatprep.subr.mxu0 0.0
    %1508 = vmatpush1.msra.mxu0 0.0
    %1509 = vmatprep.subr.mxu0 0.0
    %1510 = vmatpush1.msra.mxu0 0.0
    %1511 = vmatprep.subr.mxu0 0.0
    %1512 = vmatpush1.msra.mxu0 0.0
    %1513 = vmatprep.subr.mxu0 0.0
    %1514 = vmatpush1.msra.mxu0 0.0
    %1515 = vmatprep.subr.mxu0 0.0
    %1516 = vmatpush1.msra.mxu0 0.0
    %1517 = vmatprep.subr.mxu0 0.0
    %1518 = vmatpush1.msra.mxu0 0.0
    %1519 = vmatprep.subr.mxu0 0.0
    %1520 = vmatpush1.msra.mxu0 0.0
    %1521 = vmatprep.subr.mxu0 0.0
    %1522 = vmatpush1.msra.mxu0 0.0
    %1523 = vmatprep.subr.mxu0 0.0
    %1524 = vmatpush1.msra.mxu0 0.0
    %1525 = vmatprep.subr.mxu0 0.0
    %1526 = vmatpush1.msra.mxu0 0.0
    %1527 = vmatprep.subr.mxu0 0.0
    %1528 = vmatpush1.msra.mxu0 0.0
    %1529 = vmatprep.subr.mxu0 0.0
    %1530 = vmatpush1.msra.mxu0 0.0
    %1531 = vmatprep.subr.mxu0 0.0
    %1532 = vmatpush1.msra.mxu0 0.0
    %1533 = vmatprep.subr.mxu0 0.0
    %1534 = vmatpush1.msra.mxu0 0.0
    %1535 = vmatprep.subr.mxu0 0.0
    %1536 = vmatpush1.msra.mxu0 0.0
    %1537 = vmatprep.subr.mxu0 0.0
    %1538 = vmatpush1.msra.mxu0 0.0
    %1539 = vmatprep.subr.mxu0 0.0
    %1540 = vmatpush1.msra.mxu0 0.0
    %1541 = vmatprep.subr.mxu0 0.0
    %1542 = vmatpush1.msra.mxu0 0.0
    %1543 = vmatprep.subr.mxu0 0.0
    %1544 = vmatpush1.msra.mxu0 0.0
    %1545 = vmatprep.subr.mxu0 0.0
    %1546 = vmatpush1.msra.mxu0 0.0
    %1547 = vmatprep.subr.mxu0 0.0
    %1548 = vmatpush1.msra.mxu0 0.0
    %1549 = vmatprep.mubr.f32.mxu0 0.0
    %1550 = vmatmul.mubr.f32.gmra.mrb[0].mxu0 %v1483
    %v1551 = vpop.f32.mrb[0].mxu0
    %v1552 = vadd.f32 %v87, %v1551
    %v1553 = vpop.f32.mrb[0].mxu0
    %1554 = vdwg.mxu0
    %v1555 = vtanh.pop %v1552
    %v1557 = vsel %vm97, %v1555, 0
    %1559 = vmatprep.subr.mxu0 0.0
    %1560 = vmatpush1.msra.mxu0 %v78
    %1561 = vmatprep.subr.mxu0 0.0
    %1562 = vmatpush1.msra.mxu0 %v79
    %1563 = vmatprep.subr.mxu0 0.0
    %1564 = vmatpush1.msra.mxu0 %v80
    %1565 = vmatprep.subr.mxu0 0.0
    %1566 = vmatpush1.msra.mxu0 %v81
    %1567 = vmatprep.subr.mxu0 0.0
    %1568 = vmatpush1.msra.mxu0 0.0
    %1569 = vmatprep.subr.mxu0 0.0
    %1570 = vmatpush1.msra.mxu0 0.0
    %1571 = vmatprep.subr.mxu0 0.0
    %1572 = vmatpush1.msra.mxu0 0.0
    %1573 = vmatprep.subr.mxu0 0.0
    %1574 = vmatpush1.msra.mxu0 0.0
    %1575 = vmatprep.subr.mxu0 0.0
    %1576 = vmatpush1.msra.mxu0 0.0
    %1577 = vmatprep.subr.mxu0 0.0
    %1578 = vmatpush1.msra.mxu0 0.0
    %1579 = vmatprep.subr.mxu0 0.0
    %1580 = vmatpush1.msra.mxu0 0.0
    %1581 = vmatprep.subr.mxu0 0.0
    %1582 = vmatpush1.msra.mxu0 0.0
    %1583 = vmatprep.subr.mxu0 0.0
    %1584 = vmatpush1.msra.mxu0 0.0
    %1585 = vmatprep.subr.mxu0 0.0
    %1586 = vmatpush1.msra.mxu0 0.0
    %1587 = vmatprep.subr.mxu0 0.0
    %1588 = vmatpush1.msra.mxu0 0.0
    %1589 = vmatprep.subr.mxu0 0.0
    %1590 = vmatpush1.msra.mxu0 0.0
    %1591 = vmatprep.subr.mxu0 0.0
    %1592 = vmatpush1.msra.mxu0 0.0
    %1593 = vmatprep.subr.mxu0 0.0
    %1594 = vmatpush1.msra.mxu0 0.0
    %1595 = vmatprep.subr.mxu0 0.0
    %1596 = vmatpush1.msra.mxu0 0.0
    %1597 = vmatprep.subr.mxu0 0.0
    %1598 = vmatpush1.msra.mxu0 0.0
    %1599 = vmatprep.subr.mxu0 0.0
    %1600 = vmatpush1.msra.mxu0 0.0
    %1601 = vmatprep.subr.mxu0 0.0
    %1602 = vmatpush1.msra.mxu0 0.0
    %1603 = vmatprep.subr.mxu0 0.0
    %1604 = vmatpush1.msra.mxu0 0.0
    %1605 = vmatprep.subr.mxu0 0.0
    %1606 = vmatpush1.msra.mxu0 0.0
    %1607 = vmatprep.subr.mxu0 0.0
    %1608 = vmatpush1.msra.mxu0 0.0
    %1609 = vmatprep.subr.mxu0 0.0
    %1610 = vmatpush1.msra.mxu0 0.0
    %1611 = vmatprep.subr.mxu0 0.0
    %1612 = vmatpush1.msra.mxu0 0.0
    %1613 = vmatprep.subr.mxu0 0.0
    %1614 = vmatpush1.msra.mxu0 0.0
    %1615 = vmatprep.subr.mxu0 0.0
    %1616 = vmatpush1.msra.mxu0 0.0
    %1617 = vmatprep.subr.mxu0 0.0
    %1618 = vmatpush1.msra.mxu0 0.0
    %1619 = vmatprep.subr.mxu0 0.0
    %1620 = vmatpush1.msra.mxu0 0.0
    %1621 = vmatprep.subr.mxu0 0.0
    %1622 = vmatpush1.msra.mxu0 0.0
    %1623 = vmatprep.mubr.f32.mxu0 0.0
    %1624 = vmatmul.mubr.f32.gmra.mrb[0].mxu0 %v1557
    %v1625 = vpop.f32.mrb[0].mxu0
    %v1626 = vadd.f32 %v94, %v1625
    %v1627 = vpop.f32.mrb[0].mxu0
    %1628 = vdwg.mxu0
    %v1629 = vmul.f32 %v1479, %v1626
    %v1630 = vadd.f32 %v1322, %v1629
    %v1632 = vsel %vm97, %v1630, 0
    %1634 = vmatprep.subr.mxu0 0.0
    %1635 = vmatpush1.msra.mxu0 %v74
    %1636 = vmatprep.subr.mxu0 0.0
    %1637 = vmatpush1.msra.mxu0 %v75
    %1638 = vmatprep.subr.mxu0 0.0
    %1639 = vmatpush1.msra.mxu0 %v76
    %1640 = vmatprep.subr.mxu0 0.0
    %1641 = vmatpush1.msra.mxu0 %v77
    %1642 = vmatprep.subr.mxu0 0.0
    %1643 = vmatpush1.msra.mxu0 0.0
    %1644 = vmatprep.subr.mxu0 0.0
    %1645 = vmatpush1.msra.mxu0 0.0
    %1646 = vmatprep.subr.mxu0 0.0
    %1647 = vmatpush1.msra.mxu0 0.0
    %1648 = vmatprep.subr.mxu0 0.0
    %1649 = vmatpush1.msra.mxu0 0.0
    %1650 = vmatprep.subr.mxu0 0.0
    %1651 = vmatpush1.msra.mxu0 0.0
    %1652 = vmatprep.subr.mxu0 0.0
    %1653 = vmatpush1.msra.mxu0 0.0
    %1654 = vmatprep.subr.mxu0 0.0
    %1655 = vmatpush1.msra.mxu0 0.0
    %1656 = vmatprep.subr.mxu0 0.0
    %1657 = vmatpush1.msra.mxu0 0.0
    %1658 = vmatprep.subr.mxu0 0.0
    %1659 = vmatpush1.msra.mxu0 0.0
    %1660 = vmatprep.subr.mxu0 0.0
    %1661 = vmatpush1.msra.mxu0 0.0
    %1662 = vmatprep.subr.mxu0 0.0
    %1663 = vmatpush1.msra.mxu0 0.0
    %1664 = vmatprep.subr.mxu0 0.0
    %1665 = vmatpush1.msra.mxu0 0.0
    %1666 = vmatprep.subr.mxu0 0.0
    %1667 = vmatpush1.msra.mxu0 0.0
    %1668 = vmatprep.subr.mxu0 0.0
    %1669 = vmatpush1.msra.mxu0 0.0
    %1670 = vmatprep.subr.mxu0 0.0
    %1671 = vmatpush1.msra.mxu0 0.0
    %1672 = vmatprep.subr.mxu0 0.0
    %1673 = vmatpush1.msra.mxu0 0.0
    %1674 = vmatprep.subr.mxu0 0.0
    %1675 = vmatpush1.msra.mxu0 0.0
    %1676 = vmatprep.subr.mxu0 0.0
    %1677 = vmatpush1.msra.mxu0 0.0
    %1678 = vmatprep.subr.mxu0 0.0
    %1679 = vmatpush1.msra.mxu0 0.0
    %1680 = vmatprep.subr.mxu0 0.0
    %1681 = vmatpush1.msra.mxu0 0.0
    %1682 = vmatprep.subr.mxu0 0.0
    %1683 = vmatpush1.msra.mxu0 0.0
    %1684 = vmatprep.subr.mxu0 0.0
    %1685 = vmatpush1.msra.mxu0 0.0
    %1686 = vmatprep.subr.mxu0 0.0
    %1687 = vmatpush1.msra.mxu0 0.0
    %1688 = vmatprep.subr.mxu0 0.0
    %1689 = vmatpush1.msra.mxu0 0.0
    %1690 = vmatprep.subr.mxu0 0.0
    %1691 = vmatpush1.msra.mxu0 0.0
    %1692 = vmatprep.subr.mxu0 0.0
    %1693 = vmatpush1.msra.mxu0 0.0
    %1694 = vmatprep.subr.mxu0 0.0
    %1695 = vmatpush1.msra.mxu0 0.0
    %1696 = vmatprep.subr.mxu0 0.0
    %1697 = vmatpush1.msra.mxu0 0.0
    %1698 = vmatprep.mubr.f32.mxu0 0.0
    %1699 = vmatmul.mubr.f32.gmra.mrb[0].mxu0 %v1632
    %v1700 = vpop.f32.mrb[0].mxu0
    %v1701 = vadd.f32 %v87, %v1700
    %v1702 = vpop.f32.mrb[0].mxu0
    %1703 = vdwg.mxu0
    %v1704 = vtanh.pop %v1701
    %v1706 = vsel %vm97, %v1704, 0
    %1708 = vmatprep.subr.mxu0 0.0
    %1709 = vmatpush1.msra.mxu0 %v78
    %1710 = vmatprep.subr.mxu0 0.0
    %1711 = vmatpush1.msra.mxu0 %v79
    %1712 = vmatprep.subr.mxu0 0.0
    %1713 = vmatpush1.msra.mxu0 %v80
    %1714 = vmatprep.subr.mxu0 0.0
    %1715 = vmatpush1.msra.mxu0 %v81
    %1716 = vmatprep.subr.mxu0 0.0
    %1717 = vmatpush1.msra.mxu0 0.0
    %1718 = vmatprep.subr.mxu0 0.0
    %1719 = vmatpush1.msra.mxu0 0.0
    %1720 = vmatprep.subr.mxu0 0.0
    %1721 = vmatpush1.msra.mxu0 0.0
    %1722 = vmatprep.subr.mxu0 0.0
    %1723 = vmatpush1.msra.mxu0 0.0
    %1724 = vmatprep.subr.mxu0 0.0
    %1725 = vmatpush1.msra.mxu0 0.0
    %1726 = vmatprep.subr.mxu0 0.0
    %1727 = vmatpush1.msra.mxu0 0.0
    %1728 = vmatprep.subr.mxu0 0.0
    %1729 = vmatpush1.msra.mxu0 0.0
    %1730 = vmatprep.subr.mxu0 0.0
    %1731 = vmatpush1.msra.mxu0 0.0
    %1732 = vmatprep.subr.mxu0 0.0
    %1733 = vmatpush1.msra.mxu0 0.0
    %1734 = vmatprep.subr.mxu0 0.0
    %1735 = vmatpush1.msra.mxu0 0.0
    %1736 = vmatprep.subr.mxu0 0.0
    %1737 = vmatpush1.msra.mxu0 0.0
    %1738 = vmatprep.subr.mxu0 0.0
    %1739 = vmatpush1.msra.mxu0 0.0
    %1740 = vmatprep.subr.mxu0 0.0
    %1741 = vmatpush1.msra.mxu0 0.0
    %1742 = vmatprep.subr.mxu0 0.0
    %1743 = vmatpush1.msra.mxu0 0.0
    %1744 = vmatprep.subr.mxu0 0.0
    %1745 = vmatpush1.msra.mxu0 0.0
    %1746 = vmatprep.subr.mxu0 0.0
    %1747 = vmatpush1.msra.mxu0 0.0
    %1748 = vmatprep.subr.mxu0 0.0
    %1749 = vmatpush1.msra.mxu0 0.0
    %1750 = vmatprep.subr.mxu0 0.0
    %1751 = vmatpush1.msra.mxu0 0.0
    %1752 = vmatprep.subr.mxu0 0.0
    %1753 = vmatpush1.msra.mxu0 0.0
    %1754 = vmatprep.subr.mxu0 0.0
    %1755 = vmatpush1.msra.mxu0 0.0
    %1756 = vmatprep.subr.mxu0 0.0
    %1757 = vmatpush1.msra.mxu0 0.0
    %1758 = vmatprep.subr.mxu0 0.0
    %1759 = vmatpush1.msra.mxu0 0.0
    %1760 = vmatprep.subr.mxu0 0.0
    %1761 = vmatpush1.msra.mxu0 0.0
    %1762 = vmatprep.subr.mxu0 0.0
    %1763 = vmatpush1.msra.mxu0 0.0
    %1764 = vmatprep.subr.mxu0 0.0
    %1765 = vmatpush1.msra.mxu0 0.0
    %1766 = vmatprep.subr.mxu0 0.0
    %1767 = vmatpush1.msra.mxu0 0.0
    %1768 = vmatprep.subr.mxu0 0.0
    %1769 = vmatpush1.msra.mxu0 0.0
    %1770 = vmatprep.subr.mxu0 0.0
    %1771 = vmatpush1.msra.mxu0 0.0
    %1772 = vmatprep.mubr.f32.mxu0 0.0
    %1773 = vmatmul.mubr.f32.gmra.mrb[0].mxu0 %v1706
    %v1774 = vpop.f32.mrb[0].mxu0
    %v1775 = vadd.f32 %v94, %v1774
    %v1776 = vpop.f32.mrb[0].mxu0
    %1777 = vdwg.mxu0
    %v1778 = vstv %s1327
    %v1779 = vmul.f32 %v1778, %v1775
    %v1780 = vadd.f32 %v1322, %v1779
    %v1782 = vsel %vm97, %v1780, 0
    %1784 = vmatprep.subr.mxu0 0.0
    %1785 = vmatpush1.msra.mxu0 %v74
    %1786 = vmatprep.subr.mxu0 0.0
    %1787 = vmatpush1.msra.mxu0 %v75
    %1788 = vmatprep.subr.mxu0 0.0
    %1789 = vmatpush1.msra.mxu0 %v76
    %1790 = vmatprep.subr.mxu0 0.0
    %1791 = vmatpush1.msra.mxu0 %v77
    %1792 = vmatprep.subr.mxu0 0.0
    %1793 = vmatpush1.msra.mxu0 0.0
    %1794 = vmatprep.subr.mxu0 0.0
    %1795 = vmatpush1.msra.mxu0 0.0
    %1796 = vmatprep.subr.mxu0 0.0
    %1797 = vmatpush1.msra.mxu0 0.0
    %1798 = vmatprep.subr.mxu0 0.0
    %1799 = vmatpush1.msra.mxu0 0.0
    %1800 = vmatprep.subr.mxu0 0.0
    %1801 = vmatpush1.msra.mxu0 0.0
    %1802 = vmatprep.subr.mxu0 0.0
    %1803 = vmatpush1.msra.mxu0 0.0
    %1804 = vmatprep.subr.mxu0 0.0
    %1805 = vmatpush1.msra.mxu0 0.0
    %1806 = vmatprep.subr.mxu0 0.0
    %1807 = vmatpush1.msra.mxu0 0.0
    %1808 = vmatprep.subr.mxu0 0.0
    %1809 = vmatpush1.msra.mxu0 0.0
    %1810 = vmatprep.subr.mxu0 0.0
    %1811 = vmatpush1.msra.mxu0 0.0
    %1812 = vmatprep.subr.mxu0 0.0
    %1813 = vmatpush1.msra.mxu0 0.0
    %1814 = vmatprep.subr.mxu0 0.0
    %1815 = vmatpush1.msra.mxu0 0.0
    %1816 = vmatprep.subr.mxu0 0.0
    %1817 = vmatpush1.msra.mxu0 0.0
    %1818 = vmatprep.subr.mxu0 0.0
    %1819 = vmatpush1.msra.mxu0 0.0
    %1820 = vmatprep.subr.mxu0 0.0
    %1821 = vmatpush1.msra.mxu0 0.0
    %1822 = vmatprep.subr.mxu0 0.0
    %1823 = vmatpush1.msra.mxu0 0.0
    %1824 = vmatprep.subr.mxu0 0.0
    %1825 = vmatpush1.msra.mxu0 0.0
    %1826 = vmatprep.subr.mxu0 0.0
    %1827 = vmatpush1.msra.mxu0 0.0
    %1828 = vmatprep.subr.mxu0 0.0
    %1829 = vmatpush1.msra.mxu0 0.0
    %1830 = vmatprep.subr.mxu0 0.0
    %1831 = vmatpush1.msra.mxu0 0.0
    %1832 = vmatprep.subr.mxu0 0.0
    %1833 = vmatpush1.msra.mxu0 0.0
    %1834 = vmatprep.subr.mxu0 0.0
    %1835 = vmatpush1.msra.mxu0 0.0
    %1836 = vmatprep.subr.mxu0 0.0
    %1837 = vmatpush1.msra.mxu0 0.0
    %1838 = vmatprep.subr.mxu0 0.0
    %1839 = vmatpush1.msra.mxu0 0.0
    %1840 = vmatprep.subr.mxu0 0.0
    %1841 = vmatpush1.msra.mxu0 0.0
    %1842 = vmatprep.subr.mxu0 0.0
    %1843 = vmatpush1.msra.mxu0 0.0
    %1844 = vmatprep.subr.mxu0 0.0
    %1845 = vmatpush1.msra.mxu0 0.0
    %1846 = vmatprep.subr.mxu0 0.0
    %1847 = vmatpush1.msra.mxu0 0.0
    %1848 = vmatprep.mubr.f32.mxu0 0.0
    %1849 = vmatmul.mubr.f32.gmra.mrb[0].mxu0 %v1782
    %v1850 = vpop.f32.mrb[0].mxu0
    %v1851 = vadd.f32 %v87, %v1850
    %v1852 = vpop.f32.mrb[0].mxu0
    %1853 = vdwg.mxu0
    %v1854 = vtanh.pop %v1851
    %v1856 = vsel %vm97, %v1854, 0
    %1858 = vmatprep.subr.mxu0 0.0
    %1859 = vmatpush1.msra.mxu0 %v78
    %1860 = vmatprep.subr.mxu0 0.0
    %1861 = vmatpush1.msra.mxu0 %v79
    %1862 = vmatprep.subr.mxu0 0.0
    %1863 = vmatpush1.msra.mxu0 %v80
    %1864 = vmatprep.subr.mxu0 0.0
    %1865 = vmatpush1.msra.mxu0 %v81
    %1866 = vmatprep.subr.mxu0 0.0
    %1867 = vmatpush1.msra.mxu0 0.0
    %1868 = vmatprep.subr.mxu0 0.0
    %1869 = vmatpush1.msra.mxu0 0.0
    %1870 = vmatprep.subr.mxu0 0.0
    %1871 = vmatpush1.msra.mxu0 0.0
    %1872 = vmatprep.subr.mxu0 0.0
    %1873 = vmatpush1.msra.mxu0 0.0
    %1874 = vmatprep.subr.mxu0 0.0
    %1875 = vmatpush1.msra.mxu0 0.0
    %1876 = vmatprep.subr.mxu0 0.0
    %1877 = vmatpush1.msra.mxu0 0.0
    %1878 = vmatprep.subr.mxu0 0.0
    %1879 = vmatpush1.msra.mxu0 0.0
    %1880 = vmatprep.subr.mxu0 0.0
    %1881 = vmatpush1.msra.mxu0 0.0
    %1882 = vmatprep.subr.mxu0 0.0
    %1883 = vmatpush1.msra.mxu0 0.0
    %1884 = vmatprep.subr.mxu0 0.0
    %1885 = vmatpush1.msra.mxu0 0.0
    %1886 = vmatprep.subr.mxu0 0.0
    %1887 = vmatpush1.msra.mxu0 0.0
    %1888 = vmatprep.subr.mxu0 0.0
    %1889 = vmatpush1.msra.mxu0 0.0
    %1890 = vmatprep.subr.mxu0 0.0
    %1891 = vmatpush1.msra.mxu0 0.0
    %1892 = vmatprep.subr.mxu0 0.0
    %1893 = vmatpush1.msra.mxu0 0.0
    %1894 = vmatprep.subr.mxu0 0.0
    %1895 = vmatpush1.msra.mxu0 0.0
    %1896 = vmatprep.subr.mxu0 0.0
    %1897 = vmatpush1.msra.mxu0 0.0
    %1898 = vmatprep.subr.mxu0 0.0
    %1899 = vmatpush1.msra.mxu0 0.0
    %1900 = vmatprep.subr.mxu0 0.0
    %1901 = vmatpush1.msra.mxu0 0.0
    %1902 = vmatprep.subr.mxu0 0.0
    %1903 = vmatpush1.msra.mxu0 0.0
    %1904 = vmatprep.subr.mxu0 0.0
    %1905 = vmatpush1.msra.mxu0 0.0
    %1906 = vmatprep.subr.mxu0 0.0
    %1907 = vmatpush1.msra.mxu0 0.0
    %1908 = vmatprep.subr.mxu0 0.0
    %1909 = vmatpush1.msra.mxu0 0.0
    %1910 = vmatprep.subr.mxu0 0.0
    %1911 = vmatpush1.msra.mxu0 0.0
    %1912 = vmatprep.subr.mxu0 0.0
    %1913 = vmatpush1.msra.mxu0 0.0
    %1914 = vmatprep.subr.mxu0 0.0
    %1915 = vmatpush1.msra.mxu0 0.0
    %1916 = vmatprep.subr.mxu0 0.0
    %1917 = vmatpush1.msra.mxu0 0.0
    %1918 = vmatprep.subr.mxu0 0.0
    %1919 = vmatpush1.msra.mxu0 0.0
    %1920 = vmatprep.subr.mxu0 0.0
    %1921 = vmatpush1.msra.mxu0 0.0
    %1922 = vmatprep.mubr.f32.mxu0 0.0
    %1923 = vmatmul.mubr.f32.gmra.mrb[0].mxu0 %v1856
    %v1924 = vpop.f32.mrb[0].mxu0
    %v1925 = vadd.f32 %v94, %v1924
    %v1926 = vpop.f32.mrb[0].mxu0
    %1927 = vdwg.mxu0
    %v1928 = vmul.f32 %v1626, 2.0
    %v1929 = vadd.f32 %v1476, %v1928
    %v1930 = vmul.f32 %v1775, 2.0
    %v1931 = vadd.f32 %v1929, %v1930
    %v1932 = vadd.f32 %v1931, %v1925
    %v1933 = vstv %s1331
    %v1934 = vmul.f32 %v1933, %v1932
    %v1935 = vadd.f32 %v1322, %v1934
    %s1936 = scalar_lea.vmem [#allocation10], 24
    %1937 = vst.msk [vmem:[%s1936] sm:$0xff] %vm97, %v1935
    %s1938 = sld [smem:[#allocation2 + $0x4]]
    %s1939 = sld [smem:[#allocation2 + $0x3]]
    %s1940 = ssub.f32 %s1938, %s1939
    %s1941 = smul.f32 %s1940, 0.5
    %v1942 = vrcp.pop 6.0
    %s1943 = vtos %v1942
    %s1944 = smul.f32 %s1940, %s1943
    %v1946 = vsel %vm97, %v1935, 0
    %1948 = vmatprep.subr.mxu0 0.0
    %1949 = vmatpush1.msra.mxu0 %v74
    %1950 = vmatprep.subr.mxu0 0.0
    %1951 = vmatpush1.msra.mxu0 %v75
    %1952 = vmatprep.subr.mxu0 0.0
    %1953 = vmatpush1.msra.mxu0 %v76
    %1954 = vmatprep.subr.mxu0 0.0
    %1955 = vmatpush1.msra.mxu0 %v77
    %1956 = vmatprep.subr.mxu0 0.0
    %1957 = vmatpush1.msra.mxu0 0.0
    %1958 = vmatprep.subr.mxu0 0.0
    %1959 = vmatpush1.msra.mxu0 0.0
    %1960 = vmatprep.subr.mxu0 0.0
    %1961 = vmatpush1.msra.mxu0 0.0
    %1962 = vmatprep.subr.mxu0 0.0
    %1963 = vmatpush1.msra.mxu0 0.0
    %1964 = vmatprep.subr.mxu0 0.0
    %1965 = vmatpush1.msra.mxu0 0.0
    %1966 = vmatprep.subr.mxu0 0.0
    %1967 = vmatpush1.msra.mxu0 0.0
    %1968 = vmatprep.subr.mxu0 0.0
    %1969 = vmatpush1.msra.mxu0 0.0
    %1970 = vmatprep.subr.mxu0 0.0
    %1971 = vmatpush1.msra.mxu0 0.0
    %1972 = vmatprep.subr.mxu0 0.0
    %1973 = vmatpush1.msra.mxu0 0.0
    %1974 = vmatprep.subr.mxu0 0.0
    %1975 = vmatpush1.msra.mxu0 0.0
    %1976 = vmatprep.subr.mxu0 0.0
    %1977 = vmatpush1.msra.mxu0 0.0
    %1978 = vmatprep.subr.mxu0 0.0
    %1979 = vmatpush1.msra.mxu0 0.0
    %1980 = vmatprep.subr.mxu0 0.0
    %1981 = vmatpush1.msra.mxu0 0.0
    %1982 = vmatprep.subr.mxu0 0.0
    %1983 = vmatpush1.msra.mxu0 0.0
    %1984 = vmatprep.subr.mxu0 0.0
    %1985 = vmatpush1.msra.mxu0 0.0
    %1986 = vmatprep.subr.mxu0 0.0
    %1987 = vmatpush1.msra.mxu0 0.0
    %1988 = vmatprep.subr.mxu0 0.0
    %1989 = vmatpush1.msra.mxu0 0.0
    %1990 = vmatprep.subr.mxu0 0.0
    %1991 = vmatpush1.msra.mxu0 0.0
    %1992 = vmatprep.subr.mxu0 0.0
    %1993 = vmatpush1.msra.mxu0 0.0
    %1994 = vmatprep.subr.mxu0 0.0
    %1995 = vmatpush1.msra.mxu0 0.0
    %1996 = vmatprep.subr.mxu0 0.0
    %1997 = vmatpush1.msra.mxu0 0.0
    %1998 = vmatprep.subr.mxu0 0.0
    %1999 = vmatpush1.msra.mxu0 0.0
    %2000 = vmatprep.subr.mxu0 0.0
    %2001 = vmatpush1.msra.mxu0 0.0
    %2002 = vmatprep.subr.mxu0 0.0
    %2003 = vmatpush1.msra.mxu0 0.0
    %2004 = vmatprep.subr.mxu0 0.0
    %2005 = vmatpush1.msra.mxu0 0.0
    %2006 = vmatprep.subr.mxu0 0.0
    %2007 = vmatpush1.msra.mxu0 0.0
    %2008 = vmatprep.subr.mxu0 0.0
    %2009 = vmatpush1.msra.mxu0 0.0
    %2010 = vmatprep.subr.mxu0 0.0
    %2011 = vmatpush1.msra.mxu0 0.0
    %2012 = vmatprep.mubr.f32.mxu0 0.0
    %2013 = vmatmul.mubr.f32.gmra.mrb[0].mxu0 %v1946
    %v2014 = vpop.f32.mrb[0].mxu0
    %v2015 = vadd.f32 %v87, %v2014
    %v2016 = vpop.f32.mrb[0].mxu0
    %2017 = vdwg.mxu0
    %v2018 = vtanh.pop %v2015
    %v2020 = vsel %vm97, %v2018, 0
    %2022 = vmatprep.subr.mxu0 0.0
    %2023 = vmatpush1.msra.mxu0 %v78
    %2024 = vmatprep.subr.mxu0 0.0
    %2025 = vmatpush1.msra.mxu0 %v79
    %2026 = vmatprep.subr.mxu0 0.0
    %2027 = vmatpush1.msra.mxu0 %v80
    %2028 = vmatprep.subr.mxu0 0.0
    %2029 = vmatpush1.msra.mxu0 %v81
    %2030 = vmatprep.subr.mxu0 0.0
    %2031 = vmatpush1.msra.mxu0 0.0
    %2032 = vmatprep.subr.mxu0 0.0
    %2033 = vmatpush1.msra.mxu0 0.0
    %2034 = vmatprep.subr.mxu0 0.0
    %2035 = vmatpush1.msra.mxu0 0.0
    %2036 = vmatprep.subr.mxu0 0.0
    %2037 = vmatpush1.msra.mxu0 0.0
    %2038 = vmatprep.subr.mxu0 0.0
    %2039 = vmatpush1.msra.mxu0 0.0
    %2040 = vmatprep.subr.mxu0 0.0
    %2041 = vmatpush1.msra.mxu0 0.0
    %2042 = vmatprep.subr.mxu0 0.0
    %2043 = vmatpush1.msra.mxu0 0.0
    %2044 = vmatprep.subr.mxu0 0.0
    %2045 = vmatpush1.msra.mxu0 0.0
    %2046 = vmatprep.subr.mxu0 0.0
    %2047 = vmatpush1.msra.mxu0 0.0
    %2048 = vmatprep.subr.mxu0 0.0
    %2049 = vmatpush1.msra.mxu0 0.0
    %2050 = vmatprep.subr.mxu0 0.0
    %2051 = vmatpush1.msra.mxu0 0.0
    %2052 = vmatprep.subr.mxu0 0.0
    %2053 = vmatpush1.msra.mxu0 0.0
    %2054 = vmatprep.subr.mxu0 0.0
    %2055 = vmatpush1.msra.mxu0 0.0
    %2056 = vmatprep.subr.mxu0 0.0
    %2057 = vmatpush1.msra.mxu0 0.0
    %2058 = vmatprep.subr.mxu0 0.0
    %2059 = vmatpush1.msra.mxu0 0.0
    %2060 = vmatprep.subr.mxu0 0.0
    %2061 = vmatpush1.msra.mxu0 0.0
    %2062 = vmatprep.subr.mxu0 0.0
    %2063 = vmatpush1.msra.mxu0 0.0
    %2064 = vmatprep.subr.mxu0 0.0
    %2065 = vmatpush1.msra.mxu0 0.0
    %2066 = vmatprep.subr.mxu0 0.0
    %2067 = vmatpush1.msra.mxu0 0.0
    %2068 = vmatprep.subr.mxu0 0.0
    %2069 = vmatpush1.msra.mxu0 0.0
    %2070 = vmatprep.subr.mxu0 0.0
    %2071 = vmatpush1.msra.mxu0 0.0
    %2072 = vmatprep.subr.mxu0 0.0
    %2073 = vmatpush1.msra.mxu0 0.0
    %2074 = vmatprep.subr.mxu0 0.0
    %2075 = vmatpush1.msra.mxu0 0.0
    %2076 = vmatprep.subr.mxu0 0.0
    %2077 = vmatpush1.msra.mxu0 0.0
    %2078 = vmatprep.subr.mxu0 0.0
    %2079 = vmatpush1.msra.mxu0 0.0
    %2080 = vmatprep.subr.mxu0 0.0
    %2081 = vmatpush1.msra.mxu0 0.0
    %2082 = vmatprep.subr.mxu0 0.0
    %2083 = vmatpush1.msra.mxu0 0.0
    %2084 = vmatprep.subr.mxu0 0.0
    %2085 = vmatpush1.msra.mxu0 0.0
    %2086 = vmatprep.mubr.f32.mxu0 0.0
    %2087 = vmatmul.mubr.f32.gmra.mrb[0].mxu0 %v2020
    %v2088 = vpop.f32.mrb[0].mxu0
    %v2089 = vadd.f32 %v94, %v2088
    %v2090 = vpop.f32.mrb[0].mxu0
    %2091 = vdwg.mxu0
    %v2092 = vstv %s1941
    %v2093 = vmul.f32 %v2092, %v2089
    %v2094 = vadd.f32 %v1935, %v2093
    %v2096 = vsel %vm97, %v2094, 0
    %2098 = vmatprep.subr.mxu0 0.0
    %2099 = vmatpush1.msra.mxu0 %v74
    %2100 = vmatprep.subr.mxu0 0.0
    %2101 = vmatpush1.msra.mxu0 %v75
    %2102 = vmatprep.subr.mxu0 0.0
    %2103 = vmatpush1.msra.mxu0 %v76
    %2104 = vmatprep.subr.mxu0 0.0
    %2105 = vmatpush1.msra.mxu0 %v77
    %2106 = vmatprep.subr.mxu0 0.0
    %2107 = vmatpush1.msra.mxu0 0.0
    %2108 = vmatprep.subr.mxu0 0.0
    %2109 = vmatpush1.msra.mxu0 0.0
    %2110 = vmatprep.subr.mxu0 0.0
    %2111 = vmatpush1.msra.mxu0 0.0
    %2112 = vmatprep.subr.mxu0 0.0
    %2113 = vmatpush1.msra.mxu0 0.0
    %2114 = vmatprep.subr.mxu0 0.0
    %2115 = vmatpush1.msra.mxu0 0.0
    %2116 = vmatprep.subr.mxu0 0.0
    %2117 = vmatpush1.msra.mxu0 0.0
    %2118 = vmatprep.subr.mxu0 0.0
    %2119 = vmatpush1.msra.mxu0 0.0
    %2120 = vmatprep.subr.mxu0 0.0
    %2121 = vmatpush1.msra.mxu0 0.0
    %2122 = vmatprep.subr.mxu0 0.0
    %2123 = vmatpush1.msra.mxu0 0.0
    %2124 = vmatprep.subr.mxu0 0.0
    %2125 = vmatpush1.msra.mxu0 0.0
    %2126 = vmatprep.subr.mxu0 0.0
    %2127 = vmatpush1.msra.mxu0 0.0
    %2128 = vmatprep.subr.mxu0 0.0
    %2129 = vmatpush1.msra.mxu0 0.0
    %2130 = vmatprep.subr.mxu0 0.0
    %2131 = vmatpush1.msra.mxu0 0.0
    %2132 = vmatprep.subr.mxu0 0.0
    %2133 = vmatpush1.msra.mxu0 0.0
    %2134 = vmatprep.subr.mxu0 0.0
    %2135 = vmatpush1.msra.mxu0 0.0
    %2136 = vmatprep.subr.mxu0 0.0
    %2137 = vmatpush1.msra.mxu0 0.0
    %2138 = vmatprep.subr.mxu0 0.0
    %2139 = vmatpush1.msra.mxu0 0.0
    %2140 = vmatprep.subr.mxu0 0.0
    %2141 = vmatpush1.msra.mxu0 0.0
    %2142 = vmatprep.subr.mxu0 0.0
    %2143 = vmatpush1.msra.mxu0 0.0
    %2144 = vmatprep.subr.mxu0 0.0
    %2145 = vmatpush1.msra.mxu0 0.0
    %2146 = vmatprep.subr.mxu0 0.0
    %2147 = vmatpush1.msra.mxu0 0.0
    %2148 = vmatprep.subr.mxu0 0.0
    %2149 = vmatpush1.msra.mxu0 0.0
    %2150 = vmatprep.subr.mxu0 0.0
    %2151 = vmatpush1.msra.mxu0 0.0
    %2152 = vmatprep.subr.mxu0 0.0
    %2153 = vmatpush1.msra.mxu0 0.0
    %2154 = vmatprep.subr.mxu0 0.0
    %2155 = vmatpush1.msra.mxu0 0.0
    %2156 = vmatprep.subr.mxu0 0.0
    %2157 = vmatpush1.msra.mxu0 0.0
    %2158 = vmatprep.subr.mxu0 0.0
    %2159 = vmatpush1.msra.mxu0 0.0
    %2160 = vmatprep.subr.mxu0 0.0
    %2161 = vmatpush1.msra.mxu0 0.0
    %2162 = vmatprep.mubr.f32.mxu0 0.0
    %2163 = vmatmul.mubr.f32.gmra.mrb[0].mxu0 %v2096
    %v2164 = vpop.f32.mrb[0].mxu0
    %v2165 = vadd.f32 %v87, %v2164
    %v2166 = vpop.f32.mrb[0].mxu0
    %2167 = vdwg.mxu0
    %v2168 = vtanh.pop %v2165
    %v2170 = vsel %vm97, %v2168, 0
    %2172 = vmatprep.subr.mxu0 0.0
    %2173 = vmatpush1.msra.mxu0 %v78
    %2174 = vmatprep.subr.mxu0 0.0
    %2175 = vmatpush1.msra.mxu0 %v79
    %2176 = vmatprep.subr.mxu0 0.0
    %2177 = vmatpush1.msra.mxu0 %v80
    %2178 = vmatprep.subr.mxu0 0.0
    %2179 = vmatpush1.msra.mxu0 %v81
    %2180 = vmatprep.subr.mxu0 0.0
    %2181 = vmatpush1.msra.mxu0 0.0
    %2182 = vmatprep.subr.mxu0 0.0
    %2183 = vmatpush1.msra.mxu0 0.0
    %2184 = vmatprep.subr.mxu0 0.0
    %2185 = vmatpush1.msra.mxu0 0.0
    %2186 = vmatprep.subr.mxu0 0.0
    %2187 = vmatpush1.msra.mxu0 0.0
    %2188 = vmatprep.subr.mxu0 0.0
    %2189 = vmatpush1.msra.mxu0 0.0
    %2190 = vmatprep.subr.mxu0 0.0
    %2191 = vmatpush1.msra.mxu0 0.0
    %2192 = vmatprep.subr.mxu0 0.0
    %2193 = vmatpush1.msra.mxu0 0.0
    %2194 = vmatprep.subr.mxu0 0.0
    %2195 = vmatpush1.msra.mxu0 0.0
    %2196 = vmatprep.subr.mxu0 0.0
    %2197 = vmatpush1.msra.mxu0 0.0
    %2198 = vmatprep.subr.mxu0 0.0
    %2199 = vmatpush1.msra.mxu0 0.0
    %2200 = vmatprep.subr.mxu0 0.0
    %2201 = vmatpush1.msra.mxu0 0.0
    %2202 = vmatprep.subr.mxu0 0.0
    %2203 = vmatpush1.msra.mxu0 0.0
    %2204 = vmatprep.subr.mxu0 0.0
    %2205 = vmatpush1.msra.mxu0 0.0
    %2206 = vmatprep.subr.mxu0 0.0
    %2207 = vmatpush1.msra.mxu0 0.0
    %2208 = vmatprep.subr.mxu0 0.0
    %2209 = vmatpush1.msra.mxu0 0.0
    %2210 = vmatprep.subr.mxu0 0.0
    %2211 = vmatpush1.msra.mxu0 0.0
    %2212 = vmatprep.subr.mxu0 0.0
    %2213 = vmatpush1.msra.mxu0 0.0
    %2214 = vmatprep.subr.mxu0 0.0
    %2215 = vmatpush1.msra.mxu0 0.0
    %2216 = vmatprep.subr.mxu0 0.0
    %2217 = vmatpush1.msra.mxu0 0.0
    %2218 = vmatprep.subr.mxu0 0.0
    %2219 = vmatpush1.msra.mxu0 0.0
    %2220 = vmatprep.subr.mxu0 0.0
    %2221 = vmatpush1.msra.mxu0 0.0
    %2222 = vmatprep.subr.mxu0 0.0
    %2223 = vmatpush1.msra.mxu0 0.0
    %2224 = vmatprep.subr.mxu0 0.0
    %2225 = vmatpush1.msra.mxu0 0.0
    %2226 = vmatprep.subr.mxu0 0.0
    %2227 = vmatpush1.msra.mxu0 0.0
    %2228 = vmatprep.subr.mxu0 0.0
    %2229 = vmatpush1.msra.mxu0 0.0
    %2230 = vmatprep.subr.mxu0 0.0
    %2231 = vmatpush1.msra.mxu0 0.0
    %2232 = vmatprep.subr.mxu0 0.0
    %2233 = vmatpush1.msra.mxu0 0.0
    %2234 = vmatprep.subr.mxu0 0.0
    %2235 = vmatpush1.msra.mxu0 0.0
    %2236 = vmatprep.mubr.f32.mxu0 0.0
    %2237 = vmatmul.mubr.f32.gmra.mrb[0].mxu0 %v2170
    %v2238 = vpop.f32.mrb[0].mxu0
    %v2239 = vadd.f32 %v94, %v2238
    %v2240 = vpop.f32.mrb[0].mxu0
    %2241 = vdwg.mxu0
    %v2242 = vmul.f32 %v2092, %v2239
    %v2243 = vadd.f32 %v1935, %v2242
    %v2245 = vsel %vm97, %v2243, 0
    %2247 = vmatprep.subr.mxu0 0.0
    %2248 = vmatpush1.msra.mxu0 %v74
    %2249 = vmatprep.subr.mxu0 0.0
    %2250 = vmatpush1.msra.mxu0 %v75
    %2251 = vmatprep.subr.mxu0 0.0
    %2252 = vmatpush1.msra.mxu0 %v76
    %2253 = vmatprep.subr.mxu0 0.0
    %2254 = vmatpush1.msra.mxu0 %v77
    %2255 = vmatprep.subr.mxu0 0.0
    %2256 = vmatpush1.msra.mxu0 0.0
    %2257 = vmatprep.subr.mxu0 0.0
    %2258 = vmatpush1.msra.mxu0 0.0
    %2259 = vmatprep.subr.mxu0 0.0
    %2260 = vmatpush1.msra.mxu0 0.0
    %2261 = vmatprep.subr.mxu0 0.0
    %2262 = vmatpush1.msra.mxu0 0.0
    %2263 = vmatprep.subr.mxu0 0.0
    %2264 = vmatpush1.msra.mxu0 0.0
    %2265 = vmatprep.subr.mxu0 0.0
    %2266 = vmatpush1.msra.mxu0 0.0
    %2267 = vmatprep.subr.mxu0 0.0
    %2268 = vmatpush1.msra.mxu0 0.0
    %2269 = vmatprep.subr.mxu0 0.0
    %2270 = vmatpush1.msra.mxu0 0.0
    %2271 = vmatprep.subr.mxu0 0.0
    %2272 = vmatpush1.msra.mxu0 0.0
    %2273 = vmatprep.subr.mxu0 0.0
    %2274 = vmatpush1.msra.mxu0 0.0
    %2275 = vmatprep.subr.mxu0 0.0
    %2276 = vmatpush1.msra.mxu0 0.0
    %2277 = vmatprep.subr.mxu0 0.0
    %2278 = vmatpush1.msra.mxu0 0.0
    %2279 = vmatprep.subr.mxu0 0.0
    %2280 = vmatpush1.msra.mxu0 0.0
    %2281 = vmatprep.subr.mxu0 0.0
    %2282 = vmatpush1.msra.mxu0 0.0
    %2283 = vmatprep.subr.mxu0 0.0
    %2284 = vmatpush1.msra.mxu0 0.0
    %2285 = vmatprep.subr.mxu0 0.0
    %2286 = vmatpush1.msra.mxu0 0.0
    %2287 = vmatprep.subr.mxu0 0.0
    %2288 = vmatpush1.msra.mxu0 0.0
    %2289 = vmatprep.subr.mxu0 0.0
    %2290 = vmatpush1.msra.mxu0 0.0
    %2291 = vmatprep.subr.mxu0 0.0
    %2292 = vmatpush1.msra.mxu0 0.0
    %2293 = vmatprep.subr.mxu0 0.0
    %2294 = vmatpush1.msra.mxu0 0.0
    %2295 = vmatprep.subr.mxu0 0.0
    %2296 = vmatpush1.msra.mxu0 0.0
    %2297 = vmatprep.subr.mxu0 0.0
    %2298 = vmatpush1.msra.mxu0 0.0
    %2299 = vmatprep.subr.mxu0 0.0
    %2300 = vmatpush1.msra.mxu0 0.0
    %2301 = vmatprep.subr.mxu0 0.0
    %2302 = vmatpush1.msra.mxu0 0.0
    %2303 = vmatprep.subr.mxu0 0.0
    %2304 = vmatpush1.msra.mxu0 0.0
    %2305 = vmatprep.subr.mxu0 0.0
    %2306 = vmatpush1.msra.mxu0 0.0
    %2307 = vmatprep.subr.mxu0 0.0
    %2308 = vmatpush1.msra.mxu0 0.0
    %2309 = vmatprep.subr.mxu0 0.0
    %2310 = vmatpush1.msra.mxu0 0.0
    %2311 = vmatprep.mubr.f32.mxu0 0.0
    %2312 = vmatmul.mubr.f32.gmra.mrb[0].mxu0 %v2245
    %v2313 = vpop.f32.mrb[0].mxu0
    %v2314 = vadd.f32 %v87, %v2313
    %v2315 = vpop.f32.mrb[0].mxu0
    %2316 = vdwg.mxu0
    %v2317 = vtanh.pop %v2314
    %v2319 = vsel %vm97, %v2317, 0
    %2321 = vmatprep.subr.mxu0 0.0
    %2322 = vmatpush1.msra.mxu0 %v78
    %2323 = vmatprep.subr.mxu0 0.0
    %2324 = vmatpush1.msra.mxu0 %v79
    %2325 = vmatprep.subr.mxu0 0.0
    %2326 = vmatpush1.msra.mxu0 %v80
    %2327 = vmatprep.subr.mxu0 0.0
    %2328 = vmatpush1.msra.mxu0 %v81
    %2329 = vmatprep.subr.mxu0 0.0
    %2330 = vmatpush1.msra.mxu0 0.0
    %2331 = vmatprep.subr.mxu0 0.0
    %2332 = vmatpush1.msra.mxu0 0.0
    %2333 = vmatprep.subr.mxu0 0.0
    %2334 = vmatpush1.msra.mxu0 0.0
    %2335 = vmatprep.subr.mxu0 0.0
    %2336 = vmatpush1.msra.mxu0 0.0
    %2337 = vmatprep.subr.mxu0 0.0
    %2338 = vmatpush1.msra.mxu0 0.0
    %2339 = vmatprep.subr.mxu0 0.0
    %2340 = vmatpush1.msra.mxu0 0.0
    %2341 = vmatprep.subr.mxu0 0.0
    %2342 = vmatpush1.msra.mxu0 0.0
    %2343 = vmatprep.subr.mxu0 0.0
    %2344 = vmatpush1.msra.mxu0 0.0
    %2345 = vmatprep.subr.mxu0 0.0
    %2346 = vmatpush1.msra.mxu0 0.0
    %2347 = vmatprep.subr.mxu0 0.0
    %2348 = vmatpush1.msra.mxu0 0.0
    %2349 = vmatprep.subr.mxu0 0.0
    %2350 = vmatpush1.msra.mxu0 0.0
    %2351 = vmatprep.subr.mxu0 0.0
    %2352 = vmatpush1.msra.mxu0 0.0
    %2353 = vmatprep.subr.mxu0 0.0
    %2354 = vmatpush1.msra.mxu0 0.0
    %2355 = vmatprep.subr.mxu0 0.0
    %2356 = vmatpush1.msra.mxu0 0.0
    %2357 = vmatprep.subr.mxu0 0.0
    %2358 = vmatpush1.msra.mxu0 0.0
    %2359 = vmatprep.subr.mxu0 0.0
    %2360 = vmatpush1.msra.mxu0 0.0
    %2361 = vmatprep.subr.mxu0 0.0
    %2362 = vmatpush1.msra.mxu0 0.0
    %2363 = vmatprep.subr.mxu0 0.0
    %2364 = vmatpush1.msra.mxu0 0.0
    %2365 = vmatprep.subr.mxu0 0.0
    %2366 = vmatpush1.msra.mxu0 0.0
    %2367 = vmatprep.subr.mxu0 0.0
    %2368 = vmatpush1.msra.mxu0 0.0
    %2369 = vmatprep.subr.mxu0 0.0
    %2370 = vmatpush1.msra.mxu0 0.0
    %2371 = vmatprep.subr.mxu0 0.0
    %2372 = vmatpush1.msra.mxu0 0.0
    %2373 = vmatprep.subr.mxu0 0.0
    %2374 = vmatpush1.msra.mxu0 0.0
    %2375 = vmatprep.subr.mxu0 0.0
    %2376 = vmatpush1.msra.mxu0 0.0
    %2377 = vmatprep.subr.mxu0 0.0
    %2378 = vmatpush1.msra.mxu0 0.0
    %2379 = vmatprep.subr.mxu0 0.0
    %2380 = vmatpush1.msra.mxu0 0.0
    %2381 = vmatprep.subr.mxu0 0.0
    %2382 = vmatpush1.msra.mxu0 0.0
    %2383 = vmatprep.subr.mxu0 0.0
    %2384 = vmatpush1.msra.mxu0 0.0
    %2385 = vmatprep.mubr.f32.mxu0 0.0
    %2386 = vmatmul.mubr.f32.gmra.mrb[0].mxu0 %v2319
    %v2387 = vpop.f32.mrb[0].mxu0
    %v2388 = vadd.f32 %v94, %v2387
    %v2389 = vpop.f32.mrb[0].mxu0
    %2390 = vdwg.mxu0
    %v2391 = vstv %s1940
    %v2392 = vmul.f32 %v2391, %v2388
    %v2393 = vadd.f32 %v1935, %v2392
    %v2395 = vsel %vm97, %v2393, 0
    %2397 = vmatprep.subr.mxu0 0.0
    %2398 = vmatpush1.msra.mxu0 %v74
    %2399 = vmatprep.subr.mxu0 0.0
    %2400 = vmatpush1.msra.mxu0 %v75
    %2401 = vmatprep.subr.mxu0 0.0
    %2402 = vmatpush1.msra.mxu0 %v76
    %2403 = vmatprep.subr.mxu0 0.0
    %2404 = vmatpush1.msra.mxu0 %v77
    %2405 = vmatprep.subr.mxu0 0.0
    %2406 = vmatpush1.msra.mxu0 0.0
    %2407 = vmatprep.subr.mxu0 0.0
    %2408 = vmatpush1.msra.mxu0 0.0
    %2409 = vmatprep.subr.mxu0 0.0
    %2410 = vmatpush1.msra.mxu0 0.0
    %2411 = vmatprep.subr.mxu0 0.0
    %2412 = vmatpush1.msra.mxu0 0.0
    %2413 = vmatprep.subr.mxu0 0.0
    %2414 = vmatpush1.msra.mxu0 0.0
    %2415 = vmatprep.subr.mxu0 0.0
    %2416 = vmatpush1.msra.mxu0 0.0
    %2417 = vmatprep.subr.mxu0 0.0
    %2418 = vmatpush1.msra.mxu0 0.0
    %2419 = vmatprep.subr.mxu0 0.0
    %2420 = vmatpush1.msra.mxu0 0.0
    %2421 = vmatprep.subr.mxu0 0.0
    %2422 = vmatpush1.msra.mxu0 0.0
    %2423 = vmatprep.subr.mxu0 0.0
    %2424 = vmatpush1.msra.mxu0 0.0
    %2425 = vmatprep.subr.mxu0 0.0
    %2426 = vmatpush1.msra.mxu0 0.0
    %2427 = vmatprep.subr.mxu0 0.0
    %2428 = vmatpush1.msra.mxu0 0.0
    %2429 = vmatprep.subr.mxu0 0.0
    %2430 = vmatpush1.msra.mxu0 0.0
    %2431 = vmatprep.subr.mxu0 0.0
    %2432 = vmatpush1.msra.mxu0 0.0
    %2433 = vmatprep.subr.mxu0 0.0
    %2434 = vmatpush1.msra.mxu0 0.0
    %2435 = vmatprep.subr.mxu0 0.0
    %2436 = vmatpush1.msra.mxu0 0.0
    %2437 = vmatprep.subr.mxu0 0.0
    %2438 = vmatpush1.msra.mxu0 0.0
    %2439 = vmatprep.subr.mxu0 0.0
    %2440 = vmatpush1.msra.mxu0 0.0
    %2441 = vmatprep.subr.mxu0 0.0
    %2442 = vmatpush1.msra.mxu0 0.0
    %2443 = vmatprep.subr.mxu0 0.0
    %2444 = vmatpush1.msra.mxu0 0.0
    %2445 = vmatprep.subr.mxu0 0.0
    %2446 = vmatpush1.msra.mxu0 0.0
    %2447 = vmatprep.subr.mxu0 0.0
    %2448 = vmatpush1.msra.mxu0 0.0
    %2449 = vmatprep.subr.mxu0 0.0
    %2450 = vmatpush1.msra.mxu0 0.0
    %2451 = vmatprep.subr.mxu0 0.0
    %2452 = vmatpush1.msra.mxu0 0.0
    %2453 = vmatprep.subr.mxu0 0.0
    %2454 = vmatpush1.msra.mxu0 0.0
    %2455 = vmatprep.subr.mxu0 0.0
    %2456 = vmatpush1.msra.mxu0 0.0
    %2457 = vmatprep.subr.mxu0 0.0
    %2458 = vmatpush1.msra.mxu0 0.0
    %2459 = vmatprep.subr.mxu0 0.0
    %2460 = vmatpush1.msra.mxu0 0.0
    %2461 = vmatprep.mubr.f32.mxu0 0.0
    %2462 = vmatmul.mubr.f32.gmra.mrb[0].mxu0 %v2395
    %v2463 = vpop.f32.mrb[0].mxu0
    %v2464 = vadd.f32 %v87, %v2463
    %v2465 = vpop.f32.mrb[0].mxu0
    %2466 = vdwg.mxu0
    %v2467 = vtanh.pop %v2464
    %v2469 = vsel %vm97, %v2467, 0
    %2471 = vmatprep.subr.mxu0 0.0
    %2472 = vmatpush1.msra.mxu0 %v78
    %2473 = vmatprep.subr.mxu0 0.0
    %2474 = vmatpush1.msra.mxu0 %v79
    %2475 = vmatprep.subr.mxu0 0.0
    %2476 = vmatpush1.msra.mxu0 %v80
    %2477 = vmatprep.subr.mxu0 0.0
    %2478 = vmatpush1.msra.mxu0 %v81
    %2479 = vmatprep.subr.mxu0 0.0
    %2480 = vmatpush1.msra.mxu0 0.0
    %2481 = vmatprep.subr.mxu0 0.0
    %2482 = vmatpush1.msra.mxu0 0.0
    %2483 = vmatprep.subr.mxu0 0.0
    %2484 = vmatpush1.msra.mxu0 0.0
    %2485 = vmatprep.subr.mxu0 0.0
    %2486 = vmatpush1.msra.mxu0 0.0
    %2487 = vmatprep.subr.mxu0 0.0
    %2488 = vmatpush1.msra.mxu0 0.0
    %2489 = vmatprep.subr.mxu0 0.0
    %2490 = vmatpush1.msra.mxu0 0.0
    %2491 = vmatprep.subr.mxu0 0.0
    %2492 = vmatpush1.msra.mxu0 0.0
    %2493 = vmatprep.subr.mxu0 0.0
    %2494 = vmatpush1.msra.mxu0 0.0
    %2495 = vmatprep.subr.mxu0 0.0
    %2496 = vmatpush1.msra.mxu0 0.0
    %2497 = vmatprep.subr.mxu0 0.0
    %2498 = vmatpush1.msra.mxu0 0.0
    %2499 = vmatprep.subr.mxu0 0.0
    %2500 = vmatpush1.msra.mxu0 0.0
    %2501 = vmatprep.subr.mxu0 0.0
    %2502 = vmatpush1.msra.mxu0 0.0
    %2503 = vmatprep.subr.mxu0 0.0
    %2504 = vmatpush1.msra.mxu0 0.0
    %2505 = vmatprep.subr.mxu0 0.0
    %2506 = vmatpush1.msra.mxu0 0.0
    %2507 = vmatprep.subr.mxu0 0.0
    %2508 = vmatpush1.msra.mxu0 0.0
    %2509 = vmatprep.subr.mxu0 0.0
    %2510 = vmatpush1.msra.mxu0 0.0
    %2511 = vmatprep.subr.mxu0 0.0
    %2512 = vmatpush1.msra.mxu0 0.0
    %2513 = vmatprep.subr.mxu0 0.0
    %2514 = vmatpush1.msra.mxu0 0.0
    %2515 = vmatprep.subr.mxu0 0.0
    %2516 = vmatpush1.msra.mxu0 0.0
    %2517 = vmatprep.subr.mxu0 0.0
    %2518 = vmatpush1.msra.mxu0 0.0
    %2519 = vmatprep.subr.mxu0 0.0
    %2520 = vmatpush1.msra.mxu0 0.0
    %2521 = vmatprep.subr.mxu0 0.0
    %2522 = vmatpush1.msra.mxu0 0.0
    %2523 = vmatprep.subr.mxu0 0.0
    %2524 = vmatpush1.msra.mxu0 0.0
    %2525 = vmatprep.subr.mxu0 0.0
    %2526 = vmatpush1.msra.mxu0 0.0
    %2527 = vmatprep.subr.mxu0 0.0
    %2528 = vmatpush1.msra.mxu0 0.0
    %2529 = vmatprep.subr.mxu0 0.0
    %2530 = vmatpush1.msra.mxu0 0.0
    %2531 = vmatprep.subr.mxu0 0.0
    %2532 = vmatpush1.msra.mxu0 0.0
    %2533 = vmatprep.subr.mxu0 0.0
    %2534 = vmatpush1.msra.mxu0 0.0
    %2535 = vmatprep.mubr.f32.mxu0 0.0
    %2536 = vmatmul.mubr.f32.gmra.mrb[0].mxu0 %v2469
    %v2537 = vpop.f32.mrb[0].mxu0
    %v2538 = vadd.f32 %v94, %v2537
    %v2539 = vpop.f32.mrb[0].mxu0
    %2540 = vdwg.mxu0
    %v2541 = vmul.f32 %v2239, 2.0
    %v2542 = vadd.f32 %v2089, %v2541
    %v2543 = vmul.f32 %v2388, 2.0
    %v2544 = vadd.f32 %v2542, %v2543
    %v2545 = vadd.f32 %v2544, %v2538
    %v2546 = vstv %s1944
    %v2547 = vmul.f32 %v2546, %v2545
    %v2548 = vadd.f32 %v1935, %v2547
    %s2549 = scalar_lea.vmem [#allocation10], 32
    %2550 = vst.msk [vmem:[%s2549] sm:$0xff] %vm97, %v2548
    %s2551 = sld [smem:[#allocation2 + $0x5]]
    %s2552 = sld [smem:[#allocation2 + $0x4]]
    %s2553 = ssub.f32 %s2551, %s2552
    %s2554 = smul.f32 %s2553, 0.5
    %v2555 = vrcp.pop 6.0
    %s2556 = vtos %v2555
    %s2557 = smul.f32 %s2553, %s2556
    %v2559 = vsel %vm97, %v2548, 0
    %2561 = vmatprep.subr.mxu0 0.0
    %2562 = vmatpush1.msra.mxu0 %v74
    %2563 = vmatprep.subr.mxu0 0.0
    %2564 = vmatpush1.msra.mxu0 %v75
    %2565 = vmatprep.subr.mxu0 0.0
    %2566 = vmatpush1.msra.mxu0 %v76
    %2567 = vmatprep.subr.mxu0 0.0
    %2568 = vmatpush1.msra.mxu0 %v77
    %2569 = vmatprep.subr.mxu0 0.0
    %2570 = vmatpush1.msra.mxu0 0.0
    %2571 = vmatprep.subr.mxu0 0.0
    %2572 = vmatpush1.msra.mxu0 0.0
    %2573 = vmatprep.subr.mxu0 0.0
    %2574 = vmatpush1.msra.mxu0 0.0
    %2575 = vmatprep.subr.mxu0 0.0
    %2576 = vmatpush1.msra.mxu0 0.0
    %2577 = vmatprep.subr.mxu0 0.0
    %2578 = vmatpush1.msra.mxu0 0.0
    %2579 = vmatprep.subr.mxu0 0.0
    %2580 = vmatpush1.msra.mxu0 0.0
    %2581 = vmatprep.subr.mxu0 0.0
    %2582 = vmatpush1.msra.mxu0 0.0
    %2583 = vmatprep.subr.mxu0 0.0
    %2584 = vmatpush1.msra.mxu0 0.0
    %2585 = vmatprep.subr.mxu0 0.0
    %2586 = vmatpush1.msra.mxu0 0.0
    %2587 = vmatprep.subr.mxu0 0.0
    %2588 = vmatpush1.msra.mxu0 0.0
    %2589 = vmatprep.subr.mxu0 0.0
    %2590 = vmatpush1.msra.mxu0 0.0
    %2591 = vmatprep.subr.mxu0 0.0
    %2592 = vmatpush1.msra.mxu0 0.0
    %2593 = vmatprep.subr.mxu0 0.0
    %2594 = vmatpush1.msra.mxu0 0.0
    %2595 = vmatprep.subr.mxu0 0.0
    %2596 = vmatpush1.msra.mxu0 0.0
    %2597 = vmatprep.subr.mxu0 0.0
    %2598 = vmatpush1.msra.mxu0 0.0
    %2599 = vmatprep.subr.mxu0 0.0
    %2600 = vmatpush1.msra.mxu0 0.0
    %2601 = vmatprep.subr.mxu0 0.0
    %2602 = vmatpush1.msra.mxu0 0.0
    %2603 = vmatprep.subr.mxu0 0.0
    %2604 = vmatpush1.msra.mxu0 0.0
    %2605 = vmatprep.subr.mxu0 0.0
    %2606 = vmatpush1.msra.mxu0 0.0
    %2607 = vmatprep.subr.mxu0 0.0
    %2608 = vmatpush1.msra.mxu0 0.0
    %2609 = vmatprep.subr.mxu0 0.0
    %2610 = vmatpush1.msra.mxu0 0.0
    %2611 = vmatprep.subr.mxu0 0.0
    %2612 = vmatpush1.msra.mxu0 0.0
    %2613 = vmatprep.subr.mxu0 0.0
    %2614 = vmatpush1.msra.mxu0 0.0
    %2615 = vmatprep.subr.mxu0 0.0
    %2616 = vmatpush1.msra.mxu0 0.0
    %2617 = vmatprep.subr.mxu0 0.0
    %2618 = vmatpush1.msra.mxu0 0.0
    %2619 = vmatprep.subr.mxu0 0.0
    %2620 = vmatpush1.msra.mxu0 0.0
    %2621 = vmatprep.subr.mxu0 0.0
    %2622 = vmatpush1.msra.mxu0 0.0
    %2623 = vmatprep.subr.mxu0 0.0
    %2624 = vmatpush1.msra.mxu0 0.0
    %2625 = vmatprep.mubr.f32.mxu0 0.0
    %2626 = vmatmul.mubr.f32.gmra.mrb[0].mxu0 %v2559
    %v2627 = vpop.f32.mrb[0].mxu0
    %v2628 = vadd.f32 %v87, %v2627
    %v2629 = vpop.f32.mrb[0].mxu0
    %2630 = vdwg.mxu0
    %v2631 = vtanh.pop %v2628
    %v2633 = vsel %vm97, %v2631, 0
    %2635 = vmatprep.subr.mxu0 0.0
    %2636 = vmatpush1.msra.mxu0 %v78
    %2637 = vmatprep.subr.mxu0 0.0
    %2638 = vmatpush1.msra.mxu0 %v79
    %2639 = vmatprep.subr.mxu0 0.0
    %2640 = vmatpush1.msra.mxu0 %v80
    %2641 = vmatprep.subr.mxu0 0.0
    %2642 = vmatpush1.msra.mxu0 %v81
    %2643 = vmatprep.subr.mxu0 0.0
    %2644 = vmatpush1.msra.mxu0 0.0
    %2645 = vmatprep.subr.mxu0 0.0
    %2646 = vmatpush1.msra.mxu0 0.0
    %2647 = vmatprep.subr.mxu0 0.0
    %2648 = vmatpush1.msra.mxu0 0.0
    %2649 = vmatprep.subr.mxu0 0.0
    %2650 = vmatpush1.msra.mxu0 0.0
    %2651 = vmatprep.subr.mxu0 0.0
    %2652 = vmatpush1.msra.mxu0 0.0
    %2653 = vmatprep.subr.mxu0 0.0
    %2654 = vmatpush1.msra.mxu0 0.0
    %2655 = vmatprep.subr.mxu0 0.0
    %2656 = vmatpush1.msra.mxu0 0.0
    %2657 = vmatprep.subr.mxu0 0.0
    %2658 = vmatpush1.msra.mxu0 0.0
    %2659 = vmatprep.subr.mxu0 0.0
    %2660 = vmatpush1.msra.mxu0 0.0
    %2661 = vmatprep.subr.mxu0 0.0
    %2662 = vmatpush1.msra.mxu0 0.0
    %2663 = vmatprep.subr.mxu0 0.0
    %2664 = vmatpush1.msra.mxu0 0.0
    %2665 = vmatprep.subr.mxu0 0.0
    %2666 = vmatpush1.msra.mxu0 0.0
    %2667 = vmatprep.subr.mxu0 0.0
    %2668 = vmatpush1.msra.mxu0 0.0
    %2669 = vmatprep.subr.mxu0 0.0
    %2670 = vmatpush1.msra.mxu0 0.0
    %2671 = vmatprep.subr.mxu0 0.0
    %2672 = vmatpush1.msra.mxu0 0.0
    %2673 = vmatprep.subr.mxu0 0.0
    %2674 = vmatpush1.msra.mxu0 0.0
    %2675 = vmatprep.subr.mxu0 0.0
    %2676 = vmatpush1.msra.mxu0 0.0
    %2677 = vmatprep.subr.mxu0 0.0
    %2678 = vmatpush1.msra.mxu0 0.0
    %2679 = vmatprep.subr.mxu0 0.0
    %2680 = vmatpush1.msra.mxu0 0.0
    %2681 = vmatprep.subr.mxu0 0.0
    %2682 = vmatpush1.msra.mxu0 0.0
    %2683 = vmatprep.subr.mxu0 0.0
    %2684 = vmatpush1.msra.mxu0 0.0
    %2685 = vmatprep.subr.mxu0 0.0
    %2686 = vmatpush1.msra.mxu0 0.0
    %2687 = vmatprep.subr.mxu0 0.0
    %2688 = vmatpush1.msra.mxu0 0.0
    %2689 = vmatprep.subr.mxu0 0.0
    %2690 = vmatpush1.msra.mxu0 0.0
    %2691 = vmatprep.subr.mxu0 0.0
    %2692 = vmatpush1.msra.mxu0 0.0
    %2693 = vmatprep.subr.mxu0 0.0
    %2694 = vmatpush1.msra.mxu0 0.0
    %2695 = vmatprep.subr.mxu0 0.0
    %2696 = vmatpush1.msra.mxu0 0.0
    %2697 = vmatprep.subr.mxu0 0.0
    %2698 = vmatpush1.msra.mxu0 0.0
    %2699 = vmatprep.mubr.f32.mxu0 0.0
    %2700 = vmatmul.mubr.f32.gmra.mrb[0].mxu0 %v2633
    %v2701 = vpop.f32.mrb[0].mxu0
    %v2702 = vadd.f32 %v94, %v2701
    %v2703 = vpop.f32.mrb[0].mxu0
    %2704 = vdwg.mxu0
    %v2705 = vstv %s2554
    %v2706 = vmul.f32 %v2705, %v2702
    %v2707 = vadd.f32 %v2548, %v2706
    %v2709 = vsel %vm97, %v2707, 0
    %2711 = vmatprep.subr.mxu0 0.0
    %2712 = vmatpush1.msra.mxu0 %v74
    %2713 = vmatprep.subr.mxu0 0.0
    %2714 = vmatpush1.msra.mxu0 %v75
    %2715 = vmatprep.subr.mxu0 0.0
    %2716 = vmatpush1.msra.mxu0 %v76
    %2717 = vmatprep.subr.mxu0 0.0
    %2718 = vmatpush1.msra.mxu0 %v77
    %2719 = vmatprep.subr.mxu0 0.0
    %2720 = vmatpush1.msra.mxu0 0.0
    %2721 = vmatprep.subr.mxu0 0.0
    %2722 = vmatpush1.msra.mxu0 0.0
    %2723 = vmatprep.subr.mxu0 0.0
    %2724 = vmatpush1.msra.mxu0 0.0
    %2725 = vmatprep.subr.mxu0 0.0
    %2726 = vmatpush1.msra.mxu0 0.0
    %2727 = vmatprep.subr.mxu0 0.0
    %2728 = vmatpush1.msra.mxu0 0.0
    %2729 = vmatprep.subr.mxu0 0.0
    %2730 = vmatpush1.msra.mxu0 0.0
    %2731 = vmatprep.subr.mxu0 0.0
    %2732 = vmatpush1.msra.mxu0 0.0
    %2733 = vmatprep.subr.mxu0 0.0
    %2734 = vmatpush1.msra.mxu0 0.0
    %2735 = vmatprep.subr.mxu0 0.0
    %2736 = vmatpush1.msra.mxu0 0.0
    %2737 = vmatprep.subr.mxu0 0.0
    %2738 = vmatpush1.msra.mxu0 0.0
    %2739 = vmatprep.subr.mxu0 0.0
    %2740 = vmatpush1.msra.mxu0 0.0
    %2741 = vmatprep.subr.mxu0 0.0
    %2742 = vmatpush1.msra.mxu0 0.0
    %2743 = vmatprep.subr.mxu0 0.0
    %2744 = vmatpush1.msra.mxu0 0.0
    %2745 = vmatprep.subr.mxu0 0.0
    %2746 = vmatpush1.msra.mxu0 0.0
    %2747 = vmatprep.subr.mxu0 0.0
    %2748 = vmatpush1.msra.mxu0 0.0
    %2749 = vmatprep.subr.mxu0 0.0
    %2750 = vmatpush1.msra.mxu0 0.0
    %2751 = vmatprep.subr.mxu0 0.0
    %2752 = vmatpush1.msra.mxu0 0.0
    %2753 = vmatprep.subr.mxu0 0.0
    %2754 = vmatpush1.msra.mxu0 0.0
    %2755 = vmatprep.subr.mxu0 0.0
    %2756 = vmatpush1.msra.mxu0 0.0
    %2757 = vmatprep.subr.mxu0 0.0
    %2758 = vmatpush1.msra.mxu0 0.0
    %2759 = vmatprep.subr.mxu0 0.0
    %2760 = vmatpush1.msra.mxu0 0.0
    %2761 = vmatprep.subr.mxu0 0.0
    %2762 = vmatpush1.msra.mxu0 0.0
    %2763 = vmatprep.subr.mxu0 0.0
    %2764 = vmatpush1.msra.mxu0 0.0
    %2765 = vmatprep.subr.mxu0 0.0
    %2766 = vmatpush1.msra.mxu0 0.0
    %2767 = vmatprep.subr.mxu0 0.0
    %2768 = vmatpush1.msra.mxu0 0.0
    %2769 = vmatprep.subr.mxu0 0.0
    %2770 = vmatpush1.msra.mxu0 0.0
    %2771 = vmatprep.subr.mxu0 0.0
    %2772 = vmatpush1.msra.mxu0 0.0
    %2773 = vmatprep.subr.mxu0 0.0
    %2774 = vmatpush1.msra.mxu0 0.0
    %2775 = vmatprep.mubr.f32.mxu0 0.0
    %2776 = vmatmul.mubr.f32.gmra.mrb[0].mxu0 %v2709
    %v2777 = vpop.f32.mrb[0].mxu0
    %v2778 = vadd.f32 %v87, %v2777
    %v2779 = vpop.f32.mrb[0].mxu0
    %2780 = vdwg.mxu0
    %v2781 = vtanh.pop %v2778
    %v2783 = vsel %vm97, %v2781, 0
    %2785 = vmatprep.subr.mxu0 0.0
    %2786 = vmatpush1.msra.mxu0 %v78
    %2787 = vmatprep.subr.mxu0 0.0
    %2788 = vmatpush1.msra.mxu0 %v79
    %2789 = vmatprep.subr.mxu0 0.0
    %2790 = vmatpush1.msra.mxu0 %v80
    %2791 = vmatprep.subr.mxu0 0.0
    %2792 = vmatpush1.msra.mxu0 %v81
    %2793 = vmatprep.subr.mxu0 0.0
    %2794 = vmatpush1.msra.mxu0 0.0
    %2795 = vmatprep.subr.mxu0 0.0
    %2796 = vmatpush1.msra.mxu0 0.0
    %2797 = vmatprep.subr.mxu0 0.0
    %2798 = vmatpush1.msra.mxu0 0.0
    %2799 = vmatprep.subr.mxu0 0.0
    %2800 = vmatpush1.msra.mxu0 0.0
    %2801 = vmatprep.subr.mxu0 0.0
    %2802 = vmatpush1.msra.mxu0 0.0
    %2803 = vmatprep.subr.mxu0 0.0
    %2804 = vmatpush1.msra.mxu0 0.0
    %2805 = vmatprep.subr.mxu0 0.0
    %2806 = vmatpush1.msra.mxu0 0.0
    %2807 = vmatprep.subr.mxu0 0.0
    %2808 = vmatpush1.msra.mxu0 0.0
    %2809 = vmatprep.subr.mxu0 0.0
    %2810 = vmatpush1.msra.mxu0 0.0
    %2811 = vmatprep.subr.mxu0 0.0
    %2812 = vmatpush1.msra.mxu0 0.0
    %2813 = vmatprep.subr.mxu0 0.0
    %2814 = vmatpush1.msra.mxu0 0.0
    %2815 = vmatprep.subr.mxu0 0.0
    %2816 = vmatpush1.msra.mxu0 0.0
    %2817 = vmatprep.subr.mxu0 0.0
    %2818 = vmatpush1.msra.mxu0 0.0
    %2819 = vmatprep.subr.mxu0 0.0
    %2820 = vmatpush1.msra.mxu0 0.0
    %2821 = vmatprep.subr.mxu0 0.0
    %2822 = vmatpush1.msra.mxu0 0.0
    %2823 = vmatprep.subr.mxu0 0.0
    %2824 = vmatpush1.msra.mxu0 0.0
    %2825 = vmatprep.subr.mxu0 0.0
    %2826 = vmatpush1.msra.mxu0 0.0
    %2827 = vmatprep.subr.mxu0 0.0
    %2828 = vmatpush1.msra.mxu0 0.0
    %2829 = vmatprep.subr.mxu0 0.0
    %2830 = vmatpush1.msra.mxu0 0.0
    %2831 = vmatprep.subr.mxu0 0.0
    %2832 = vmatpush1.msra.mxu0 0.0
    %2833 = vmatprep.subr.mxu0 0.0
    %2834 = vmatpush1.msra.mxu0 0.0
    %2835 = vmatprep.subr.mxu0 0.0
    %2836 = vmatpush1.msra.mxu0 0.0
    %2837 = vmatprep.subr.mxu0 0.0
    %2838 = vmatpush1.msra.mxu0 0.0
    %2839 = vmatprep.subr.mxu0 0.0
    %2840 = vmatpush1.msra.mxu0 0.0
    %2841 = vmatprep.subr.mxu0 0.0
    %2842 = vmatpush1.msra.mxu0 0.0
    %2843 = vmatprep.subr.mxu0 0.0
    %2844 = vmatpush1.msra.mxu0 0.0
    %2845 = vmatprep.subr.mxu0 0.0
    %2846 = vmatpush1.msra.mxu0 0.0
    %2847 = vmatprep.subr.mxu0 0.0
    %2848 = vmatpush1.msra.mxu0 0.0
    %2849 = vmatprep.mubr.f32.mxu0 0.0
    %2850 = vmatmul.mubr.f32.gmra.mrb[0].mxu0 %v2783
    %v2851 = vpop.f32.mrb[0].mxu0
    %v2852 = vadd.f32 %v94, %v2851
    %v2853 = vpop.f32.mrb[0].mxu0
    %2854 = vdwg.mxu0
    %v2855 = vmul.f32 %v2705, %v2852
    %v2856 = vadd.f32 %v2548, %v2855
    %v2858 = vsel %vm97, %v2856, 0
    %2860 = vmatprep.subr.mxu0 0.0
    %2861 = vmatpush1.msra.mxu0 %v74
    %2862 = vmatprep.subr.mxu0 0.0
    %2863 = vmatpush1.msra.mxu0 %v75
    %2864 = vmatprep.subr.mxu0 0.0
    %2865 = vmatpush1.msra.mxu0 %v76
    %2866 = vmatprep.subr.mxu0 0.0
    %2867 = vmatpush1.msra.mxu0 %v77
    %2868 = vmatprep.subr.mxu0 0.0
    %2869 = vmatpush1.msra.mxu0 0.0
    %2870 = vmatprep.subr.mxu0 0.0
    %2871 = vmatpush1.msra.mxu0 0.0
    %2872 = vmatprep.subr.mxu0 0.0
    %2873 = vmatpush1.msra.mxu0 0.0
    %2874 = vmatprep.subr.mxu0 0.0
    %2875 = vmatpush1.msra.mxu0 0.0
    %2876 = vmatprep.subr.mxu0 0.0
    %2877 = vmatpush1.msra.mxu0 0.0
    %2878 = vmatprep.subr.mxu0 0.0
    %2879 = vmatpush1.msra.mxu0 0.0
    %2880 = vmatprep.subr.mxu0 0.0
    %2881 = vmatpush1.msra.mxu0 0.0
    %2882 = vmatprep.subr.mxu0 0.0
    %2883 = vmatpush1.msra.mxu0 0.0
    %2884 = vmatprep.subr.mxu0 0.0
    %2885 = vmatpush1.msra.mxu0 0.0
    %2886 = vmatprep.subr.mxu0 0.0
    %2887 = vmatpush1.msra.mxu0 0.0
    %2888 = vmatprep.subr.mxu0 0.0
    %2889 = vmatpush1.msra.mxu0 0.0
    %2890 = vmatprep.subr.mxu0 0.0
    %2891 = vmatpush1.msra.mxu0 0.0
    %2892 = vmatprep.subr.mxu0 0.0
    %2893 = vmatpush1.msra.mxu0 0.0
    %2894 = vmatprep.subr.mxu0 0.0
    %2895 = vmatpush1.msra.mxu0 0.0
    %2896 = vmatprep.subr.mxu0 0.0
    %2897 = vmatpush1.msra.mxu0 0.0
    %2898 = vmatprep.subr.mxu0 0.0
    %2899 = vmatpush1.msra.mxu0 0.0
    %2900 = vmatprep.subr.mxu0 0.0
    %2901 = vmatpush1.msra.mxu0 0.0
    %2902 = vmatprep.subr.mxu0 0.0
    %2903 = vmatpush1.msra.mxu0 0.0
    %2904 = vmatprep.subr.mxu0 0.0
    %2905 = vmatpush1.msra.mxu0 0.0
    %2906 = vmatprep.subr.mxu0 0.0
    %2907 = vmatpush1.msra.mxu0 0.0
    %2908 = vmatprep.subr.mxu0 0.0
    %2909 = vmatpush1.msra.mxu0 0.0
    %2910 = vmatprep.subr.mxu0 0.0
    %2911 = vmatpush1.msra.mxu0 0.0
    %2912 = vmatprep.subr.mxu0 0.0
    %2913 = vmatpush1.msra.mxu0 0.0
    %2914 = vmatprep.subr.mxu0 0.0
    %2915 = vmatpush1.msra.mxu0 0.0
    %2916 = vmatprep.subr.mxu0 0.0
    %2917 = vmatpush1.msra.mxu0 0.0
    %2918 = vmatprep.subr.mxu0 0.0
    %2919 = vmatpush1.msra.mxu0 0.0
    %2920 = vmatprep.subr.mxu0 0.0
    %2921 = vmatpush1.msra.mxu0 0.0
    %2922 = vmatprep.subr.mxu0 0.0
    %2923 = vmatpush1.msra.mxu0 0.0
    %2924 = vmatprep.mubr.f32.mxu0 0.0
    %2925 = vmatmul.mubr.f32.gmra.mrb[0].mxu0 %v2858
    %v2926 = vpop.f32.mrb[0].mxu0
    %v2927 = vadd.f32 %v87, %v2926
    %v2928 = vpop.f32.mrb[0].mxu0
    %2929 = vdwg.mxu0
    %v2930 = vtanh.pop %v2927
    %v2932 = vsel %vm97, %v2930, 0
    %2934 = vmatprep.subr.mxu0 0.0
    %2935 = vmatpush1.msra.mxu0 %v78
    %2936 = vmatprep.subr.mxu0 0.0
    %2937 = vmatpush1.msra.mxu0 %v79
    %2938 = vmatprep.subr.mxu0 0.0
    %2939 = vmatpush1.msra.mxu0 %v80
    %2940 = vmatprep.subr.mxu0 0.0
    %2941 = vmatpush1.msra.mxu0 %v81
    %2942 = vmatprep.subr.mxu0 0.0
    %2943 = vmatpush1.msra.mxu0 0.0
    %2944 = vmatprep.subr.mxu0 0.0
    %2945 = vmatpush1.msra.mxu0 0.0
    %2946 = vmatprep.subr.mxu0 0.0
    %2947 = vmatpush1.msra.mxu0 0.0
    %2948 = vmatprep.subr.mxu0 0.0
    %2949 = vmatpush1.msra.mxu0 0.0
    %2950 = vmatprep.subr.mxu0 0.0
    %2951 = vmatpush1.msra.mxu0 0.0
    %2952 = vmatprep.subr.mxu0 0.0
    %2953 = vmatpush1.msra.mxu0 0.0
    %2954 = vmatprep.subr.mxu0 0.0
    %2955 = vmatpush1.msra.mxu0 0.0
    %2956 = vmatprep.subr.mxu0 0.0
    %2957 = vmatpush1.msra.mxu0 0.0
    %2958 = vmatprep.subr.mxu0 0.0
    %2959 = vmatpush1.msra.mxu0 0.0
    %2960 = vmatprep.subr.mxu0 0.0
    %2961 = vmatpush1.msra.mxu0 0.0
    %2962 = vmatprep.subr.mxu0 0.0
    %2963 = vmatpush1.msra.mxu0 0.0
    %2964 = vmatprep.subr.mxu0 0.0
    %2965 = vmatpush1.msra.mxu0 0.0
    %2966 = vmatprep.subr.mxu0 0.0
    %2967 = vmatpush1.msra.mxu0 0.0
    %2968 = vmatprep.subr.mxu0 0.0
    %2969 = vmatpush1.msra.mxu0 0.0
    %2970 = vmatprep.subr.mxu0 0.0
    %2971 = vmatpush1.msra.mxu0 0.0
    %2972 = vmatprep.subr.mxu0 0.0
    %2973 = vmatpush1.msra.mxu0 0.0
    %2974 = vmatprep.subr.mxu0 0.0
    %2975 = vmatpush1.msra.mxu0 0.0
    %2976 = vmatprep.subr.mxu0 0.0
    %2977 = vmatpush1.msra.mxu0 0.0
    %2978 = vmatprep.subr.mxu0 0.0
    %2979 = vmatpush1.msra.mxu0 0.0
    %2980 = vmatprep.subr.mxu0 0.0
    %2981 = vmatpush1.msra.mxu0 0.0
    %2982 = vmatprep.subr.mxu0 0.0
    %2983 = vmatpush1.msra.mxu0 0.0
    %2984 = vmatprep.subr.mxu0 0.0
    %2985 = vmatpush1.msra.mxu0 0.0
    %2986 = vmatprep.subr.mxu0 0.0
    %2987 = vmatpush1.msra.mxu0 0.0
    %2988 = vmatprep.subr.mxu0 0.0
    %2989 = vmatpush1.msra.mxu0 0.0
    %2990 = vmatprep.subr.mxu0 0.0
    %2991 = vmatpush1.msra.mxu0 0.0
    %2992 = vmatprep.subr.mxu0 0.0
    %2993 = vmatpush1.msra.mxu0 0.0
    %2994 = vmatprep.subr.mxu0 0.0
    %2995 = vmatpush1.msra.mxu0 0.0
    %2996 = vmatprep.subr.mxu0 0.0
    %2997 = vmatpush1.msra.mxu0 0.0
    %2998 = vmatprep.mubr.f32.mxu0 0.0
    %2999 = vmatmul.mubr.f32.gmra.mrb[0].mxu0 %v2932
    %v3000 = vpop.f32.mrb[0].mxu0
    %v3001 = vadd.f32 %v94, %v3000
    %v3002 = vpop.f32.mrb[0].mxu0
    %3003 = vdwg.mxu0
    %v3004 = vstv %s2553
    %v3005 = vmul.f32 %v3004, %v3001
    %v3006 = vadd.f32 %v2548, %v3005
    %v3008 = vsel %vm97, %v3006, 0
    %3010 = vmatprep.subr.mxu0 0.0
    %3011 = vmatpush1.msra.mxu0 %v74
    %3012 = vmatprep.subr.mxu0 0.0
    %3013 = vmatpush1.msra.mxu0 %v75
    %3014 = vmatprep.subr.mxu0 0.0
    %3015 = vmatpush1.msra.mxu0 %v76
    %3016 = vmatprep.subr.mxu0 0.0
    %3017 = vmatpush1.msra.mxu0 %v77
    %3018 = vmatprep.subr.mxu0 0.0
    %3019 = vmatpush1.msra.mxu0 0.0
    %3020 = vmatprep.subr.mxu0 0.0
    %3021 = vmatpush1.msra.mxu0 0.0
    %3022 = vmatprep.subr.mxu0 0.0
    %3023 = vmatpush1.msra.mxu0 0.0
    %3024 = vmatprep.subr.mxu0 0.0
    %3025 = vmatpush1.msra.mxu0 0.0
    %3026 = vmatprep.subr.mxu0 0.0
    %3027 = vmatpush1.msra.mxu0 0.0
    %3028 = vmatprep.subr.mxu0 0.0
    %3029 = vmatpush1.msra.mxu0 0.0
    %3030 = vmatprep.subr.mxu0 0.0
    %3031 = vmatpush1.msra.mxu0 0.0
    %3032 = vmatprep.subr.mxu0 0.0
    %3033 = vmatpush1.msra.mxu0 0.0
    %3034 = vmatprep.subr.mxu0 0.0
    %3035 = vmatpush1.msra.mxu0 0.0
    %3036 = vmatprep.subr.mxu0 0.0
    %3037 = vmatpush1.msra.mxu0 0.0
    %3038 = vmatprep.subr.mxu0 0.0
    %3039 = vmatpush1.msra.mxu0 0.0
    %3040 = vmatprep.subr.mxu0 0.0
    %3041 = vmatpush1.msra.mxu0 0.0
    %3042 = vmatprep.subr.mxu0 0.0
    %3043 = vmatpush1.msra.mxu0 0.0
    %3044 = vmatprep.subr.mxu0 0.0
    %3045 = vmatpush1.msra.mxu0 0.0
    %3046 = vmatprep.subr.mxu0 0.0
    %3047 = vmatpush1.msra.mxu0 0.0
    %3048 = vmatprep.subr.mxu0 0.0
    %3049 = vmatpush1.msra.mxu0 0.0
    %3050 = vmatprep.subr.mxu0 0.0
    %3051 = vmatpush1.msra.mxu0 0.0
    %3052 = vmatprep.subr.mxu0 0.0
    %3053 = vmatpush1.msra.mxu0 0.0
    %3054 = vmatprep.subr.mxu0 0.0
    %3055 = vmatpush1.msra.mxu0 0.0
    %3056 = vmatprep.subr.mxu0 0.0
    %3057 = vmatpush1.msra.mxu0 0.0
    %3058 = vmatprep.subr.mxu0 0.0
    %3059 = vmatpush1.msra.mxu0 0.0
    %3060 = vmatprep.subr.mxu0 0.0
    %3061 = vmatpush1.msra.mxu0 0.0
    %3062 = vmatprep.subr.mxu0 0.0
    %3063 = vmatpush1.msra.mxu0 0.0
    %3064 = vmatprep.subr.mxu0 0.0
    %3065 = vmatpush1.msra.mxu0 0.0
    %3066 = vmatprep.subr.mxu0 0.0
    %3067 = vmatpush1.msra.mxu0 0.0
    %3068 = vmatprep.subr.mxu0 0.0
    %3069 = vmatpush1.msra.mxu0 0.0
    %3070 = vmatprep.subr.mxu0 0.0
    %3071 = vmatpush1.msra.mxu0 0.0
    %3072 = vmatprep.subr.mxu0 0.0
    %3073 = vmatpush1.msra.mxu0 0.0
    %3074 = vmatprep.mubr.f32.mxu0 0.0
    %3075 = vmatmul.mubr.f32.gmra.mrb[0].mxu0 %v3008
    %v3076 = vpop.f32.mrb[0].mxu0
    %v3077 = vadd.f32 %v87, %v3076
    %v3078 = vpop.f32.mrb[0].mxu0
    %3079 = vdwg.mxu0
    %v3080 = vtanh.pop %v3077
    %v3082 = vsel %vm97, %v3080, 0
    %3084 = vmatprep.subr.mxu0 0.0
    %3085 = vmatpush1.msra.mxu0 %v78
    %3086 = vmatprep.subr.mxu0 0.0
    %3087 = vmatpush1.msra.mxu0 %v79
    %3088 = vmatprep.subr.mxu0 0.0
    %3089 = vmatpush1.msra.mxu0 %v80
    %3090 = vmatprep.subr.mxu0 0.0
    %3091 = vmatpush1.msra.mxu0 %v81
    %3092 = vmatprep.subr.mxu0 0.0
    %3093 = vmatpush1.msra.mxu0 0.0
    %3094 = vmatprep.subr.mxu0 0.0
    %3095 = vmatpush1.msra.mxu0 0.0
    %3096 = vmatprep.subr.mxu0 0.0
    %3097 = vmatpush1.msra.mxu0 0.0
    %3098 = vmatprep.subr.mxu0 0.0
    %3099 = vmatpush1.msra.mxu0 0.0
    %3100 = vmatprep.subr.mxu0 0.0
    %3101 = vmatpush1.msra.mxu0 0.0
    %3102 = vmatprep.subr.mxu0 0.0
    %3103 = vmatpush1.msra.mxu0 0.0
    %3104 = vmatprep.subr.mxu0 0.0
    %3105 = vmatpush1.msra.mxu0 0.0
    %3106 = vmatprep.subr.mxu0 0.0
    %3107 = vmatpush1.msra.mxu0 0.0
    %3108 = vmatprep.subr.mxu0 0.0
    %3109 = vmatpush1.msra.mxu0 0.0
    %3110 = vmatprep.subr.mxu0 0.0
    %3111 = vmatpush1.msra.mxu0 0.0
    %3112 = vmatprep.subr.mxu0 0.0
    %3113 = vmatpush1.msra.mxu0 0.0
    %3114 = vmatprep.subr.mxu0 0.0
    %3115 = vmatpush1.msra.mxu0 0.0
    %3116 = vmatprep.subr.mxu0 0.0
    %3117 = vmatpush1.msra.mxu0 0.0
    %3118 = vmatprep.subr.mxu0 0.0
    %3119 = vmatpush1.msra.mxu0 0.0
    %3120 = vmatprep.subr.mxu0 0.0
    %3121 = vmatpush1.msra.mxu0 0.0
    %3122 = vmatprep.subr.mxu0 0.0
    %3123 = vmatpush1.msra.mxu0 0.0
    %3124 = vmatprep.subr.mxu0 0.0
    %3125 = vmatpush1.msra.mxu0 0.0
    %3126 = vmatprep.subr.mxu0 0.0
    %3127 = vmatpush1.msra.mxu0 0.0
    %3128 = vmatprep.subr.mxu0 0.0
    %3129 = vmatpush1.msra.mxu0 0.0
    %3130 = vmatprep.subr.mxu0 0.0
    %3131 = vmatpush1.msra.mxu0 0.0
    %3132 = vmatprep.subr.mxu0 0.0
    %3133 = vmatpush1.msra.mxu0 0.0
    %3134 = vmatprep.subr.mxu0 0.0
    %3135 = vmatpush1.msra.mxu0 0.0
    %3136 = vmatprep.subr.mxu0 0.0
    %3137 = vmatpush1.msra.mxu0 0.0
    %3138 = vmatprep.subr.mxu0 0.0
    %3139 = vmatpush1.msra.mxu0 0.0
    %3140 = vmatprep.subr.mxu0 0.0
    %3141 = vmatpush1.msra.mxu0 0.0
    %3142 = vmatprep.subr.mxu0 0.0
    %3143 = vmatpush1.msra.mxu0 0.0
    %3144 = vmatprep.subr.mxu0 0.0
    %3145 = vmatpush1.msra.mxu0 0.0
    %3146 = vmatprep.subr.mxu0 0.0
    %3147 = vmatpush1.msra.mxu0 0.0
    %3148 = vmatprep.mubr.f32.mxu0 0.0
    %3149 = vmatmul.mubr.f32.gmra.mrb[0].mxu0 %v3082
    %v3150 = vpop.f32.mrb[0].mxu0
    %v3151 = vadd.f32 %v94, %v3150
    %v3152 = vpop.f32.mrb[0].mxu0
    %3153 = vdwg.mxu0
    %v3154 = vmul.f32 %v2852, 2.0
    %v3155 = vadd.f32 %v2702, %v3154
    %v3156 = vmul.f32 %v3001, 2.0
    %v3157 = vadd.f32 %v3155, %v3156
    %v3158 = vadd.f32 %v3157, %v3151
    %v3159 = vstv %s2557
    %v3160 = vmul.f32 %v3159, %v3158
    %v3161 = vadd.f32 %v2548, %v3160
    %s3162 = scalar_lea.vmem [#allocation10], 40
    %3163 = vst.msk [vmem:[%s3162] sm:$0xff] %vm97, %v3161
    %s3164 = sld [smem:[#allocation2 + $0x6]]
    %s3165 = sld [smem:[#allocation2 + $0x5]]
    %s3166 = ssub.f32 %s3164, %s3165
    %s3167 = smul.f32 %s3166, 0.5
    %v3168 = vrcp.pop 6.0
    %s3169 = vtos %v3168
    %s3170 = smul.f32 %s3166, %s3169
    %v3172 = vsel %vm97, %v3161, 0
    %3174 = vmatprep.subr.mxu0 0.0
    %3175 = vmatpush1.msra.mxu0 %v74
    %3176 = vmatprep.subr.mxu0 0.0
    %3177 = vmatpush1.msra.mxu0 %v75
    %3178 = vmatprep.subr.mxu0 0.0
    %3179 = vmatpush1.msra.mxu0 %v76
    %3180 = vmatprep.subr.mxu0 0.0
    %3181 = vmatpush1.msra.mxu0 %v77
    %3182 = vmatprep.subr.mxu0 0.0
    %3183 = vmatpush1.msra.mxu0 0.0
    %3184 = vmatprep.subr.mxu0 0.0
    %3185 = vmatpush1.msra.mxu0 0.0
    %3186 = vmatprep.subr.mxu0 0.0
    %3187 = vmatpush1.msra.mxu0 0.0
    %3188 = vmatprep.subr.mxu0 0.0
    %3189 = vmatpush1.msra.mxu0 0.0
    %3190 = vmatprep.subr.mxu0 0.0
    %3191 = vmatpush1.msra.mxu0 0.0
    %3192 = vmatprep.subr.mxu0 0.0
    %3193 = vmatpush1.msra.mxu0 0.0
    %3194 = vmatprep.subr.mxu0 0.0
    %3195 = vmatpush1.msra.mxu0 0.0
    %3196 = vmatprep.subr.mxu0 0.0
    %3197 = vmatpush1.msra.mxu0 0.0
    %3198 = vmatprep.subr.mxu0 0.0
    %3199 = vmatpush1.msra.mxu0 0.0
    %3200 = vmatprep.subr.mxu0 0.0
    %3201 = vmatpush1.msra.mxu0 0.0
    %3202 = vmatprep.subr.mxu0 0.0
    %3203 = vmatpush1.msra.mxu0 0.0
    %3204 = vmatprep.subr.mxu0 0.0
    %3205 = vmatpush1.msra.mxu0 0.0
    %3206 = vmatprep.subr.mxu0 0.0
    %3207 = vmatpush1.msra.mxu0 0.0
    %3208 = vmatprep.subr.mxu0 0.0
    %3209 = vmatpush1.msra.mxu0 0.0
    %3210 = vmatprep.subr.mxu0 0.0
    %3211 = vmatpush1.msra.mxu0 0.0
    %3212 = vmatprep.subr.mxu0 0.0
    %3213 = vmatpush1.msra.mxu0 0.0
    %3214 = vmatprep.subr.mxu0 0.0
    %3215 = vmatpush1.msra.mxu0 0.0
    %3216 = vmatprep.subr.mxu0 0.0
    %3217 = vmatpush1.msra.mxu0 0.0
    %3218 = vmatprep.subr.mxu0 0.0
    %3219 = vmatpush1.msra.mxu0 0.0
    %3220 = vmatprep.subr.mxu0 0.0
    %3221 = vmatpush1.msra.mxu0 0.0
    %3222 = vmatprep.subr.mxu0 0.0
    %3223 = vmatpush1.msra.mxu0 0.0
    %3224 = vmatprep.subr.mxu0 0.0
    %3225 = vmatpush1.msra.mxu0 0.0
    %3226 = vmatprep.subr.mxu0 0.0
    %3227 = vmatpush1.msra.mxu0 0.0
    %3228 = vmatprep.subr.mxu0 0.0
    %3229 = vmatpush1.msra.mxu0 0.0
    %3230 = vmatprep.subr.mxu0 0.0
    %3231 = vmatpush1.msra.mxu0 0.0
    %3232 = vmatprep.subr.mxu0 0.0
    %3233 = vmatpush1.msra.mxu0 0.0
    %3234 = vmatprep.subr.mxu0 0.0
    %3235 = vmatpush1.msra.mxu0 0.0
    %3236 = vmatprep.subr.mxu0 0.0
    %3237 = vmatpush1.msra.mxu0 0.0
    %3238 = vmatprep.mubr.f32.mxu0 0.0
    %3239 = vmatmul.mubr.f32.gmra.mrb[0].mxu0 %v3172
    %v3240 = vpop.f32.mrb[0].mxu0
    %v3241 = vadd.f32 %v87, %v3240
    %v3242 = vpop.f32.mrb[0].mxu0
    %3243 = vdwg.mxu0
    %v3244 = vtanh.pop %v3241
    %v3246 = vsel %vm97, %v3244, 0
    %3248 = vmatprep.subr.mxu0 0.0
    %3249 = vmatpush1.msra.mxu0 %v78
    %3250 = vmatprep.subr.mxu0 0.0
    %3251 = vmatpush1.msra.mxu0 %v79
    %3252 = vmatprep.subr.mxu0 0.0
    %3253 = vmatpush1.msra.mxu0 %v80
    %3254 = vmatprep.subr.mxu0 0.0
    %3255 = vmatpush1.msra.mxu0 %v81
    %3256 = vmatprep.subr.mxu0 0.0
    %3257 = vmatpush1.msra.mxu0 0.0
    %3258 = vmatprep.subr.mxu0 0.0
    %3259 = vmatpush1.msra.mxu0 0.0
    %3260 = vmatprep.subr.mxu0 0.0
    %3261 = vmatpush1.msra.mxu0 0.0
    %3262 = vmatprep.subr.mxu0 0.0
    %3263 = vmatpush1.msra.mxu0 0.0
    %3264 = vmatprep.subr.mxu0 0.0
    %3265 = vmatpush1.msra.mxu0 0.0
    %3266 = vmatprep.subr.mxu0 0.0
    %3267 = vmatpush1.msra.mxu0 0.0
    %3268 = vmatprep.subr.mxu0 0.0
    %3269 = vmatpush1.msra.mxu0 0.0
    %3270 = vmatprep.subr.mxu0 0.0
    %3271 = vmatpush1.msra.mxu0 0.0
    %3272 = vmatprep.subr.mxu0 0.0
    %3273 = vmatpush1.msra.mxu0 0.0
    %3274 = vmatprep.subr.mxu0 0.0
    %3275 = vmatpush1.msra.mxu0 0.0
    %3276 = vmatprep.subr.mxu0 0.0
    %3277 = vmatpush1.msra.mxu0 0.0
    %3278 = vmatprep.subr.mxu0 0.0
    %3279 = vmatpush1.msra.mxu0 0.0
    %3280 = vmatprep.subr.mxu0 0.0
    %3281 = vmatpush1.msra.mxu0 0.0
    %3282 = vmatprep.subr.mxu0 0.0
    %3283 = vmatpush1.msra.mxu0 0.0
    %3284 = vmatprep.subr.mxu0 0.0
    %3285 = vmatpush1.msra.mxu0 0.0
    %3286 = vmatprep.subr.mxu0 0.0
    %3287 = vmatpush1.msra.mxu0 0.0
    %3288 = vmatprep.subr.mxu0 0.0
    %3289 = vmatpush1.msra.mxu0 0.0
    %3290 = vmatprep.subr.mxu0 0.0
    %3291 = vmatpush1.msra.mxu0 0.0
    %3292 = vmatprep.subr.mxu0 0.0
    %3293 = vmatpush1.msra.mxu0 0.0
    %3294 = vmatprep.subr.mxu0 0.0
    %3295 = vmatpush1.msra.mxu0 0.0
    %3296 = vmatprep.subr.mxu0 0.0
    %3297 = vmatpush1.msra.mxu0 0.0
    %3298 = vmatprep.subr.mxu0 0.0
    %3299 = vmatpush1.msra.mxu0 0.0
    %3300 = vmatprep.subr.mxu0 0.0
    %3301 = vmatpush1.msra.mxu0 0.0
    %3302 = vmatprep.subr.mxu0 0.0
    %3303 = vmatpush1.msra.mxu0 0.0
    %3304 = vmatprep.subr.mxu0 0.0
    %3305 = vmatpush1.msra.mxu0 0.0
    %3306 = vmatprep.subr.mxu0 0.0
    %3307 = vmatpush1.msra.mxu0 0.0
    %3308 = vmatprep.subr.mxu0 0.0
    %3309 = vmatpush1.msra.mxu0 0.0
    %3310 = vmatprep.subr.mxu0 0.0
    %3311 = vmatpush1.msra.mxu0 0.0
    %3312 = vmatprep.mubr.f32.mxu0 0.0
    %3313 = vmatmul.mubr.f32.gmra.mrb[0].mxu0 %v3246
    %v3314 = vpop.f32.mrb[0].mxu0
    %v3315 = vadd.f32 %v94, %v3314
    %v3316 = vpop.f32.mrb[0].mxu0
    %3317 = vdwg.mxu0
    %v3318 = vstv %s3167
    %v3319 = vmul.f32 %v3318, %v3315
    %v3320 = vadd.f32 %v3161, %v3319
    %v3322 = vsel %vm97, %v3320, 0
    %3324 = vmatprep.subr.mxu0 0.0
    %3325 = vmatpush1.msra.mxu0 %v74
    %3326 = vmatprep.subr.mxu0 0.0
    %3327 = vmatpush1.msra.mxu0 %v75
    %3328 = vmatprep.subr.mxu0 0.0
    %3329 = vmatpush1.msra.mxu0 %v76
    %3330 = vmatprep.subr.mxu0 0.0
    %3331 = vmatpush1.msra.mxu0 %v77
    %3332 = vmatprep.subr.mxu0 0.0
    %3333 = vmatpush1.msra.mxu0 0.0
    %3334 = vmatprep.subr.mxu0 0.0
    %3335 = vmatpush1.msra.mxu0 0.0
    %3336 = vmatprep.subr.mxu0 0.0
    %3337 = vmatpush1.msra.mxu0 0.0
    %3338 = vmatprep.subr.mxu0 0.0
    %3339 = vmatpush1.msra.mxu0 0.0
    %3340 = vmatprep.subr.mxu0 0.0
    %3341 = vmatpush1.msra.mxu0 0.0
    %3342 = vmatprep.subr.mxu0 0.0
    %3343 = vmatpush1.msra.mxu0 0.0
    %3344 = vmatprep.subr.mxu0 0.0
    %3345 = vmatpush1.msra.mxu0 0.0
    %3346 = vmatprep.subr.mxu0 0.0
    %3347 = vmatpush1.msra.mxu0 0.0
    %3348 = vmatprep.subr.mxu0 0.0
    %3349 = vmatpush1.msra.mxu0 0.0
    %3350 = vmatprep.subr.mxu0 0.0
    %3351 = vmatpush1.msra.mxu0 0.0
    %3352 = vmatprep.subr.mxu0 0.0
    %3353 = vmatpush1.msra.mxu0 0.0
    %3354 = vmatprep.subr.mxu0 0.0
    %3355 = vmatpush1.msra.mxu0 0.0
    %3356 = vmatprep.subr.mxu0 0.0
    %3357 = vmatpush1.msra.mxu0 0.0
    %3358 = vmatprep.subr.mxu0 0.0
    %3359 = vmatpush1.msra.mxu0 0.0
    %3360 = vmatprep.subr.mxu0 0.0
    %3361 = vmatpush1.msra.mxu0 0.0
    %3362 = vmatprep.subr.mxu0 0.0
    %3363 = vmatpush1.msra.mxu0 0.0
    %3364 = vmatprep.subr.mxu0 0.0
    %3365 = vmatpush1.msra.mxu0 0.0
    %3366 = vmatprep.subr.mxu0 0.0
    %3367 = vmatpush1.msra.mxu0 0.0
    %3368 = vmatprep.subr.mxu0 0.0
    %3369 = vmatpush1.msra.mxu0 0.0
    %3370 = vmatprep.subr.mxu0 0.0
    %3371 = vmatpush1.msra.mxu0 0.0
    %3372 = vmatprep.subr.mxu0 0.0
    %3373 = vmatpush1.msra.mxu0 0.0
    %3374 = vmatprep.subr.mxu0 0.0
    %3375 = vmatpush1.msra.mxu0 0.0
    %3376 = vmatprep.subr.mxu0 0.0
    %3377 = vmatpush1.msra.mxu0 0.0
    %3378 = vmatprep.subr.mxu0 0.0
    %3379 = vmatpush1.msra.mxu0 0.0
    %3380 = vmatprep.subr.mxu0 0.0
    %3381 = vmatpush1.msra.mxu0 0.0
    %3382 = vmatprep.subr.mxu0 0.0
    %3383 = vmatpush1.msra.mxu0 0.0
    %3384 = vmatprep.subr.mxu0 0.0
    %3385 = vmatpush1.msra.mxu0 0.0
    %3386 = vmatprep.subr.mxu0 0.0
    %3387 = vmatpush1.msra.mxu0 0.0
    %3388 = vmatprep.mubr.f32.mxu0 0.0
    %3389 = vmatmul.mubr.f32.gmra.mrb[0].mxu0 %v3322
    %v3390 = vpop.f32.mrb[0].mxu0
    %v3391 = vadd.f32 %v87, %v3390
    %v3392 = vpop.f32.mrb[0].mxu0
    %3393 = vdwg.mxu0
    %v3394 = vtanh.pop %v3391
    %v3396 = vsel %vm97, %v3394, 0
    %3398 = vmatprep.subr.mxu0 0.0
    %3399 = vmatpush1.msra.mxu0 %v78
    %3400 = vmatprep.subr.mxu0 0.0
    %3401 = vmatpush1.msra.mxu0 %v79
    %3402 = vmatprep.subr.mxu0 0.0
    %3403 = vmatpush1.msra.mxu0 %v80
    %3404 = vmatprep.subr.mxu0 0.0
    %3405 = vmatpush1.msra.mxu0 %v81
    %3406 = vmatprep.subr.mxu0 0.0
    %3407 = vmatpush1.msra.mxu0 0.0
    %3408 = vmatprep.subr.mxu0 0.0
    %3409 = vmatpush1.msra.mxu0 0.0
    %3410 = vmatprep.subr.mxu0 0.0
    %3411 = vmatpush1.msra.mxu0 0.0
    %3412 = vmatprep.subr.mxu0 0.0
    %3413 = vmatpush1.msra.mxu0 0.0
    %3414 = vmatprep.subr.mxu0 0.0
    %3415 = vmatpush1.msra.mxu0 0.0
    %3416 = vmatprep.subr.mxu0 0.0
    %3417 = vmatpush1.msra.mxu0 0.0
    %3418 = vmatprep.subr.mxu0 0.0
    %3419 = vmatpush1.msra.mxu0 0.0
    %3420 = vmatprep.subr.mxu0 0.0
    %3421 = vmatpush1.msra.mxu0 0.0
    %3422 = vmatprep.subr.mxu0 0.0
    %3423 = vmatpush1.msra.mxu0 0.0
    %3424 = vmatprep.subr.mxu0 0.0
    %3425 = vmatpush1.msra.mxu0 0.0
    %3426 = vmatprep.subr.mxu0 0.0
    %3427 = vmatpush1.msra.mxu0 0.0
    %3428 = vmatprep.subr.mxu0 0.0
    %3429 = vmatpush1.msra.mxu0 0.0
    %3430 = vmatprep.subr.mxu0 0.0
    %3431 = vmatpush1.msra.mxu0 0.0
    %3432 = vmatprep.subr.mxu0 0.0
    %3433 = vmatpush1.msra.mxu0 0.0
    %3434 = vmatprep.subr.mxu0 0.0
    %3435 = vmatpush1.msra.mxu0 0.0
    %3436 = vmatprep.subr.mxu0 0.0
    %3437 = vmatpush1.msra.mxu0 0.0
    %3438 = vmatprep.subr.mxu0 0.0
    %3439 = vmatpush1.msra.mxu0 0.0
    %3440 = vmatprep.subr.mxu0 0.0
    %3441 = vmatpush1.msra.mxu0 0.0
    %3442 = vmatprep.subr.mxu0 0.0
    %3443 = vmatpush1.msra.mxu0 0.0
    %3444 = vmatprep.subr.mxu0 0.0
    %3445 = vmatpush1.msra.mxu0 0.0
    %3446 = vmatprep.subr.mxu0 0.0
    %3447 = vmatpush1.msra.mxu0 0.0
    %3448 = vmatprep.subr.mxu0 0.0
    %3449 = vmatpush1.msra.mxu0 0.0
    %3450 = vmatprep.subr.mxu0 0.0
    %3451 = vmatpush1.msra.mxu0 0.0
    %3452 = vmatprep.subr.mxu0 0.0
    %3453 = vmatpush1.msra.mxu0 0.0
    %3454 = vmatprep.subr.mxu0 0.0
    %3455 = vmatpush1.msra.mxu0 0.0
    %3456 = vmatprep.subr.mxu0 0.0
    %3457 = vmatpush1.msra.mxu0 0.0
    %3458 = vmatprep.subr.mxu0 0.0
    %3459 = vmatpush1.msra.mxu0 0.0
    %3460 = vmatprep.subr.mxu0 0.0
    %3461 = vmatpush1.msra.mxu0 0.0
    %3462 = vmatprep.mubr.f32.mxu0 0.0
    %3463 = vmatmul.mubr.f32.gmra.mrb[0].mxu0 %v3396
    %v3464 = vpop.f32.mrb[0].mxu0
    %v3465 = vadd.f32 %v94, %v3464
    %v3466 = vpop.f32.mrb[0].mxu0
    %3467 = vdwg.mxu0
    %v3468 = vmul.f32 %v3318, %v3465
    %v3469 = vadd.f32 %v3161, %v3468
    %v3471 = vsel %vm97, %v3469, 0
    %3473 = vmatprep.subr.mxu0 0.0
    %3474 = vmatpush1.msra.mxu0 %v74
    %3475 = vmatprep.subr.mxu0 0.0
    %3476 = vmatpush1.msra.mxu0 %v75
    %3477 = vmatprep.subr.mxu0 0.0
    %3478 = vmatpush1.msra.mxu0 %v76
    %3479 = vmatprep.subr.mxu0 0.0
    %3480 = vmatpush1.msra.mxu0 %v77
    %3481 = vmatprep.subr.mxu0 0.0
    %3482 = vmatpush1.msra.mxu0 0.0
    %3483 = vmatprep.subr.mxu0 0.0
    %3484 = vmatpush1.msra.mxu0 0.0
    %3485 = vmatprep.subr.mxu0 0.0
    %3486 = vmatpush1.msra.mxu0 0.0
    %3487 = vmatprep.subr.mxu0 0.0
    %3488 = vmatpush1.msra.mxu0 0.0
    %3489 = vmatprep.subr.mxu0 0.0
    %3490 = vmatpush1.msra.mxu0 0.0
    %3491 = vmatprep.subr.mxu0 0.0
    %3492 = vmatpush1.msra.mxu0 0.0
    %3493 = vmatprep.subr.mxu0 0.0
    %3494 = vmatpush1.msra.mxu0 0.0
    %3495 = vmatprep.subr.mxu0 0.0
    %3496 = vmatpush1.msra.mxu0 0.0
    %3497 = vmatprep.subr.mxu0 0.0
    %3498 = vmatpush1.msra.mxu0 0.0
    %3499 = vmatprep.subr.mxu0 0.0
    %3500 = vmatpush1.msra.mxu0 0.0
    %3501 = vmatprep.subr.mxu0 0.0
    %3502 = vmatpush1.msra.mxu0 0.0
    %3503 = vmatprep.subr.mxu0 0.0
    %3504 = vmatpush1.msra.mxu0 0.0
    %3505 = vmatprep.subr.mxu0 0.0
    %3506 = vmatpush1.msra.mxu0 0.0
    %3507 = vmatprep.subr.mxu0 0.0
    %3508 = vmatpush1.msra.mxu0 0.0
    %3509 = vmatprep.subr.mxu0 0.0
    %3510 = vmatpush1.msra.mxu0 0.0
    %3511 = vmatprep.subr.mxu0 0.0
    %3512 = vmatpush1.msra.mxu0 0.0
    %3513 = vmatprep.subr.mxu0 0.0
    %3514 = vmatpush1.msra.mxu0 0.0
    %3515 = vmatprep.subr.mxu0 0.0
    %3516 = vmatpush1.msra.mxu0 0.0
    %3517 = vmatprep.subr.mxu0 0.0
    %3518 = vmatpush1.msra.mxu0 0.0
    %3519 = vmatprep.subr.mxu0 0.0
    %3520 = vmatpush1.msra.mxu0 0.0
    %3521 = vmatprep.subr.mxu0 0.0
    %3522 = vmatpush1.msra.mxu0 0.0
    %3523 = vmatprep.subr.mxu0 0.0
    %3524 = vmatpush1.msra.mxu0 0.0
    %3525 = vmatprep.subr.mxu0 0.0
    %3526 = vmatpush1.msra.mxu0 0.0
    %3527 = vmatprep.subr.mxu0 0.0
    %3528 = vmatpush1.msra.mxu0 0.0
    %3529 = vmatprep.subr.mxu0 0.0
    %3530 = vmatpush1.msra.mxu0 0.0
    %3531 = vmatprep.subr.mxu0 0.0
    %3532 = vmatpush1.msra.mxu0 0.0
    %3533 = vmatprep.subr.mxu0 0.0
    %3534 = vmatpush1.msra.mxu0 0.0
    %3535 = vmatprep.subr.mxu0 0.0
    %3536 = vmatpush1.msra.mxu0 0.0
    %3537 = vmatprep.mubr.f32.mxu0 0.0
    %3538 = vmatmul.mubr.f32.gmra.mrb[0].mxu0 %v3471
    %v3539 = vpop.f32.mrb[0].mxu0
    %v3540 = vadd.f32 %v87, %v3539
    %v3541 = vpop.f32.mrb[0].mxu0
    %3542 = vdwg.mxu0
    %v3543 = vtanh.pop %v3540
    %v3545 = vsel %vm97, %v3543, 0
    %3547 = vmatprep.subr.mxu0 0.0
    %3548 = vmatpush1.msra.mxu0 %v78
    %3549 = vmatprep.subr.mxu0 0.0
    %3550 = vmatpush1.msra.mxu0 %v79
    %3551 = vmatprep.subr.mxu0 0.0
    %3552 = vmatpush1.msra.mxu0 %v80
    %3553 = vmatprep.subr.mxu0 0.0
    %3554 = vmatpush1.msra.mxu0 %v81
    %3555 = vmatprep.subr.mxu0 0.0
    %3556 = vmatpush1.msra.mxu0 0.0
    %3557 = vmatprep.subr.mxu0 0.0
    %3558 = vmatpush1.msra.mxu0 0.0
    %3559 = vmatprep.subr.mxu0 0.0
    %3560 = vmatpush1.msra.mxu0 0.0
    %3561 = vmatprep.subr.mxu0 0.0
    %3562 = vmatpush1.msra.mxu0 0.0
    %3563 = vmatprep.subr.mxu0 0.0
    %3564 = vmatpush1.msra.mxu0 0.0
    %3565 = vmatprep.subr.mxu0 0.0
    %3566 = vmatpush1.msra.mxu0 0.0
    %3567 = vmatprep.subr.mxu0 0.0
    %3568 = vmatpush1.msra.mxu0 0.0
    %3569 = vmatprep.subr.mxu0 0.0
    %3570 = vmatpush1.msra.mxu0 0.0
    %3571 = vmatprep.subr.mxu0 0.0
    %3572 = vmatpush1.msra.mxu0 0.0
    %3573 = vmatprep.subr.mxu0 0.0
    %3574 = vmatpush1.msra.mxu0 0.0
    %3575 = vmatprep.subr.mxu0 0.0
    %3576 = vmatpush1.msra.mxu0 0.0
    %3577 = vmatprep.subr.mxu0 0.0
    %3578 = vmatpush1.msra.mxu0 0.0
    %3579 = vmatprep.subr.mxu0 0.0
    %3580 = vmatpush1.msra.mxu0 0.0
    %3581 = vmatprep.subr.mxu0 0.0
    %3582 = vmatpush1.msra.mxu0 0.0
    %3583 = vmatprep.subr.mxu0 0.0
    %3584 = vmatpush1.msra.mxu0 0.0
    %3585 = vmatprep.subr.mxu0 0.0
    %3586 = vmatpush1.msra.mxu0 0.0
    %3587 = vmatprep.subr.mxu0 0.0
    %3588 = vmatpush1.msra.mxu0 0.0
    %3589 = vmatprep.subr.mxu0 0.0
    %3590 = vmatpush1.msra.mxu0 0.0
    %3591 = vmatprep.subr.mxu0 0.0
    %3592 = vmatpush1.msra.mxu0 0.0
    %3593 = vmatprep.subr.mxu0 0.0
    %3594 = vmatpush1.msra.mxu0 0.0
    %3595 = vmatprep.subr.mxu0 0.0
    %3596 = vmatpush1.msra.mxu0 0.0
    %3597 = vmatprep.subr.mxu0 0.0
    %3598 = vmatpush1.msra.mxu0 0.0
    %3599 = vmatprep.subr.mxu0 0.0
    %3600 = vmatpush1.msra.mxu0 0.0
    %3601 = vmatprep.subr.mxu0 0.0
    %3602 = vmatpush1.msra.mxu0 0.0
    %3603 = vmatprep.subr.mxu0 0.0
    %3604 = vmatpush1.msra.mxu0 0.0
    %3605 = vmatprep.subr.mxu0 0.0
    %3606 = vmatpush1.msra.mxu0 0.0
    %3607 = vmatprep.subr.mxu0 0.0
    %3608 = vmatpush1.msra.mxu0 0.0
    %3609 = vmatprep.subr.mxu0 0.0
    %3610 = vmatpush1.msra.mxu0 0.0
    %3611 = vmatprep.mubr.f32.mxu0 0.0
    %3612 = vmatmul.mubr.f32.gmra.mrb[0].mxu0 %v3545
    %v3613 = vpop.f32.mrb[0].mxu0
    %v3614 = vadd.f32 %v94, %v3613
    %v3615 = vpop.f32.mrb[0].mxu0
    %3616 = vdwg.mxu0
    %v3617 = vstv %s3166
    %v3618 = vmul.f32 %v3617, %v3614
    %v3619 = vadd.f32 %v3161, %v3618
    %v3621 = vsel %vm97, %v3619, 0
    %3623 = vmatprep.subr.mxu0 0.0
    %3624 = vmatpush1.msra.mxu0 %v74
    %3625 = vmatprep.subr.mxu0 0.0
    %3626 = vmatpush1.msra.mxu0 %v75
    %3627 = vmatprep.subr.mxu0 0.0
    %3628 = vmatpush1.msra.mxu0 %v76
    %3629 = vmatprep.subr.mxu0 0.0
    %3630 = vmatpush1.msra.mxu0 %v77
    %3631 = vmatprep.subr.mxu0 0.0
    %3632 = vmatpush1.msra.mxu0 0.0
    %3633 = vmatprep.subr.mxu0 0.0
    %3634 = vmatpush1.msra.mxu0 0.0
    %3635 = vmatprep.subr.mxu0 0.0
    %3636 = vmatpush1.msra.mxu0 0.0
    %3637 = vmatprep.subr.mxu0 0.0
    %3638 = vmatpush1.msra.mxu0 0.0
    %3639 = vmatprep.subr.mxu0 0.0
    %3640 = vmatpush1.msra.mxu0 0.0
    %3641 = vmatprep.subr.mxu0 0.0
    %3642 = vmatpush1.msra.mxu0 0.0
    %3643 = vmatprep.subr.mxu0 0.0
    %3644 = vmatpush1.msra.mxu0 0.0
    %3645 = vmatprep.subr.mxu0 0.0
    %3646 = vmatpush1.msra.mxu0 0.0
    %3647 = vmatprep.subr.mxu0 0.0
    %3648 = vmatpush1.msra.mxu0 0.0
    %3649 = vmatprep.subr.mxu0 0.0
    %3650 = vmatpush1.msra.mxu0 0.0
    %3651 = vmatprep.subr.mxu0 0.0
    %3652 = vmatpush1.msra.mxu0 0.0
    %3653 = vmatprep.subr.mxu0 0.0
    %3654 = vmatpush1.msra.mxu0 0.0
    %3655 = vmatprep.subr.mxu0 0.0
    %3656 = vmatpush1.msra.mxu0 0.0
    %3657 = vmatprep.subr.mxu0 0.0
    %3658 = vmatpush1.msra.mxu0 0.0
    %3659 = vmatprep.subr.mxu0 0.0
    %3660 = vmatpush1.msra.mxu0 0.0
    %3661 = vmatprep.subr.mxu0 0.0
    %3662 = vmatpush1.msra.mxu0 0.0
    %3663 = vmatprep.subr.mxu0 0.0
    %3664 = vmatpush1.msra.mxu0 0.0
    %3665 = vmatprep.subr.mxu0 0.0
    %3666 = vmatpush1.msra.mxu0 0.0
    %3667 = vmatprep.subr.mxu0 0.0
    %3668 = vmatpush1.msra.mxu0 0.0
    %3669 = vmatprep.subr.mxu0 0.0
    %3670 = vmatpush1.msra.mxu0 0.0
    %3671 = vmatprep.subr.mxu0 0.0
    %3672 = vmatpush1.msra.mxu0 0.0
    %3673 = vmatprep.subr.mxu0 0.0
    %3674 = vmatpush1.msra.mxu0 0.0
    %3675 = vmatprep.subr.mxu0 0.0
    %3676 = vmatpush1.msra.mxu0 0.0
    %3677 = vmatprep.subr.mxu0 0.0
    %3678 = vmatpush1.msra.mxu0 0.0
    %3679 = vmatprep.subr.mxu0 0.0
    %3680 = vmatpush1.msra.mxu0 0.0
    %3681 = vmatprep.subr.mxu0 0.0
    %3682 = vmatpush1.msra.mxu0 0.0
    %3683 = vmatprep.subr.mxu0 0.0
    %3684 = vmatpush1.msra.mxu0 0.0
    %3685 = vmatprep.subr.mxu0 0.0
    %3686 = vmatpush1.msra.mxu0 0.0
    %3687 = vmatprep.mubr.f32.mxu0 0.0
    %3688 = vmatmul.mubr.f32.gmra.mrb[0].mxu0 %v3621
    %v3689 = vpop.f32.mrb[0].mxu0
    %v3690 = vadd.f32 %v87, %v3689
    %v3691 = vpop.f32.mrb[0].mxu0
    %3692 = vdwg.mxu0
    %v3693 = vtanh.pop %v3690
    %v3695 = vsel %vm97, %v3693, 0
    %3697 = vmatprep.subr.mxu0 0.0
    %3698 = vmatpush1.msra.mxu0 %v78
    %3699 = vmatprep.subr.mxu0 0.0
    %3700 = vmatpush1.msra.mxu0 %v79
    %3701 = vmatprep.subr.mxu0 0.0
    %3702 = vmatpush1.msra.mxu0 %v80
    %3703 = vmatprep.subr.mxu0 0.0
    %3704 = vmatpush1.msra.mxu0 %v81
    %3705 = vmatprep.subr.mxu0 0.0
    %3706 = vmatpush1.msra.mxu0 0.0
    %3707 = vmatprep.subr.mxu0 0.0
    %3708 = vmatpush1.msra.mxu0 0.0
    %3709 = vmatprep.subr.mxu0 0.0
    %3710 = vmatpush1.msra.mxu0 0.0
    %3711 = vmatprep.subr.mxu0 0.0
    %3712 = vmatpush1.msra.mxu0 0.0
    %3713 = vmatprep.subr.mxu0 0.0
    %3714 = vmatpush1.msra.mxu0 0.0
    %3715 = vmatprep.subr.mxu0 0.0
    %3716 = vmatpush1.msra.mxu0 0.0
    %3717 = vmatprep.subr.mxu0 0.0
    %3718 = vmatpush1.msra.mxu0 0.0
    %3719 = vmatprep.subr.mxu0 0.0
    %3720 = vmatpush1.msra.mxu0 0.0
    %3721 = vmatprep.subr.mxu0 0.0
    %3722 = vmatpush1.msra.mxu0 0.0
    %3723 = vmatprep.subr.mxu0 0.0
    %3724 = vmatpush1.msra.mxu0 0.0
    %3725 = vmatprep.subr.mxu0 0.0
    %3726 = vmatpush1.msra.mxu0 0.0
    %3727 = vmatprep.subr.mxu0 0.0
    %3728 = vmatpush1.msra.mxu0 0.0
    %3729 = vmatprep.subr.mxu0 0.0
    %3730 = vmatpush1.msra.mxu0 0.0
    %3731 = vmatprep.subr.mxu0 0.0
    %3732 = vmatpush1.msra.mxu0 0.0
    %3733 = vmatprep.subr.mxu0 0.0
    %3734 = vmatpush1.msra.mxu0 0.0
    %3735 = vmatprep.subr.mxu0 0.0
    %3736 = vmatpush1.msra.mxu0 0.0
    %3737 = vmatprep.subr.mxu0 0.0
    %3738 = vmatpush1.msra.mxu0 0.0
    %3739 = vmatprep.subr.mxu0 0.0
    %3740 = vmatpush1.msra.mxu0 0.0
    %3741 = vmatprep.subr.mxu0 0.0
    %3742 = vmatpush1.msra.mxu0 0.0
    %3743 = vmatprep.subr.mxu0 0.0
    %3744 = vmatpush1.msra.mxu0 0.0
    %3745 = vmatprep.subr.mxu0 0.0
    %3746 = vmatpush1.msra.mxu0 0.0
    %3747 = vmatprep.subr.mxu0 0.0
    %3748 = vmatpush1.msra.mxu0 0.0
    %3749 = vmatprep.subr.mxu0 0.0
    %3750 = vmatpush1.msra.mxu0 0.0
    %3751 = vmatprep.subr.mxu0 0.0
    %3752 = vmatpush1.msra.mxu0 0.0
    %3753 = vmatprep.subr.mxu0 0.0
    %3754 = vmatpush1.msra.mxu0 0.0
    %3755 = vmatprep.subr.mxu0 0.0
    %3756 = vmatpush1.msra.mxu0 0.0
    %3757 = vmatprep.subr.mxu0 0.0
    %3758 = vmatpush1.msra.mxu0 0.0
    %3759 = vmatprep.subr.mxu0 0.0
    %3760 = vmatpush1.msra.mxu0 0.0
    %3761 = vmatprep.mubr.f32.mxu0 0.0
    %3762 = vmatmul.mubr.f32.gmra.mrb[0].mxu0 %v3695
    %v3763 = vpop.f32.mrb[0].mxu0
    %v3764 = vadd.f32 %v94, %v3763
    %v3765 = vpop.f32.mrb[0].mxu0
    %3766 = vdwg.mxu0
    %v3767 = vmul.f32 %v3465, 2.0
    %v3768 = vadd.f32 %v3315, %v3767
    %v3769 = vmul.f32 %v3614, 2.0
    %v3770 = vadd.f32 %v3768, %v3769
    %v3771 = vadd.f32 %v3770, %v3764
    %v3772 = vstv %s3170
    %v3773 = vmul.f32 %v3772, %v3771
    %v3774 = vadd.f32 %v3161, %v3773
    %s3775 = scalar_lea.vmem [#allocation10], 48
    %3776 = vst.msk [vmem:[%s3775] sm:$0xff] %vm97, %v3774
    %s3777 = sld [smem:[#allocation2 + $0x7]]
    %s3778 = sld [smem:[#allocation2 + $0x6]]
    %s3779 = ssub.f32 %s3777, %s3778
    %s3780 = smul.f32 %s3779, 0.5
    %v3781 = vrcp.pop 6.0
    %s3782 = vtos %v3781
    %s3783 = smul.f32 %s3779, %s3782
    %v3785 = vsel %vm97, %v3774, 0
    %3787 = vmatprep.subr.mxu0 0.0
    %3788 = vmatpush1.msra.mxu0 %v74
    %3789 = vmatprep.subr.mxu0 0.0
    %3790 = vmatpush1.msra.mxu0 %v75
    %3791 = vmatprep.subr.mxu0 0.0
    %3792 = vmatpush1.msra.mxu0 %v76
    %3793 = vmatprep.subr.mxu0 0.0
    %3794 = vmatpush1.msra.mxu0 %v77
    %3795 = vmatprep.subr.mxu0 0.0
    %3796 = vmatpush1.msra.mxu0 0.0
    %3797 = vmatprep.subr.mxu0 0.0
    %3798 = vmatpush1.msra.mxu0 0.0
    %3799 = vmatprep.subr.mxu0 0.0
    %3800 = vmatpush1.msra.mxu0 0.0
    %3801 = vmatprep.subr.mxu0 0.0
    %3802 = vmatpush1.msra.mxu0 0.0
    %3803 = vmatprep.subr.mxu0 0.0
    %3804 = vmatpush1.msra.mxu0 0.0
    %3805 = vmatprep.subr.mxu0 0.0
    %3806 = vmatpush1.msra.mxu0 0.0
    %3807 = vmatprep.subr.mxu0 0.0
    %3808 = vmatpush1.msra.mxu0 0.0
    %3809 = vmatprep.subr.mxu0 0.0
    %3810 = vmatpush1.msra.mxu0 0.0
    %3811 = vmatprep.subr.mxu0 0.0
    %3812 = vmatpush1.msra.mxu0 0.0
    %3813 = vmatprep.subr.mxu0 0.0
    %3814 = vmatpush1.msra.mxu0 0.0
    %3815 = vmatprep.subr.mxu0 0.0
    %3816 = vmatpush1.msra.mxu0 0.0
    %3817 = vmatprep.subr.mxu0 0.0
    %3818 = vmatpush1.msra.mxu0 0.0
    %3819 = vmatprep.subr.mxu0 0.0
    %3820 = vmatpush1.msra.mxu0 0.0
    %3821 = vmatprep.subr.mxu0 0.0
    %3822 = vmatpush1.msra.mxu0 0.0
    %3823 = vmatprep.subr.mxu0 0.0
    %3824 = vmatpush1.msra.mxu0 0.0
    %3825 = vmatprep.subr.mxu0 0.0
    %3826 = vmatpush1.msra.mxu0 0.0
    %3827 = vmatprep.subr.mxu0 0.0
    %3828 = vmatpush1.msra.mxu0 0.0
    %3829 = vmatprep.subr.mxu0 0.0
    %3830 = vmatpush1.msra.mxu0 0.0
    %3831 = vmatprep.subr.mxu0 0.0
    %3832 = vmatpush1.msra.mxu0 0.0
    %3833 = vmatprep.subr.mxu0 0.0
    %3834 = vmatpush1.msra.mxu0 0.0
    %3835 = vmatprep.subr.mxu0 0.0
    %3836 = vmatpush1.msra.mxu0 0.0
    %3837 = vmatprep.subr.mxu0 0.0
    %3838 = vmatpush1.msra.mxu0 0.0
    %3839 = vmatprep.subr.mxu0 0.0
    %3840 = vmatpush1.msra.mxu0 0.0
    %3841 = vmatprep.subr.mxu0 0.0
    %3842 = vmatpush1.msra.mxu0 0.0
    %3843 = vmatprep.subr.mxu0 0.0
    %3844 = vmatpush1.msra.mxu0 0.0
    %3845 = vmatprep.subr.mxu0 0.0
    %3846 = vmatpush1.msra.mxu0 0.0
    %3847 = vmatprep.subr.mxu0 0.0
    %3848 = vmatpush1.msra.mxu0 0.0
    %3849 = vmatprep.subr.mxu0 0.0
    %3850 = vmatpush1.msra.mxu0 0.0
    %3851 = vmatprep.mubr.f32.mxu0 0.0
    %3852 = vmatmul.mubr.f32.gmra.mrb[0].mxu0 %v3785
    %v3853 = vpop.f32.mrb[0].mxu0
    %v3854 = vadd.f32 %v87, %v3853
    %v3855 = vpop.f32.mrb[0].mxu0
    %3856 = vdwg.mxu0
    %v3857 = vtanh.pop %v3854
    %v3859 = vsel %vm97, %v3857, 0
    %3861 = vmatprep.subr.mxu0 0.0
    %3862 = vmatpush1.msra.mxu0 %v78
    %3863 = vmatprep.subr.mxu0 0.0
    %3864 = vmatpush1.msra.mxu0 %v79
    %3865 = vmatprep.subr.mxu0 0.0
    %3866 = vmatpush1.msra.mxu0 %v80
    %3867 = vmatprep.subr.mxu0 0.0
    %3868 = vmatpush1.msra.mxu0 %v81
    %3869 = vmatprep.subr.mxu0 0.0
    %3870 = vmatpush1.msra.mxu0 0.0
    %3871 = vmatprep.subr.mxu0 0.0
    %3872 = vmatpush1.msra.mxu0 0.0
    %3873 = vmatprep.subr.mxu0 0.0
    %3874 = vmatpush1.msra.mxu0 0.0
    %3875 = vmatprep.subr.mxu0 0.0
    %3876 = vmatpush1.msra.mxu0 0.0
    %3877 = vmatprep.subr.mxu0 0.0
    %3878 = vmatpush1.msra.mxu0 0.0
    %3879 = vmatprep.subr.mxu0 0.0
    %3880 = vmatpush1.msra.mxu0 0.0
    %3881 = vmatprep.subr.mxu0 0.0
    %3882 = vmatpush1.msra.mxu0 0.0
    %3883 = vmatprep.subr.mxu0 0.0
    %3884 = vmatpush1.msra.mxu0 0.0
    %3885 = vmatprep.subr.mxu0 0.0
    %3886 = vmatpush1.msra.mxu0 0.0
    %3887 = vmatprep.subr.mxu0 0.0
    %3888 = vmatpush1.msra.mxu0 0.0
    %3889 = vmatprep.subr.mxu0 0.0
    %3890 = vmatpush1.msra.mxu0 0.0
    %3891 = vmatprep.subr.mxu0 0.0
    %3892 = vmatpush1.msra.mxu0 0.0
    %3893 = vmatprep.subr.mxu0 0.0
    %3894 = vmatpush1.msra.mxu0 0.0
    %3895 = vmatprep.subr.mxu0 0.0
    %3896 = vmatpush1.msra.mxu0 0.0
    %3897 = vmatprep.subr.mxu0 0.0
    %3898 = vmatpush1.msra.mxu0 0.0
    %3899 = vmatprep.subr.mxu0 0.0
    %3900 = vmatpush1.msra.mxu0 0.0
    %3901 = vmatprep.subr.mxu0 0.0
    %3902 = vmatpush1.msra.mxu0 0.0
    %3903 = vmatprep.subr.mxu0 0.0
    %3904 = vmatpush1.msra.mxu0 0.0
    %3905 = vmatprep.subr.mxu0 0.0
    %3906 = vmatpush1.msra.mxu0 0.0
    %3907 = vmatprep.subr.mxu0 0.0
    %3908 = vmatpush1.msra.mxu0 0.0
    %3909 = vmatprep.subr.mxu0 0.0
    %3910 = vmatpush1.msra.mxu0 0.0
    %3911 = vmatprep.subr.mxu0 0.0
    %3912 = vmatpush1.msra.mxu0 0.0
    %3913 = vmatprep.subr.mxu0 0.0
    %3914 = vmatpush1.msra.mxu0 0.0
    %3915 = vmatprep.subr.mxu0 0.0
    %3916 = vmatpush1.msra.mxu0 0.0
    %3917 = vmatprep.subr.mxu0 0.0
    %3918 = vmatpush1.msra.mxu0 0.0
    %3919 = vmatprep.subr.mxu0 0.0
    %3920 = vmatpush1.msra.mxu0 0.0
    %3921 = vmatprep.subr.mxu0 0.0
    %3922 = vmatpush1.msra.mxu0 0.0
    %3923 = vmatprep.subr.mxu0 0.0
    %3924 = vmatpush1.msra.mxu0 0.0
    %3925 = vmatprep.mubr.f32.mxu0 0.0
    %3926 = vmatmul.mubr.f32.gmra.mrb[0].mxu0 %v3859
    %v3927 = vpop.f32.mrb[0].mxu0
    %v3928 = vadd.f32 %v94, %v3927
    %v3929 = vpop.f32.mrb[0].mxu0
    %3930 = vdwg.mxu0
    %v3931 = vstv %s3780
    %v3932 = vmul.f32 %v3931, %v3928
    %v3933 = vadd.f32 %v3774, %v3932
    %v3935 = vsel %vm97, %v3933, 0
    %3937 = vmatprep.subr.mxu0 0.0
    %3938 = vmatpush1.msra.mxu0 %v74
    %3939 = vmatprep.subr.mxu0 0.0
    %3940 = vmatpush1.msra.mxu0 %v75
    %3941 = vmatprep.subr.mxu0 0.0
    %3942 = vmatpush1.msra.mxu0 %v76
    %3943 = vmatprep.subr.mxu0 0.0
    %3944 = vmatpush1.msra.mxu0 %v77
    %3945 = vmatprep.subr.mxu0 0.0
    %3946 = vmatpush1.msra.mxu0 0.0
    %3947 = vmatprep.subr.mxu0 0.0
    %3948 = vmatpush1.msra.mxu0 0.0
    %3949 = vmatprep.subr.mxu0 0.0
    %3950 = vmatpush1.msra.mxu0 0.0
    %3951 = vmatprep.subr.mxu0 0.0
    %3952 = vmatpush1.msra.mxu0 0.0
    %3953 = vmatprep.subr.mxu0 0.0
    %3954 = vmatpush1.msra.mxu0 0.0
    %3955 = vmatprep.subr.mxu0 0.0
    %3956 = vmatpush1.msra.mxu0 0.0
    %3957 = vmatprep.subr.mxu0 0.0
    %3958 = vmatpush1.msra.mxu0 0.0
    %3959 = vmatprep.subr.mxu0 0.0
    %3960 = vmatpush1.msra.mxu0 0.0
    %3961 = vmatprep.subr.mxu0 0.0
    %3962 = vmatpush1.msra.mxu0 0.0
    %3963 = vmatprep.subr.mxu0 0.0
    %3964 = vmatpush1.msra.mxu0 0.0
    %3965 = vmatprep.subr.mxu0 0.0
    %3966 = vmatpush1.msra.mxu0 0.0
    %3967 = vmatprep.subr.mxu0 0.0
    %3968 = vmatpush1.msra.mxu0 0.0
    %3969 = vmatprep.subr.mxu0 0.0
    %3970 = vmatpush1.msra.mxu0 0.0
    %3971 = vmatprep.subr.mxu0 0.0
    %3972 = vmatpush1.msra.mxu0 0.0
    %3973 = vmatprep.subr.mxu0 0.0
    %3974 = vmatpush1.msra.mxu0 0.0
    %3975 = vmatprep.subr.mxu0 0.0
    %3976 = vmatpush1.msra.mxu0 0.0
    %3977 = vmatprep.subr.mxu0 0.0
    %3978 = vmatpush1.msra.mxu0 0.0
    %3979 = vmatprep.subr.mxu0 0.0
    %3980 = vmatpush1.msra.mxu0 0.0
    %3981 = vmatprep.subr.mxu0 0.0
    %3982 = vmatpush1.msra.mxu0 0.0
    %3983 = vmatprep.subr.mxu0 0.0
    %3984 = vmatpush1.msra.mxu0 0.0
    %3985 = vmatprep.subr.mxu0 0.0
    %3986 = vmatpush1.msra.mxu0 0.0
    %3987 = vmatprep.subr.mxu0 0.0
    %3988 = vmatpush1.msra.mxu0 0.0
    %3989 = vmatprep.subr.mxu0 0.0
    %3990 = vmatpush1.msra.mxu0 0.0
    %3991 = vmatprep.subr.mxu0 0.0
    %3992 = vmatpush1.msra.mxu0 0.0
    %3993 = vmatprep.subr.mxu0 0.0
    %3994 = vmatpush1.msra.mxu0 0.0
    %3995 = vmatprep.subr.mxu0 0.0
    %3996 = vmatpush1.msra.mxu0 0.0
    %3997 = vmatprep.subr.mxu0 0.0
    %3998 = vmatpush1.msra.mxu0 0.0
    %3999 = vmatprep.subr.mxu0 0.0
    %4000 = vmatpush1.msra.mxu0 0.0
    %4001 = vmatprep.mubr.f32.mxu0 0.0
    %4002 = vmatmul.mubr.f32.gmra.mrb[0].mxu0 %v3935
    %v4003 = vpop.f32.mrb[0].mxu0
    %v4004 = vadd.f32 %v87, %v4003
    %v4005 = vpop.f32.mrb[0].mxu0
    %4006 = vdwg.mxu0
    %v4007 = vtanh.pop %v4004
    %v4009 = vsel %vm97, %v4007, 0
    %4011 = vmatprep.subr.mxu0 0.0
    %4012 = vmatpush1.msra.mxu0 %v78
    %4013 = vmatprep.subr.mxu0 0.0
    %4014 = vmatpush1.msra.mxu0 %v79
    %4015 = vmatprep.subr.mxu0 0.0
    %4016 = vmatpush1.msra.mxu0 %v80
    %4017 = vmatprep.subr.mxu0 0.0
    %4018 = vmatpush1.msra.mxu0 %v81
    %4019 = vmatprep.subr.mxu0 0.0
    %4020 = vmatpush1.msra.mxu0 0.0
    %4021 = vmatprep.subr.mxu0 0.0
    %4022 = vmatpush1.msra.mxu0 0.0
    %4023 = vmatprep.subr.mxu0 0.0
    %4024 = vmatpush1.msra.mxu0 0.0
    %4025 = vmatprep.subr.mxu0 0.0
    %4026 = vmatpush1.msra.mxu0 0.0
    %4027 = vmatprep.subr.mxu0 0.0
    %4028 = vmatpush1.msra.mxu0 0.0
    %4029 = vmatprep.subr.mxu0 0.0
    %4030 = vmatpush1.msra.mxu0 0.0
    %4031 = vmatprep.subr.mxu0 0.0
    %4032 = vmatpush1.msra.mxu0 0.0
    %4033 = vmatprep.subr.mxu0 0.0
    %4034 = vmatpush1.msra.mxu0 0.0
    %4035 = vmatprep.subr.mxu0 0.0
    %4036 = vmatpush1.msra.mxu0 0.0
    %4037 = vmatprep.subr.mxu0 0.0
    %4038 = vmatpush1.msra.mxu0 0.0
    %4039 = vmatprep.subr.mxu0 0.0
    %4040 = vmatpush1.msra.mxu0 0.0
    %4041 = vmatprep.subr.mxu0 0.0
    %4042 = vmatpush1.msra.mxu0 0.0
    %4043 = vmatprep.subr.mxu0 0.0
    %4044 = vmatpush1.msra.mxu0 0.0
    %4045 = vmatprep.subr.mxu0 0.0
    %4046 = vmatpush1.msra.mxu0 0.0
    %4047 = vmatprep.subr.mxu0 0.0
    %4048 = vmatpush1.msra.mxu0 0.0
    %4049 = vmatprep.subr.mxu0 0.0
    %4050 = vmatpush1.msra.mxu0 0.0
    %4051 = vmatprep.subr.mxu0 0.0
    %4052 = vmatpush1.msra.mxu0 0.0
    %4053 = vmatprep.subr.mxu0 0.0
    %4054 = vmatpush1.msra.mxu0 0.0
    %4055 = vmatprep.subr.mxu0 0.0
    %4056 = vmatpush1.msra.mxu0 0.0
    %4057 = vmatprep.subr.mxu0 0.0
    %4058 = vmatpush1.msra.mxu0 0.0
    %4059 = vmatprep.subr.mxu0 0.0
    %4060 = vmatpush1.msra.mxu0 0.0
    %4061 = vmatprep.subr.mxu0 0.0
    %4062 = vmatpush1.msra.mxu0 0.0
    %4063 = vmatprep.subr.mxu0 0.0
    %4064 = vmatpush1.msra.mxu0 0.0
    %4065 = vmatprep.subr.mxu0 0.0
    %4066 = vmatpush1.msra.mxu0 0.0
    %4067 = vmatprep.subr.mxu0 0.0
    %4068 = vmatpush1.msra.mxu0 0.0
    %4069 = vmatprep.subr.mxu0 0.0
    %4070 = vmatpush1.msra.mxu0 0.0
    %4071 = vmatprep.subr.mxu0 0.0
    %4072 = vmatpush1.msra.mxu0 0.0
    %4073 = vmatprep.subr.mxu0 0.0
    %4074 = vmatpush1.msra.mxu0 0.0
    %4075 = vmatprep.mubr.f32.mxu0 0.0
    %4076 = vmatmul.mubr.f32.gmra.mrb[0].mxu0 %v4009
    %v4077 = vpop.f32.mrb[0].mxu0
    %v4078 = vadd.f32 %v94, %v4077
    %v4079 = vpop.f32.mrb[0].mxu0
    %4080 = vdwg.mxu0
    %v4081 = vmul.f32 %v3931, %v4078
    %v4082 = vadd.f32 %v3774, %v4081
    %v4084 = vsel %vm97, %v4082, 0
    %4086 = vmatprep.subr.mxu0 0.0
    %4087 = vmatpush1.msra.mxu0 %v74
    %4088 = vmatprep.subr.mxu0 0.0
    %4089 = vmatpush1.msra.mxu0 %v75
    %4090 = vmatprep.subr.mxu0 0.0
    %4091 = vmatpush1.msra.mxu0 %v76
    %4092 = vmatprep.subr.mxu0 0.0
    %4093 = vmatpush1.msra.mxu0 %v77
    %4094 = vmatprep.subr.mxu0 0.0
    %4095 = vmatpush1.msra.mxu0 0.0
    %4096 = vmatprep.subr.mxu0 0.0
    %4097 = vmatpush1.msra.mxu0 0.0
    %4098 = vmatprep.subr.mxu0 0.0
    %4099 = vmatpush1.msra.mxu0 0.0
    %4100 = vmatprep.subr.mxu0 0.0
    %4101 = vmatpush1.msra.mxu0 0.0
    %4102 = vmatprep.subr.mxu0 0.0
    %4103 = vmatpush1.msra.mxu0 0.0
    %4104 = vmatprep.subr.mxu0 0.0
    %4105 = vmatpush1.msra.mxu0 0.0
    %4106 = vmatprep.subr.mxu0 0.0
    %4107 = vmatpush1.msra.mxu0 0.0
    %4108 = vmatprep.subr.mxu0 0.0
    %4109 = vmatpush1.msra.mxu0 0.0
    %4110 = vmatprep.subr.mxu0 0.0
    %4111 = vmatpush1.msra.mxu0 0.0
    %4112 = vmatprep.subr.mxu0 0.0
    %4113 = vmatpush1.msra.mxu0 0.0
    %4114 = vmatprep.subr.mxu0 0.0
    %4115 = vmatpush1.msra.mxu0 0.0
    %4116 = vmatprep.subr.mxu0 0.0
    %4117 = vmatpush1.msra.mxu0 0.0
    %4118 = vmatprep.subr.mxu0 0.0
    %4119 = vmatpush1.msra.mxu0 0.0
    %4120 = vmatprep.subr.mxu0 0.0
    %4121 = vmatpush1.msra.mxu0 0.0
    %4122 = vmatprep.subr.mxu0 0.0
    %4123 = vmatpush1.msra.mxu0 0.0
    %4124 = vmatprep.subr.mxu0 0.0
    %4125 = vmatpush1.msra.mxu0 0.0
    %4126 = vmatprep.subr.mxu0 0.0
    %4127 = vmatpush1.msra.mxu0 0.0
    %4128 = vmatprep.subr.mxu0 0.0
    %4129 = vmatpush1.msra.mxu0 0.0
    %4130 = vmatprep.subr.mxu0 0.0
    %4131 = vmatpush1.msra.mxu0 0.0
    %4132 = vmatprep.subr.mxu0 0.0
    %4133 = vmatpush1.msra.mxu0 0.0
    %4134 = vmatprep.subr.mxu0 0.0
    %4135 = vmatpush1.msra.mxu0 0.0
    %4136 = vmatprep.subr.mxu0 0.0
    %4137 = vmatpush1.msra.mxu0 0.0
    %4138 = vmatprep.subr.mxu0 0.0
    %4139 = vmatpush1.msra.mxu0 0.0
    %4140 = vmatprep.subr.mxu0 0.0
    %4141 = vmatpush1.msra.mxu0 0.0
    %4142 = vmatprep.subr.mxu0 0.0
    %4143 = vmatpush1.msra.mxu0 0.0
    %4144 = vmatprep.subr.mxu0 0.0
    %4145 = vmatpush1.msra.mxu0 0.0
    %4146 = vmatprep.subr.mxu0 0.0
    %4147 = vmatpush1.msra.mxu0 0.0
    %4148 = vmatprep.subr.mxu0 0.0
    %4149 = vmatpush1.msra.mxu0 0.0
    %4150 = vmatprep.mubr.f32.mxu0 0.0
    %4151 = vmatmul.mubr.f32.gmra.mrb[0].mxu0 %v4084
    %v4152 = vpop.f32.mrb[0].mxu0
    %v4153 = vadd.f32 %v87, %v4152
    %v4154 = vpop.f32.mrb[0].mxu0
    %4155 = vdwg.mxu0
    %v4156 = vtanh.pop %v4153
    %v4158 = vsel %vm97, %v4156, 0
    %4160 = vmatprep.subr.mxu0 0.0
    %4161 = vmatpush1.msra.mxu0 %v78
    %4162 = vmatprep.subr.mxu0 0.0
    %4163 = vmatpush1.msra.mxu0 %v79
    %4164 = vmatprep.subr.mxu0 0.0
    %4165 = vmatpush1.msra.mxu0 %v80
    %4166 = vmatprep.subr.mxu0 0.0
    %4167 = vmatpush1.msra.mxu0 %v81
    %4168 = vmatprep.subr.mxu0 0.0
    %4169 = vmatpush1.msra.mxu0 0.0
    %4170 = vmatprep.subr.mxu0 0.0
    %4171 = vmatpush1.msra.mxu0 0.0
    %4172 = vmatprep.subr.mxu0 0.0
    %4173 = vmatpush1.msra.mxu0 0.0
    %4174 = vmatprep.subr.mxu0 0.0
    %4175 = vmatpush1.msra.mxu0 0.0
    %4176 = vmatprep.subr.mxu0 0.0
    %4177 = vmatpush1.msra.mxu0 0.0
    %4178 = vmatprep.subr.mxu0 0.0
    %4179 = vmatpush1.msra.mxu0 0.0
    %4180 = vmatprep.subr.mxu0 0.0
    %4181 = vmatpush1.msra.mxu0 0.0
    %4182 = vmatprep.subr.mxu0 0.0
    %4183 = vmatpush1.msra.mxu0 0.0
    %4184 = vmatprep.subr.mxu0 0.0
    %4185 = vmatpush1.msra.mxu0 0.0
    %4186 = vmatprep.subr.mxu0 0.0
    %4187 = vmatpush1.msra.mxu0 0.0
    %4188 = vmatprep.subr.mxu0 0.0
    %4189 = vmatpush1.msra.mxu0 0.0
    %4190 = vmatprep.subr.mxu0 0.0
    %4191 = vmatpush1.msra.mxu0 0.0
    %4192 = vmatprep.subr.mxu0 0.0
    %4193 = vmatpush1.msra.mxu0 0.0
    %4194 = vmatprep.subr.mxu0 0.0
    %4195 = vmatpush1.msra.mxu0 0.0
    %4196 = vmatprep.subr.mxu0 0.0
    %4197 = vmatpush1.msra.mxu0 0.0
    %4198 = vmatprep.subr.mxu0 0.0
    %4199 = vmatpush1.msra.mxu0 0.0
    %4200 = vmatprep.subr.mxu0 0.0
    %4201 = vmatpush1.msra.mxu0 0.0
    %4202 = vmatprep.subr.mxu0 0.0
    %4203 = vmatpush1.msra.mxu0 0.0
    %4204 = vmatprep.subr.mxu0 0.0
    %4205 = vmatpush1.msra.mxu0 0.0
    %4206 = vmatprep.subr.mxu0 0.0
    %4207 = vmatpush1.msra.mxu0 0.0
    %4208 = vmatprep.subr.mxu0 0.0
    %4209 = vmatpush1.msra.mxu0 0.0
    %4210 = vmatprep.subr.mxu0 0.0
    %4211 = vmatpush1.msra.mxu0 0.0
    %4212 = vmatprep.subr.mxu0 0.0
    %4213 = vmatpush1.msra.mxu0 0.0
    %4214 = vmatprep.subr.mxu0 0.0
    %4215 = vmatpush1.msra.mxu0 0.0
    %4216 = vmatprep.subr.mxu0 0.0
    %4217 = vmatpush1.msra.mxu0 0.0
    %4218 = vmatprep.subr.mxu0 0.0
    %4219 = vmatpush1.msra.mxu0 0.0
    %4220 = vmatprep.subr.mxu0 0.0
    %4221 = vmatpush1.msra.mxu0 0.0
    %4222 = vmatprep.subr.mxu0 0.0
    %4223 = vmatpush1.msra.mxu0 0.0
    %4224 = vmatprep.mubr.f32.mxu0 0.0
    %4225 = vmatmul.mubr.f32.gmra.mrb[0].mxu0 %v4158
    %v4226 = vpop.f32.mrb[0].mxu0
    %v4227 = vadd.f32 %v94, %v4226
    %v4228 = vpop.f32.mrb[0].mxu0
    %4229 = vdwg.mxu0
    %v4230 = vstv %s3779
    %v4231 = vmul.f32 %v4230, %v4227
    %v4232 = vadd.f32 %v3774, %v4231
    %v4234 = vsel %vm97, %v4232, 0
    %4236 = vmatprep.subr.mxu0 0.0
    %4237 = vmatpush1.msra.mxu0 %v74
    %4238 = vmatprep.subr.mxu0 0.0
    %4239 = vmatpush1.msra.mxu0 %v75
    %4240 = vmatprep.subr.mxu0 0.0
    %4241 = vmatpush1.msra.mxu0 %v76
    %4242 = vmatprep.subr.mxu0 0.0
    %4243 = vmatpush1.msra.mxu0 %v77
    %4244 = vmatprep.subr.mxu0 0.0
    %4245 = vmatpush1.msra.mxu0 0.0
    %4246 = vmatprep.subr.mxu0 0.0
    %4247 = vmatpush1.msra.mxu0 0.0
    %4248 = vmatprep.subr.mxu0 0.0
    %4249 = vmatpush1.msra.mxu0 0.0
    %4250 = vmatprep.subr.mxu0 0.0
    %4251 = vmatpush1.msra.mxu0 0.0
    %4252 = vmatprep.subr.mxu0 0.0
    %4253 = vmatpush1.msra.mxu0 0.0
    %4254 = vmatprep.subr.mxu0 0.0
    %4255 = vmatpush1.msra.mxu0 0.0
    %4256 = vmatprep.subr.mxu0 0.0
    %4257 = vmatpush1.msra.mxu0 0.0
    %4258 = vmatprep.subr.mxu0 0.0
    %4259 = vmatpush1.msra.mxu0 0.0
    %4260 = vmatprep.subr.mxu0 0.0
    %4261 = vmatpush1.msra.mxu0 0.0
    %4262 = vmatprep.subr.mxu0 0.0
    %4263 = vmatpush1.msra.mxu0 0.0
    %4264 = vmatprep.subr.mxu0 0.0
    %4265 = vmatpush1.msra.mxu0 0.0
    %4266 = vmatprep.subr.mxu0 0.0
    %4267 = vmatpush1.msra.mxu0 0.0
    %4268 = vmatprep.subr.mxu0 0.0
    %4269 = vmatpush1.msra.mxu0 0.0
    %4270 = vmatprep.subr.mxu0 0.0
    %4271 = vmatpush1.msra.mxu0 0.0
    %4272 = vmatprep.subr.mxu0 0.0
    %4273 = vmatpush1.msra.mxu0 0.0
    %4274 = vmatprep.subr.mxu0 0.0
    %4275 = vmatpush1.msra.mxu0 0.0
    %4276 = vmatprep.subr.mxu0 0.0
    %4277 = vmatpush1.msra.mxu0 0.0
    %4278 = vmatprep.subr.mxu0 0.0
    %4279 = vmatpush1.msra.mxu0 0.0
    %4280 = vmatprep.subr.mxu0 0.0
    %4281 = vmatpush1.msra.mxu0 0.0
    %4282 = vmatprep.subr.mxu0 0.0
    %4283 = vmatpush1.msra.mxu0 0.0
    %4284 = vmatprep.subr.mxu0 0.0
    %4285 = vmatpush1.msra.mxu0 0.0
    %4286 = vmatprep.subr.mxu0 0.0
    %4287 = vmatpush1.msra.mxu0 0.0
    %4288 = vmatprep.subr.mxu0 0.0
    %4289 = vmatpush1.msra.mxu0 0.0
    %4290 = vmatprep.subr.mxu0 0.0
    %4291 = vmatpush1.msra.mxu0 0.0
    %4292 = vmatprep.subr.mxu0 0.0
    %4293 = vmatpush1.msra.mxu0 0.0
    %4294 = vmatprep.subr.mxu0 0.0
    %4295 = vmatpush1.msra.mxu0 0.0
    %4296 = vmatprep.subr.mxu0 0.0
    %4297 = vmatpush1.msra.mxu0 0.0
    %4298 = vmatprep.subr.mxu0 0.0
    %4299 = vmatpush1.msra.mxu0 0.0
    %4300 = vmatprep.mubr.f32.mxu0 0.0
    %4301 = vmatmul.mubr.f32.gmra.mrb[0].mxu0 %v4234
    %v4302 = vpop.f32.mrb[0].mxu0
    %v4303 = vadd.f32 %v87, %v4302
    %v4304 = vpop.f32.mrb[0].mxu0
    %4305 = vdwg.mxu0
    %v4306 = vtanh.pop %v4303
    %v4308 = vsel %vm97, %v4306, 0
    %4310 = vmatprep.subr.mxu0 0.0
    %4311 = vmatpush1.msra.mxu0 %v78
    %4312 = vmatprep.subr.mxu0 0.0
    %4313 = vmatpush1.msra.mxu0 %v79
    %4314 = vmatprep.subr.mxu0 0.0
    %4315 = vmatpush1.msra.mxu0 %v80
    %4316 = vmatprep.subr.mxu0 0.0
    %4317 = vmatpush1.msra.mxu0 %v81
    %4318 = vmatprep.subr.mxu0 0.0
    %4319 = vmatpush1.msra.mxu0 0.0
    %4320 = vmatprep.subr.mxu0 0.0
    %4321 = vmatpush1.msra.mxu0 0.0
    %4322 = vmatprep.subr.mxu0 0.0
    %4323 = vmatpush1.msra.mxu0 0.0
    %4324 = vmatprep.subr.mxu0 0.0
    %4325 = vmatpush1.msra.mxu0 0.0
    %4326 = vmatprep.subr.mxu0 0.0
    %4327 = vmatpush1.msra.mxu0 0.0
    %4328 = vmatprep.subr.mxu0 0.0
    %4329 = vmatpush1.msra.mxu0 0.0
    %4330 = vmatprep.subr.mxu0 0.0
    %4331 = vmatpush1.msra.mxu0 0.0
    %4332 = vmatprep.subr.mxu0 0.0
    %4333 = vmatpush1.msra.mxu0 0.0
    %4334 = vmatprep.subr.mxu0 0.0
    %4335 = vmatpush1.msra.mxu0 0.0
    %4336 = vmatprep.subr.mxu0 0.0
    %4337 = vmatpush1.msra.mxu0 0.0
    %4338 = vmatprep.subr.mxu0 0.0
    %4339 = vmatpush1.msra.mxu0 0.0
    %4340 = vmatprep.subr.mxu0 0.0
    %4341 = vmatpush1.msra.mxu0 0.0
    %4342 = vmatprep.subr.mxu0 0.0
    %4343 = vmatpush1.msra.mxu0 0.0
    %4344 = vmatprep.subr.mxu0 0.0
    %4345 = vmatpush1.msra.mxu0 0.0
    %4346 = vmatprep.subr.mxu0 0.0
    %4347 = vmatpush1.msra.mxu0 0.0
    %4348 = vmatprep.subr.mxu0 0.0
    %4349 = vmatpush1.msra.mxu0 0.0
    %4350 = vmatprep.subr.mxu0 0.0
    %4351 = vmatpush1.msra.mxu0 0.0
    %4352 = vmatprep.subr.mxu0 0.0
    %4353 = vmatpush1.msra.mxu0 0.0
    %4354 = vmatprep.subr.mxu0 0.0
    %4355 = vmatpush1.msra.mxu0 0.0
    %4356 = vmatprep.subr.mxu0 0.0
    %4357 = vmatpush1.msra.mxu0 0.0
    %4358 = vmatprep.subr.mxu0 0.0
    %4359 = vmatpush1.msra.mxu0 0.0
    %4360 = vmatprep.subr.mxu0 0.0
    %4361 = vmatpush1.msra.mxu0 0.0
    %4362 = vmatprep.subr.mxu0 0.0
    %4363 = vmatpush1.msra.mxu0 0.0
    %4364 = vmatprep.subr.mxu0 0.0
    %4365 = vmatpush1.msra.mxu0 0.0
    %4366 = vmatprep.subr.mxu0 0.0
    %4367 = vmatpush1.msra.mxu0 0.0
    %4368 = vmatprep.subr.mxu0 0.0
    %4369 = vmatpush1.msra.mxu0 0.0
    %4370 = vmatprep.subr.mxu0 0.0
    %4371 = vmatpush1.msra.mxu0 0.0
    %4372 = vmatprep.subr.mxu0 0.0
    %4373 = vmatpush1.msra.mxu0 0.0
    %4374 = vmatprep.mubr.f32.mxu0 0.0
    %4375 = vmatmul.mubr.f32.gmra.mrb[0].mxu0 %v4308
    %v4376 = vpop.f32.mrb[0].mxu0
    %v4377 = vadd.f32 %v94, %v4376
    %v4378 = vpop.f32.mrb[0].mxu0
    %4379 = vdwg.mxu0
    %v4380 = vmul.f32 %v4078, 2.0
    %v4381 = vadd.f32 %v3928, %v4380
    %v4382 = vmul.f32 %v4227, 2.0
    %v4383 = vadd.f32 %v4381, %v4382
    %v4384 = vadd.f32 %v4383, %v4377
    %v4385 = vstv %s3783
    %v4386 = vmul.f32 %v4385, %v4384
    %v4387 = vadd.f32 %v3774, %v4386
    %s4388 = scalar_lea.vmem [#allocation10], 56
    %4389 = vst.msk [vmem:[%s4388] sm:$0xff] %vm97, %v4387
    // Predicated region
    $region42: #{tpu_custom_call.1} parent=1 // pred_check
      _
    $region43: #{tpu_custom_call.1} parent=1 // pred_check_branch
      %4391 = sbr.rel (0) target = $region45
    $region44: #{tpu_custom_call.1} parent=1 // pred_region
      %s4393 = ssub.s32 1024, 1024
      %4394 = vsyncadd [#allocation4], %s4393
      %s4395 = sshll.u32 [#allocation10], 4
      %s4396 = int_to_ptr.vmem [resolvable:$true] %s4395
      %4401 = dma.vmem_to_hbm [thread:$0]  %s4396, 1024, %s6, [#allocation4], 128, 128, 8
    $region45: #{tpu_custom_call.1} parent=1 // pred_fallthru
      _
    // Predicated region
    $region46: #{tpu_custom_call.1} parent=1 // pred_check
      _
    $region47: #{tpu_custom_call.1} parent=1 // pred_check_branch
      %4403 = sbr.rel (0) target = $region49
    $region48: #{tpu_custom_call.1} parent=1 // pred_region
      %4404 = dma.done [#allocation4], 1024
    $region49: #{tpu_custom_call.1} parent=1 // pred_fallthru
      _
    %4405 = vsyncpa [#allocation3], 1
    %4406 = vsyncpa [#allocation8], 1
    %4407 = vsyncpa [#allocation4], 1
    %4408 = vsyncpa [#allocation5], 1

</llo_original>
